<compile_context>
chip_gen: v7x
topology: tpu7x:2x2x1
jax: 0.10.0
libtpu: 0.0.40
codegen_flags: <defaults>
</compile_context>

<pallas_src>
import math

import jax
import jax.numpy as jnp
from jax.experimental import pallas as pl
from jax.experimental.pallas import tpu as pltpu


# ---------------------------------------------------------------------------
# Fused kernel: BN -> ReLU -> conv -> BN -> ReLU -> conv -> concat, whole batch
# ---------------------------------------------------------------------------
def _make_fused_kernel(N, H, W, C, K, eps):
    P = K // 2                      # 'same' padding (odd kernel size assumed)
    HW = H * W
    KKC = K * K * C

    def kernel(x_ref, gamma_ref, beta_ref, w_ref, b_ref, o_ref, pad_ref):
        # x_ref:     (N, H, W, C)            NHWC activations (whole batch in VMEM)
        # gamma/beta (1, C)                  BatchNorm affine parameters (shared by both BN uses)
        # w_ref:     (K*K*C, C)              conv weights, rows ordered (dx, dy, cin)
        # b_ref:     (1, C)                  conv bias (shared by both convs)
        # o_ref:     (N, 2*C, H*W)           lane-dense NCHW-flat output: [x ; inter]
        # pad_ref:   (N, H+K-1, W+K-1, C)    zero-padded activation scratch

        x = x_ref[...]

        # ---- channel-concat, first half: pass x through in (C, H*W) layout
        #      (lane-dense store, no wrapper concat needed afterwards).
        for n in range(N):
            o_ref[n, 0:C, :] = jnp.transpose(x[n].reshape(HW, C))

        # ---- zero the conv halo exactly once; both stages fully overwrite the
        #      interior, so it never needs re-zeroing.
        pad_ref[...] = jnp.zeros_like(pad_ref)

        gamma = gamma_ref[...].reshape(1, 1, 1, C)
        beta = beta_ref[...].reshape(1, 1, 1, C)
        wmat = w_ref[...]           # (K*K*C, C)
        bias = b_ref[...]           # (1, C) -> broadcasts against (N*H*W, C)

        def bn_relu_conv(t):
            # BatchNorm, training mode: per-channel batch mean and *biased*
            # batch variance over (N, H, W); two-pass variance for robustness.
            mean = jnp.mean(t, axis=(0, 1, 2), keepdims=True)
            d = t - mean
            var = jnp.mean(d * d, axis=(0, 1, 2), keepdims=True)
            a = jnp.maximum(d * (gamma * jax.lax.rsqrt(var + eps)) + beta, 0.0)

            # 'same' conv padding: write activations into the zero-halo scratch.
            pad_ref[:, P:P + H, P:P + W, :] = a
            padded = pad_ref[...]

            # im2col: last-axis ordering is (dx, dy, cin) -> matches w_ref rows.
            rows = jnp.concatenate(
                [padded[:, dy:dy + H, :, :] for dy in range(K)], axis=-1)
            patches = jnp.concatenate(
                [rows[:, :, dx:dx + W, :] for dx in range(K)], axis=-1)
            patches = patches.reshape(N * HW, KKC)

            # Single MXU matmul per stage (default precision; HIGHEST removed).
            acc = jnp.dot(patches, wmat, preferred_element_type=jnp.float32)
            acc = acc + bias
            return acc.reshape(N, H, W, C)       # Cout == Cin for this module

        inter = bn_relu_conv(bn_relu_conv(x))

        # ---- channel-concat, second half: lane-dense (C, H*W) store per image.
        for n in range(N):
            o_ref[n, C:2 * C, :] = jnp.transpose(inter[n].reshape(HW, C))

    return kernel


# ---------------------------------------------------------------------------
# Wrapper: NCHW in / NCHW out (PyTorch interface); one XLA transpose at entry.
# ---------------------------------------------------------------------------
def complex_img_forward(x_nchw, gamma, beta, w_oihw, bias, eps=1e-5):
    N, C, H, W = x_nchw.shape
    O, I, KH, KW = w_oihw.shape
    assert O == C and I == C and KH == KW, "module forward requires in_channel == out_channel"
    K = KH

    # Only remaining wrapper-level data movement: NCHW -> NHWC of the input
    # (interface cost); the kernel emits NCHW-flat output so no transpose or
    # concatenate is needed on the way out.
    x_nhwc = jnp.transpose(x_nchw, (0, 2, 3, 1)).astype(jnp.float32)

    # Weight rows ordered (dx, dy, cin) to match the kernel's im2col layout.
    wmat = jnp.transpose(w_oihw.astype(jnp.float32), (3, 2, 1, 0)).reshape(K * K * C, C)

    out_cf = pl.pallas_call(
        _make_fused_kernel(N, H, W, C, K, eps),
        out_shape=jax.ShapeDtypeStruct((N, 2 * C, H * W), jnp.float32),
        scratch_shapes=[pltpu.VMEM((N, H + K - 1, W + K - 1, C), jnp.float32)],
    )(x_nhwc,
      gamma.reshape(1, C).astype(jnp.float32),
      beta.reshape(1, C).astype(jnp.float32),
      wmat,
      bias.reshape(1, C).astype(jnp.float32))

    return out_cf.reshape(N, 2 * C, H, W)        # free reshape, already NCHW order


# ---------------------------------------------------------------------------
# Pure-JAX reference (XLA conv / BN) for a correctness check
# ---------------------------------------------------------------------------
def reference(x, gamma, beta, w, b, eps=1e-5):
    g = gamma.reshape(1, -1, 1, 1)
    be = beta.reshape(1, -1, 1, 1)

    def bn(t):
        m = jnp.mean(t, axis=(0, 2, 3), keepdims=True)
        v = jnp.var(t, axis=(0, 2, 3), keepdims=True)   # biased, like BN training
        return (t - m) / jnp.sqrt(v + eps) * g + be

    def conv(t):
        return jax.lax.conv_general_dilated(
            t, w, window_strides=(1, 1), padding="SAME",
            dimension_numbers=("NCHW", "OIHW", "NCHW"),
            precision=jax.lax.Precision.HIGHEST) + b.reshape(1, -1, 1, 1)

    inter = conv(jnp.maximum(bn(x), 0.0))
    inter = conv(jnp.maximum(bn(inter), 0.0))
    return jnp.concatenate([x, inter], axis=1)


if __name__ == "__main__":
    # Small shapes consistent with the module: in_channel == out_channel == 4
    # (required by the PyTorch forward itself), kernel_size = 3.
    N, C, H, W, K = 2, 4, 16, 16, 3

    key = jax.random.PRNGKey(0)
    k_x, k_g, k_b, k_w, k_wb = jax.random.split(key, 5)

    x = jax.random.normal(k_x, (N, C, H, W), dtype=jnp.float32)

    # Deterministic parameter init (BatchNorm affine + Conv2d weights/bias).
    gamma = 1.0 + 0.1 * jax.random.normal(k_g, (C,), dtype=jnp.float32)
    beta = 0.1 * jax.random.normal(k_b, (C,), dtype=jnp.float32)
    bound = 1.0 / math.sqrt(C * K * K)
    w = jax.random.uniform(k_w, (C, C, K, K), minval=-bound, maxval=bound,
                           dtype=jnp.float32)            # OIHW, Cout == Cin
    cbias = jax.random.uniform(k_wb, (C,), minval=-bound, maxval=bound,
                               dtype=jnp.float32)

    fwd = jax.jit(complex_img_forward)
    out = jax.block_until_ready(fwd(x, gamma, beta, w, cbias))
    assert out.shape == (N, 2 * C, H, W), out.shape

    ref = reference(x, gamma, beta, w, cbias)
    max_err = float(jnp.max(jnp.abs(out - ref)))
    assert max_err < 5e-2, f"mismatch vs reference, max abs err = {max_err}"

    print("KERNEL_OK")
</pallas_src>

<mosaic_0001>
module attributes {stable_mosaic.version = 11 : i64} {
  func.func @kernel(%arg0: memref<2x16x16x4xf32, #tpu.memory_space<vmem>>, %arg1: memref<1x4xf32, #tpu.memory_space<vmem>>, %arg2: memref<1x4xf32, #tpu.memory_space<vmem>>, %arg3: memref<36x4xf32, #tpu.memory_space<vmem>>, %arg4: memref<1x4xf32, #tpu.memory_space<vmem>>, %arg5: memref<2x8x256xf32, #tpu.memory_space<vmem>>, %arg6: memref<2x18x18x4xf32, #tpu.memory_space<vmem>>) attributes {dimension_semantics = [], scalar_prefetch = 0 : i64, scratch_operands = 1 : i64, tpu.core_type = #tpu.core_type<tc>} {
    %c0 = arith.constant 0 : index
    %c0_0 = arith.constant 0 : index
    %c0_1 = arith.constant 0 : index
    %c0_2 = arith.constant 0 : index
    %0 = vector.load %arg0[%c0, %c0_0, %c0_1, %c0_2] : memref<2x16x16x4xf32, #tpu.memory_space<vmem>>, vector<2x16x16x4xf32>
    %1 = vector.extract_strided_slice %0 {offsets = [0, 0, 0, 0], sizes = [1, 16, 16, 4], strides = [1, 1, 1, 1]} : vector<2x16x16x4xf32> to vector<1x16x16x4xf32>
    %2 = vector.shape_cast %1 : vector<1x16x16x4xf32> to vector<16x16x4xf32>
    %3 = vector.shape_cast %2 : vector<16x16x4xf32> to vector<256x4xf32>
    %4 = tpu.transpose %3, [1, 0] : vector<256x4xf32> -> vector<4x256xf32>
    %c0_3 = arith.constant 0 : index
    %c0_4 = arith.constant 0 : index
    %c0_5 = arith.constant 0 : index
    %5 = vector.load %arg5[%c0_3, %c0_4, %c0_5] : memref<2x8x256xf32, #tpu.memory_space<vmem>>, vector<1x4x256xf32>
    %6 = vector.shape_cast %5 : vector<1x4x256xf32> to vector<4x256xf32>
    %7 = vector.shape_cast %4 : vector<4x256xf32> to vector<1x4x256xf32>
    tpu.vector_store %arg5[%c0_3, %c0_4, %c0_5], %7 {strides = array<i32>} : memref<2x8x256xf32, #tpu.memory_space<vmem>>, vector<1x4x256xf32>,
    %8 = vector.extract_strided_slice %0 {offsets = [1, 0, 0, 0], sizes = [1, 16, 16, 4], strides = [1, 1, 1, 1]} : vector<2x16x16x4xf32> to vector<1x16x16x4xf32>
    %9 = vector.shape_cast %8 : vector<1x16x16x4xf32> to vector<16x16x4xf32>
    %10 = vector.shape_cast %9 : vector<16x16x4xf32> to vector<256x4xf32>
    %11 = tpu.transpose %10, [1, 0] : vector<256x4xf32> -> vector<4x256xf32>
    %c1 = arith.constant 1 : index
    %c0_6 = arith.constant 0 : index
    %c0_7 = arith.constant 0 : index
    %12 = vector.load %arg5[%c1, %c0_6, %c0_7] : memref<2x8x256xf32, #tpu.memory_space<vmem>>, vector<1x4x256xf32>
    %13 = vector.shape_cast %12 : vector<1x4x256xf32> to vector<4x256xf32>
    %14 = vector.shape_cast %11 : vector<4x256xf32> to vector<1x4x256xf32>
    tpu.vector_store %arg5[%c1, %c0_6, %c0_7], %14 {strides = array<i32>} : memref<2x8x256xf32, #tpu.memory_space<vmem>>, vector<1x4x256xf32>,
    %cst = arith.constant 0.000000e+00 : f32
    %15 = vector.broadcast %cst : f32 to vector<2x18x18x4xf32>
    %c0_8 = arith.constant 0 : index
    %c0_9 = arith.constant 0 : index
    %c0_10 = arith.constant 0 : index
    %c0_11 = arith.constant 0 : index
    %16 = vector.load %arg6[%c0_8, %c0_9, %c0_10, %c0_11] : memref<2x18x18x4xf32, #tpu.memory_space<vmem>>, vector<2x18x18x4xf32>
    tpu.vector_store %arg6[%c0_8, %c0_9, %c0_10, %c0_11], %15 {strides = array<i32>} : memref<2x18x18x4xf32, #tpu.memory_space<vmem>>, vector<2x18x18x4xf32>,
    %c0_12 = arith.constant 0 : index
    %c0_13 = arith.constant 0 : index
    %17 = vector.load %arg1[%c0_12, %c0_13] : memref<1x4xf32, #tpu.memory_space<vmem>>, vector<1x4xf32>
    %18 = vector.shape_cast %17 : vector<1x4xf32> to vector<1x1x1x4xf32>
    %c0_14 = arith.constant 0 : index
    %c0_15 = arith.constant 0 : index
    %19 = vector.load %arg2[%c0_14, %c0_15] : memref<1x4xf32, #tpu.memory_space<vmem>>, vector<1x4xf32>
    %20 = vector.shape_cast %19 : vector<1x4xf32> to vector<1x1x1x4xf32>
    %c0_16 = arith.constant 0 : index
    %c0_17 = arith.constant 0 : index
    %21 = vector.load %arg3[%c0_16, %c0_17] : memref<36x4xf32, #tpu.memory_space<vmem>>, vector<36x4xf32>
    %c0_18 = arith.constant 0 : index
    %c0_19 = arith.constant 0 : index
    %22 = vector.load %arg4[%c0_18, %c0_19] : memref<1x4xf32, #tpu.memory_space<vmem>>, vector<1x4xf32>
    %cst_20 = arith.constant dense<0.000000e+00> : vector<4xf32>
    %23 = vector.multi_reduction <add>, %0, %cst_20 [0, 1, 2] : vector<2x16x16x4xf32> to vector<4xf32>
    %24 = vector.shape_cast %23 : vector<4xf32> to vector<1x1x1x4xf32>
    %cst_21 = arith.constant 5.120000e+02 : f32
    %25 = vector.broadcast %cst_21 : f32 to vector<1x1x1x4xf32>
    %26 = arith.divf %24, %25 : vector<1x1x1x4xf32>
    %27 = vector.broadcast %26 : vector<1x1x1x4xf32> to vector<2x16x16x4xf32>
    %28 = arith.subf %0, %27 : vector<2x16x16x4xf32>
    %29 = arith.mulf %28, %28 : vector<2x16x16x4xf32>
    %cst_22 = arith.constant dense<0.000000e+00> : vector<4xf32>
    %30 = vector.multi_reduction <add>, %29, %cst_22 [0, 1, 2] : vector<2x16x16x4xf32> to vector<4xf32>
    %31 = vector.shape_cast %30 : vector<4xf32> to vector<1x1x1x4xf32>
    %cst_23 = arith.constant 5.120000e+02 : f32
    %32 = vector.broadcast %cst_23 : f32 to vector<1x1x1x4xf32>
    %33 = arith.divf %31, %32 : vector<1x1x1x4xf32>
    %cst_24 = arith.constant 9.99999974E-6 : f32
    %34 = vector.broadcast %cst_24 : f32 to vector<1x1x1x4xf32>
    %35 = arith.addf %33, %34 : vector<1x1x1x4xf32>
    %36 = math.rsqrt %35 : vector<1x1x1x4xf32>
    %37 = arith.mulf %18, %36 : vector<1x1x1x4xf32>
    %38 = vector.broadcast %37 : vector<1x1x1x4xf32> to vector<2x16x16x4xf32>
    %39 = arith.mulf %28, %38 : vector<2x16x16x4xf32>
    %40 = vector.broadcast %20 : vector<1x1x1x4xf32> to vector<2x16x16x4xf32>
    %41 = arith.addf %39, %40 : vector<2x16x16x4xf32>
    %cst_25 = arith.constant 0.000000e+00 : f32
    %42 = vector.broadcast %cst_25 : f32 to vector<2x16x16x4xf32>
    %43 = arith.maximumf %41, %42 : vector<2x16x16x4xf32>
    %c0_26 = arith.constant 0 : index
    %c1_27 = arith.constant 1 : index
    %c1_28 = arith.constant 1 : index
    %c0_29 = arith.constant 0 : index
    %44 = vector.load %arg6[%c0_26, %c1_27, %c1_28, %c0_29] : memref<2x18x18x4xf32, #tpu.memory_space<vmem>>, vector<2x16x16x4xf32>
    tpu.vector_store %arg6[%c0_26, %c1_27, %c1_28, %c0_29], %43 {strides = array<i32>} : memref<2x18x18x4xf32, #tpu.memory_space<vmem>>, vector<2x16x16x4xf32>,
    %c0_30 = arith.constant 0 : index
    %c0_31 = arith.constant 0 : index
    %c0_32 = arith.constant 0 : index
    %c0_33 = arith.constant 0 : index
    %45 = vector.load %arg6[%c0_30, %c0_31, %c0_32, %c0_33] : memref<2x18x18x4xf32, #tpu.memory_space<vmem>>, vector<2x18x18x4xf32>
    %46 = vector.extract_strided_slice %45 {offsets = [0, 0, 0, 0], sizes = [2, 16, 18, 4], strides = [1, 1, 1, 1]} : vector<2x18x18x4xf32> to vector<2x16x18x4xf32>
    %47 = vector.extract_strided_slice %45 {offsets = [0, 1, 0, 0], sizes = [2, 16, 18, 4], strides = [1, 1, 1, 1]} : vector<2x18x18x4xf32> to vector<2x16x18x4xf32>
    %48 = vector.extract_strided_slice %45 {offsets = [0, 2, 0, 0], sizes = [2, 16, 18, 4], strides = [1, 1, 1, 1]} : vector<2x18x18x4xf32> to vector<2x16x18x4xf32>
    %49 = tpu.concatenate %46, %47, %48 in 3 : vector<2x16x18x4xf32>, vector<2x16x18x4xf32>, vector<2x16x18x4xf32> -> vector<2x16x18x12xf32>
    %50 = vector.extract_strided_slice %49 {offsets = [0, 0, 0, 0], sizes = [2, 16, 16, 12], strides = [1, 1, 1, 1]} : vector<2x16x18x12xf32> to vector<2x16x16x12xf32>
    %51 = vector.extract_strided_slice %49 {offsets = [0, 0, 1, 0], sizes = [2, 16, 16, 12], strides = [1, 1, 1, 1]} : vector<2x16x18x12xf32> to vector<2x16x16x12xf32>
    %52 = vector.extract_strided_slice %49 {offsets = [0, 0, 2, 0], sizes = [2, 16, 16, 12], strides = [1, 1, 1, 1]} : vector<2x16x18x12xf32> to vector<2x16x16x12xf32>
    %53 = tpu.concatenate %50, %51, %52 in 3 : vector<2x16x16x12xf32>, vector<2x16x16x12xf32>, vector<2x16x16x12xf32> -> vector<2x16x16x36xf32>
    %54 = vector.shape_cast %53 : vector<2x16x16x36xf32> to vector<512x36xf32>
    %cst_34 = arith.constant dense<0.000000e+00> : vector<512x4xf32>
    %55 = tpu.matmul %54, %21, %cst_34 {dimension_numbers = #tpu.dot_dimension_numbers<[1], [0], [0], [1], [0, 0, 1, 1], [], []>} : vector<512x36xf32>, vector<36x4xf32>, vector<512x4xf32> -> vector<512x4xf32>
    %56 = vector.broadcast %22 : vector<1x4xf32> to vector<512x4xf32>
    %57 = arith.addf %55, %56 : vector<512x4xf32>
    %58 = vector.shape_cast %57 : vector<512x4xf32> to vector<2x16x16x4xf32>
    %cst_35 = arith.constant dense<0.000000e+00> : vector<4xf32>
    %59 = vector.multi_reduction <add>, %58, %cst_35 [0, 1, 2] : vector<2x16x16x4xf32> to vector<4xf32>
    %60 = vector.shape_cast %59 : vector<4xf32> to vector<1x1x1x4xf32>
    %cst_36 = arith.constant 5.120000e+02 : f32
    %61 = vector.broadcast %cst_36 : f32 to vector<1x1x1x4xf32>
    %62 = arith.divf %60, %61 : vector<1x1x1x4xf32>
    %63 = vector.broadcast %62 : vector<1x1x1x4xf32> to vector<2x16x16x4xf32>
    %64 = arith.subf %58, %63 : vector<2x16x16x4xf32>
    %65 = arith.mulf %64, %64 : vector<2x16x16x4xf32>
    %cst_37 = arith.constant dense<0.000000e+00> : vector<4xf32>
    %66 = vector.multi_reduction <add>, %65, %cst_37 [0, 1, 2] : vector<2x16x16x4xf32> to vector<4xf32>
    %67 = vector.shape_cast %66 : vector<4xf32> to vector<1x1x1x4xf32>
    %cst_38 = arith.constant 5.120000e+02 : f32
    %68 = vector.broadcast %cst_38 : f32 to vector<1x1x1x4xf32>
    %69 = arith.divf %67, %68 : vector<1x1x1x4xf32>
    %cst_39 = arith.constant 9.99999974E-6 : f32
    %70 = vector.broadcast %cst_39 : f32 to vector<1x1x1x4xf32>
    %71 = arith.addf %69, %70 : vector<1x1x1x4xf32>
    %72 = math.rsqrt %71 : vector<1x1x1x4xf32>
    %73 = arith.mulf %18, %72 : vector<1x1x1x4xf32>
    %74 = vector.broadcast %73 : vector<1x1x1x4xf32> to vector<2x16x16x4xf32>
    %75 = arith.mulf %64, %74 : vector<2x16x16x4xf32>
    %76 = vector.broadcast %20 : vector<1x1x1x4xf32> to vector<2x16x16x4xf32>
    %77 = arith.addf %75, %76 : vector<2x16x16x4xf32>
    %cst_40 = arith.constant 0.000000e+00 : f32
    %78 = vector.broadcast %cst_40 : f32 to vector<2x16x16x4xf32>
    %79 = arith.maximumf %77, %78 : vector<2x16x16x4xf32>
    %c0_41 = arith.constant 0 : index
    %c1_42 = arith.constant 1 : index
    %c1_43 = arith.constant 1 : index
    %c0_44 = arith.constant 0 : index
    %80 = vector.load %arg6[%c0_41, %c1_42, %c1_43, %c0_44] : memref<2x18x18x4xf32, #tpu.memory_space<vmem>>, vector<2x16x16x4xf32>
    tpu.vector_store %arg6[%c0_41, %c1_42, %c1_43, %c0_44], %79 {strides = array<i32>} : memref<2x18x18x4xf32, #tpu.memory_space<vmem>>, vector<2x16x16x4xf32>,
    %c0_45 = arith.constant 0 : index
    %c0_46 = arith.constant 0 : index
    %c0_47 = arith.constant 0 : index
    %c0_48 = arith.constant 0 : index
    %81 = vector.load %arg6[%c0_45, %c0_46, %c0_47, %c0_48] : memref<2x18x18x4xf32, #tpu.memory_space<vmem>>, vector<2x18x18x4xf32>
    %82 = vector.extract_strided_slice %81 {offsets = [0, 0, 0, 0], sizes = [2, 16, 18, 4], strides = [1, 1, 1, 1]} : vector<2x18x18x4xf32> to vector<2x16x18x4xf32>
    %83 = vector.extract_strided_slice %81 {offsets = [0, 1, 0, 0], sizes = [2, 16, 18, 4], strides = [1, 1, 1, 1]} : vector<2x18x18x4xf32> to vector<2x16x18x4xf32>
    %84 = vector.extract_strided_slice %81 {offsets = [0, 2, 0, 0], sizes = [2, 16, 18, 4], strides = [1, 1, 1, 1]} : vector<2x18x18x4xf32> to vector<2x16x18x4xf32>
    %85 = tpu.concatenate %82, %83, %84 in 3 : vector<2x16x18x4xf32>, vector<2x16x18x4xf32>, vector<2x16x18x4xf32> -> vector<2x16x18x12xf32>
    %86 = vector.extract_strided_slice %85 {offsets = [0, 0, 0, 0], sizes = [2, 16, 16, 12], strides = [1, 1, 1, 1]} : vector<2x16x18x12xf32> to vector<2x16x16x12xf32>
    %87 = vector.extract_strided_slice %85 {offsets = [0, 0, 1, 0], sizes = [2, 16, 16, 12], strides = [1, 1, 1, 1]} : vector<2x16x18x12xf32> to vector<2x16x16x12xf32>
    %88 = vector.extract_strided_slice %85 {offsets = [0, 0, 2, 0], sizes = [2, 16, 16, 12], strides = [1, 1, 1, 1]} : vector<2x16x18x12xf32> to vector<2x16x16x12xf32>
    %89 = tpu.concatenate %86, %87, %88 in 3 : vector<2x16x16x12xf32>, vector<2x16x16x12xf32>, vector<2x16x16x12xf32> -> vector<2x16x16x36xf32>
    %90 = vector.shape_cast %89 : vector<2x16x16x36xf32> to vector<512x36xf32>
    %cst_49 = arith.constant dense<0.000000e+00> : vector<512x4xf32>
    %91 = tpu.matmul %90, %21, %cst_49 {dimension_numbers = #tpu.dot_dimension_numbers<[1], [0], [0], [1], [0, 0, 1, 1], [], []>} : vector<512x36xf32>, vector<36x4xf32>, vector<512x4xf32> -> vector<512x4xf32>
    %92 = vector.broadcast %22 : vector<1x4xf32> to vector<512x4xf32>
    %93 = arith.addf %91, %92 : vector<512x4xf32>
    %94 = vector.shape_cast %93 : vector<512x4xf32> to vector<2x16x16x4xf32>
    %95 = vector.extract_strided_slice %94 {offsets = [0, 0, 0, 0], sizes = [1, 16, 16, 4], strides = [1, 1, 1, 1]} : vector<2x16x16x4xf32> to vector<1x16x16x4xf32>
    %96 = vector.shape_cast %95 : vector<1x16x16x4xf32> to vector<16x16x4xf32>
    %97 = vector.shape_cast %96 : vector<16x16x4xf32> to vector<256x4xf32>
    %98 = tpu.transpose %97, [1, 0] : vector<256x4xf32> -> vector<4x256xf32>
    %c0_50 = arith.constant 0 : index
    %c4 = arith.constant 4 : index
    %c0_51 = arith.constant 0 : index
    %99 = vector.load %arg5[%c0_50, %c4, %c0_51] : memref<2x8x256xf32, #tpu.memory_space<vmem>>, vector<1x4x256xf32>
    %100 = vector.shape_cast %99 : vector<1x4x256xf32> to vector<4x256xf32>
    %101 = vector.shape_cast %98 : vector<4x256xf32> to vector<1x4x256xf32>
    tpu.vector_store %arg5[%c0_50, %c4, %c0_51], %101 {strides = array<i32>} : memref<2x8x256xf32, #tpu.memory_space<vmem>>, vector<1x4x256xf32>,
    %102 = vector.extract_strided_slice %94 {offsets = [1, 0, 0, 0], sizes = [1, 16, 16, 4], strides = [1, 1, 1, 1]} : vector<2x16x16x4xf32> to vector<1x16x16x4xf32>
    %103 = vector.shape_cast %102 : vector<1x16x16x4xf32> to vector<16x16x4xf32>
    %104 = vector.shape_cast %103 : vector<16x16x4xf32> to vector<256x4xf32>
    %105 = tpu.transpose %104, [1, 0] : vector<256x4xf32> -> vector<4x256xf32>
    %c1_52 = arith.constant 1 : index
    %c4_53 = arith.constant 4 : index
    %c0_54 = arith.constant 0 : index
    %106 = vector.load %arg5[%c1_52, %c4_53, %c0_54] : memref<2x8x256xf32, #tpu.memory_space<vmem>>, vector<1x4x256xf32>
    %107 = vector.shape_cast %106 : vector<1x4x256xf32> to vector<4x256xf32>
    %108 = vector.shape_cast %105 : vector<4x256xf32> to vector<1x4x256xf32>
    tpu.vector_store %arg5[%c1_52, %c4_53, %c0_54], %108 {strides = array<i32>} : memref<2x8x256xf32, #tpu.memory_space<vmem>>, vector<1x4x256xf32>,
    return
  }
}

</mosaic_0001>

<llo_original>
// kernel: complex_img_forward.1
$region0: #{complex_img_forward.1}
  #allocation0 [shape = 'u32[]', space=smem, size = 0x4, offset = 0x4, fixed_abs, tag = 'smem constant byte address 0x4 - core index']
  #allocation1 [shape = 'u32[144,128]{1,0:T(1,128)}', space=vmem, size = 0x12000, scoped, tag = 'internal scratch']
  #allocation2 [shape = 'f32[2,18,18,4]{3,2,1,0:T(8,128)}', space=vmem, size = 0x6c000, scoped, tag = 'scratch operand']
  %s0 = inlined_call_operand.vmem [shape: f32[2,16,16,4], index: 0, kind: input, shape index: {}]
  %s1 = inlined_call_operand.vmem [shape: f32[1,4], index: 1, kind: input, shape index: {}]
  %s2 = inlined_call_operand.vmem [shape: f32[1,4], index: 2, kind: input, shape index: {}]
  %s3 = inlined_call_operand.vmem [shape: f32[36,4], index: 3, kind: input, shape index: {}]
  %s4 = inlined_call_operand.vmem [shape: f32[1,4], index: 4, kind: input, shape index: {}]
  %s5 = inlined_call_operand.vmem [shape: f32[2,8,256], index: 5, kind: output, shape index: {}]
  %s6 = sld [smem:[#allocation0]]
  $region30: #{complex_img_forward.1} parent=0
    _
  %s8 = ssub.s32 1, %s6
  %s9 = scalar_select 0, %s8, %s6
  // Predicated region
  $region2: #{complex_img_forward.1} parent=0 // pred_check
    _
  $region3: #{complex_img_forward.1} parent=0 // pred_check_branch
    %11 = sbr.rel (0) target = $region5
  $region4: #{complex_img_forward.1} parent=0 // pred_region
    _
  $region5: #{complex_img_forward.1} parent=0 // pred_fallthru
    _
  // Predicated region
  $region6: #{complex_img_forward.1} parent=0 // pred_check
    _
  $region7: #{complex_img_forward.1} parent=0 // pred_check_branch
    %13 = sbr.rel (0) target = $region9
  $region8: #{complex_img_forward.1} parent=0 // pred_region
    _
  $region9: #{complex_img_forward.1} parent=0 // pred_fallthru
    _
  // Predicated region
  $region10: #{complex_img_forward.1} parent=0 // pred_check
    _
  $region11: #{complex_img_forward.1} parent=0 // pred_check_branch
    %15 = sbr.rel (0) target = $region13
  $region12: #{complex_img_forward.1} parent=0 // pred_region
    _
  $region13: #{complex_img_forward.1} parent=0 // pred_fallthru
    _
  // Predicated region
  $region14: #{complex_img_forward.1} parent=0 // pred_check
    _
  $region15: #{complex_img_forward.1} parent=0 // pred_check_branch
    %17 = sbr.rel (0) target = $region17
  $region16: #{complex_img_forward.1} parent=0 // pred_region
    _
  $region17: #{complex_img_forward.1} parent=0 // pred_fallthru
    _
  // Predicated region
  $region18: #{complex_img_forward.1} parent=0 // pred_check
    _
  $region19: #{complex_img_forward.1} parent=0 // pred_check_branch
    %19 = sbr.rel (0) target = $region21
  $region20: #{complex_img_forward.1} parent=0 // pred_region
    _
  $region21: #{complex_img_forward.1} parent=0 // pred_fallthru
    _
  %v20 = vld [vmem:[%s0] sm:$0xff]
  %v21 = vld [vmem:[%s0 + $0x8] sm:$0xff]
  %v22 = vld [vmem:[%s0 + $0x10] sm:$0xff]
  %v23 = vld [vmem:[%s0 + $0x18] sm:$0xff]
  %v24 = vld [vmem:[%s0 + $0x20] sm:$0xff]
  %v25 = vld [vmem:[%s0 + $0x28] sm:$0xff]
  %v26 = vld [vmem:[%s0 + $0x30] sm:$0xff]
  %v27 = vld [vmem:[%s0 + $0x38] sm:$0xff]
  %v28 = vld [vmem:[%s0 + $0x40] sm:$0xff]
  %v29 = vld [vmem:[%s0 + $0x48] sm:$0xff]
  %v30 = vld [vmem:[%s0 + $0x50] sm:$0xff]
  %v31 = vld [vmem:[%s0 + $0x58] sm:$0xff]
  %v32 = vld [vmem:[%s0 + $0x60] sm:$0xff]
  %v33 = vld [vmem:[%s0 + $0x68] sm:$0xff]
  %v34 = vld [vmem:[%s0 + $0x70] sm:$0xff]
  %v35 = vld [vmem:[%s0 + $0x78] sm:$0xff]
  %v36 = vld [vmem:[%s0 + $0x80] sm:$0xff]
  %v37 = vld [vmem:[%s0 + $0x88] sm:$0xff]
  %v38 = vld [vmem:[%s0 + $0x90] sm:$0xff]
  %v39 = vld [vmem:[%s0 + $0x98] sm:$0xff]
  %v40 = vld [vmem:[%s0 + $0xa0] sm:$0xff]
  %v41 = vld [vmem:[%s0 + $0xa8] sm:$0xff]
  %v42 = vld [vmem:[%s0 + $0xb0] sm:$0xff]
  %v43 = vld [vmem:[%s0 + $0xb8] sm:$0xff]
  %v44 = vld [vmem:[%s0 + $0xc0] sm:$0xff]
  %v45 = vld [vmem:[%s0 + $0xc8] sm:$0xff]
  %v46 = vld [vmem:[%s0 + $0xd0] sm:$0xff]
  %v47 = vld [vmem:[%s0 + $0xd8] sm:$0xff]
  %v48 = vld [vmem:[%s0 + $0xe0] sm:$0xff]
  %v49 = vld [vmem:[%s0 + $0xe8] sm:$0xff]
  %v50 = vld [vmem:[%s0 + $0xf0] sm:$0xff]
  %v51 = vld [vmem:[%s0 + $0xf8] sm:$0xff]
  %v52 = vld [vmem:[%s0 + $0x100] sm:$0xff]
  %v53 = vld [vmem:[%s0 + $0x108] sm:$0xff]
  %v54 = vld [vmem:[%s0 + $0x110] sm:$0xff]
  %v55 = vld [vmem:[%s0 + $0x118] sm:$0xff]
  %v56 = vld [vmem:[%s0 + $0x120] sm:$0xff]
  %v57 = vld [vmem:[%s0 + $0x128] sm:$0xff]
  %v58 = vld [vmem:[%s0 + $0x130] sm:$0xff]
  %v59 = vld [vmem:[%s0 + $0x138] sm:$0xff]
  %v60 = vld [vmem:[%s0 + $0x140] sm:$0xff]
  %v61 = vld [vmem:[%s0 + $0x148] sm:$0xff]
  %v62 = vld [vmem:[%s0 + $0x150] sm:$0xff]
  %v63 = vld [vmem:[%s0 + $0x158] sm:$0xff]
  %v64 = vld [vmem:[%s0 + $0x160] sm:$0xff]
  %v65 = vld [vmem:[%s0 + $0x168] sm:$0xff]
  %v66 = vld [vmem:[%s0 + $0x170] sm:$0xff]
  %v67 = vld [vmem:[%s0 + $0x178] sm:$0xff]
  %v68 = vld [vmem:[%s0 + $0x180] sm:$0xff]
  %v69 = vld [vmem:[%s0 + $0x188] sm:$0xff]
  %v70 = vld [vmem:[%s0 + $0x190] sm:$0xff]
  %v71 = vld [vmem:[%s0 + $0x198] sm:$0xff]
  %v72 = vld [vmem:[%s0 + $0x1a0] sm:$0xff]
  %v73 = vld [vmem:[%s0 + $0x1a8] sm:$0xff]
  %v74 = vld [vmem:[%s0 + $0x1b0] sm:$0xff]
  %v75 = vld [vmem:[%s0 + $0x1b8] sm:$0xff]
  %v76 = vld [vmem:[%s0 + $0x1c0] sm:$0xff]
  %v77 = vld [vmem:[%s0 + $0x1c8] sm:$0xff]
  %v78 = vld [vmem:[%s0 + $0x1d0] sm:$0xff]
  %v79 = vld [vmem:[%s0 + $0x1d8] sm:$0xff]
  %v80 = vld [vmem:[%s0 + $0x1e0] sm:$0xff]
  %v81 = vld [vmem:[%s0 + $0x1e8] sm:$0xff]
  %v82 = vld [vmem:[%s0 + $0x1f0] sm:$0xff]
  %v83 = vld [vmem:[%s0 + $0x1f8] sm:$0xff]
  %84 = vxpose.xlu0.b32.start [1/16] %v20, 128
  %85 = vxpose.xlu0.b32.cont [2/16] %v21, 128
  %86 = vxpose.xlu0.b32.cont [3/16] %v22, 128
  %87 = vxpose.xlu0.b32.cont [4/16] %v23, 128
  %88 = vxpose.xlu0.b32.cont [5/16] %v24, 128
  %89 = vxpose.xlu0.b32.cont [6/16] %v25, 128
  %90 = vxpose.xlu0.b32.cont [7/16] %v26, 128
  %91 = vxpose.xlu0.b32.cont [8/16] %v27, 128
  %92 = vxpose.xlu0.b32.cont [9/16] %v28, 128
  %93 = vxpose.xlu0.b32.cont [10/16] %v29, 128
  %94 = vxpose.xlu0.b32.cont [11/16] %v30, 128
  %95 = vxpose.xlu0.b32.cont [12/16] %v31, 128
  %96 = vxpose.xlu0.b32.cont [13/16] %v32, 128
  %97 = vxpose.xlu0.b32.cont [14/16] %v33, 128
  %98 = vxpose.xlu0.b32.cont [15/16] %v34, 128
  %99 = vxpose.xlu0.b32.end [16/16] %v35, 128
  %v100 = vpop.trf.xlu0
  %v101 = vpop.trf.xlu0
  %v102 = vpop.trf.xlu0
  %v103 = vpop.trf.xlu0
  %v104 = vpop.trf.xlu0
  %v105 = vpop.trf.xlu0
  %v106 = vpop.trf.xlu0
  %v107 = vpop.trf.xlu0
  %v108 = vpop.trf.xlu0
  %v109 = vpop.trf.xlu0
  %v110 = vpop.trf.xlu0
  %v111 = vpop.trf.xlu0
  %v112 = vpop.trf.xlu0
  %v113 = vpop.trf.xlu0
  %v114 = vpop.trf.xlu0
  %v115 = vpop.trf.xlu0
  %116 = vxpose.xlu0.b32.start [1/16] %v36, 128
  %117 = vxpose.xlu0.b32.cont [2/16] %v37, 128
  %118 = vxpose.xlu0.b32.cont [3/16] %v38, 128
  %119 = vxpose.xlu0.b32.cont [4/16] %v39, 128
  %120 = vxpose.xlu0.b32.cont [5/16] %v40, 128
  %121 = vxpose.xlu0.b32.cont [6/16] %v41, 128
  %122 = vxpose.xlu0.b32.cont [7/16] %v42, 128
  %123 = vxpose.xlu0.b32.cont [8/16] %v43, 128
  %124 = vxpose.xlu0.b32.cont [9/16] %v44, 128
  %125 = vxpose.xlu0.b32.cont [10/16] %v45, 128
  %126 = vxpose.xlu0.b32.cont [11/16] %v46, 128
  %127 = vxpose.xlu0.b32.cont [12/16] %v47, 128
  %128 = vxpose.xlu0.b32.cont [13/16] %v48, 128
  %129 = vxpose.xlu0.b32.cont [14/16] %v49, 128
  %130 = vxpose.xlu0.b32.cont [15/16] %v50, 128
  %131 = vxpose.xlu0.b32.end [16/16] %v51, 128
  %v132 = vpop.trf.xlu0
  %v133 = vpop.trf.xlu0
  %v134 = vpop.trf.xlu0
  %v135 = vpop.trf.xlu0
  %v136 = vpop.trf.xlu0
  %v137 = vpop.trf.xlu0
  %v138 = vpop.trf.xlu0
  %v139 = vpop.trf.xlu0
  %v140 = vpop.trf.xlu0
  %v141 = vpop.trf.xlu0
  %v142 = vpop.trf.xlu0
  %v143 = vpop.trf.xlu0
  %v144 = vpop.trf.xlu0
  %v145 = vpop.trf.xlu0
  %v146 = vpop.trf.xlu0
  %v147 = vpop.trf.xlu0
  %148 = vst [vmem:[%s5] sm:$0xf] %v100
  %149 = vst [vmem:[%s5 + $0x8] sm:$0xf] %v132
  %150 = vxpose.xlu0.b32.start [1/16] %v52, 128
  %151 = vxpose.xlu0.b32.cont [2/16] %v53, 128
  %152 = vxpose.xlu0.b32.cont [3/16] %v54, 128
  %153 = vxpose.xlu0.b32.cont [4/16] %v55, 128
  %154 = vxpose.xlu0.b32.cont [5/16] %v56, 128
  %155 = vxpose.xlu0.b32.cont [6/16] %v57, 128
  %156 = vxpose.xlu0.b32.cont [7/16] %v58, 128
  %157 = vxpose.xlu0.b32.cont [8/16] %v59, 128
  %158 = vxpose.xlu0.b32.cont [9/16] %v60, 128
  %159 = vxpose.xlu0.b32.cont [10/16] %v61, 128
  %160 = vxpose.xlu0.b32.cont [11/16] %v62, 128
  %161 = vxpose.xlu0.b32.cont [12/16] %v63, 128
  %162 = vxpose.xlu0.b32.cont [13/16] %v64, 128
  %163 = vxpose.xlu0.b32.cont [14/16] %v65, 128
  %164 = vxpose.xlu0.b32.cont [15/16] %v66, 128
  %165 = vxpose.xlu0.b32.end [16/16] %v67, 128
  %v166 = vpop.trf.xlu0
  %v167 = vpop.trf.xlu0
  %v168 = vpop.trf.xlu0
  %v169 = vpop.trf.xlu0
  %v170 = vpop.trf.xlu0
  %v171 = vpop.trf.xlu0
  %v172 = vpop.trf.xlu0
  %v173 = vpop.trf.xlu0
  %v174 = vpop.trf.xlu0
  %v175 = vpop.trf.xlu0
  %v176 = vpop.trf.xlu0
  %v177 = vpop.trf.xlu0
  %v178 = vpop.trf.xlu0
  %v179 = vpop.trf.xlu0
  %v180 = vpop.trf.xlu0
  %v181 = vpop.trf.xlu0
  %182 = vxpose.xlu0.b32.start [1/16] %v68, 128
  %183 = vxpose.xlu0.b32.cont [2/16] %v69, 128
  %184 = vxpose.xlu0.b32.cont [3/16] %v70, 128
  %185 = vxpose.xlu0.b32.cont [4/16] %v71, 128
  %186 = vxpose.xlu0.b32.cont [5/16] %v72, 128
  %187 = vxpose.xlu0.b32.cont [6/16] %v73, 128
  %188 = vxpose.xlu0.b32.cont [7/16] %v74, 128
  %189 = vxpose.xlu0.b32.cont [8/16] %v75, 128
  %190 = vxpose.xlu0.b32.cont [9/16] %v76, 128
  %191 = vxpose.xlu0.b32.cont [10/16] %v77, 128
  %192 = vxpose.xlu0.b32.cont [11/16] %v78, 128
  %193 = vxpose.xlu0.b32.cont [12/16] %v79, 128
  %194 = vxpose.xlu0.b32.cont [13/16] %v80, 128
  %195 = vxpose.xlu0.b32.cont [14/16] %v81, 128
  %196 = vxpose.xlu0.b32.cont [15/16] %v82, 128
  %197 = vxpose.xlu0.b32.end [16/16] %v83, 128
  %v198 = vpop.trf.xlu0
  %v199 = vpop.trf.xlu0
  %v200 = vpop.trf.xlu0
  %v201 = vpop.trf.xlu0
  %v202 = vpop.trf.xlu0
  %v203 = vpop.trf.xlu0
  %v204 = vpop.trf.xlu0
  %v205 = vpop.trf.xlu0
  %v206 = vpop.trf.xlu0
  %v207 = vpop.trf.xlu0
  %v208 = vpop.trf.xlu0
  %v209 = vpop.trf.xlu0
  %v210 = vpop.trf.xlu0
  %v211 = vpop.trf.xlu0
  %v212 = vpop.trf.xlu0
  %v213 = vpop.trf.xlu0
  %s214 = scalar_lea.vmem %s5, 16
  %215 = vst [vmem:[%s214] sm:$0xf] %v166
  %216 = vst [vmem:[%s214 + $0x8] sm:$0xf] %v198
  %vm217 = vcmask 31744
  %218 = vst.msk [vmem:[#allocation2] sm:$0xff] %vm217, 0.0
  %219 = vst.msk [vmem:[#allocation2 + $0x8] sm:$0xff] %vm217, 0.0
  %vm220 = vcmask 25600
  %221 = vst.msk [vmem:[#allocation2 + $0x10] sm:$0x3] %vm220, 0.0
  %222 = vst.msk [vmem:[#allocation2 + $0x18] sm:$0xff] %vm217, 0.0
  %223 = vst.msk [vmem:[#allocation2 + $0x20] sm:$0xff] %vm217, 0.0
  %224 = vst.msk [vmem:[#allocation2 + $0x28] sm:$0x3] %vm220, 0.0
  %225 = vst.msk [vmem:[#allocation2 + $0x30] sm:$0xff] %vm217, 0.0
  %226 = vst.msk [vmem:[#allocation2 + $0x38] sm:$0xff] %vm217, 0.0
  %227 = vst.msk [vmem:[#allocation2 + $0x40] sm:$0x3] %vm220, 0.0
  %228 = vst.msk [vmem:[#allocation2 + $0x48] sm:$0xff] %vm217, 0.0
  %229 = vst.msk [vmem:[#allocation2 + $0x50] sm:$0xff] %vm217, 0.0
  %230 = vst.msk [vmem:[#allocation2 + $0x58] sm:$0x3] %vm220, 0.0
  %231 = vst.msk [vmem:[#allocation2 + $0x60] sm:$0xff] %vm217, 0.0
  %232 = vst.msk [vmem:[#allocation2 + $0x68] sm:$0xff] %vm217, 0.0
  %233 = vst.msk [vmem:[#allocation2 + $0x70] sm:$0x3] %vm220, 0.0
  %234 = vst.msk [vmem:[#allocation2 + $0x78] sm:$0xff] %vm217, 0.0
  %235 = vst.msk [vmem:[#allocation2 + $0x80] sm:$0xff] %vm217, 0.0
  %236 = vst.msk [vmem:[#allocation2 + $0x88] sm:$0x3] %vm220, 0.0
  %237 = vst.msk [vmem:[#allocation2 + $0x90] sm:$0xff] %vm217, 0.0
  %238 = vst.msk [vmem:[#allocation2 + $0x98] sm:$0xff] %vm217, 0.0
  %239 = vst.msk [vmem:[#allocation2 + $0xa0] sm:$0x3] %vm220, 0.0
  %240 = vst.msk [vmem:[#allocation2 + $0xa8] sm:$0xff] %vm217, 0.0
  %241 = vst.msk [vmem:[#allocation2 + $0xb0] sm:$0xff] %vm217, 0.0
  %242 = vst.msk [vmem:[#allocation2 + $0xb8] sm:$0x3] %vm220, 0.0
  %243 = vst.msk [vmem:[#allocation2 + $0xc0] sm:$0xff] %vm217, 0.0
  %244 = vst.msk [vmem:[#allocation2 + $0xc8] sm:$0xff] %vm217, 0.0
  %245 = vst.msk [vmem:[#allocation2 + $0xd0] sm:$0x3] %vm220, 0.0
  %246 = vst.msk [vmem:[#allocation2 + $0xd8] sm:$0xff] %vm217, 0.0
  %247 = vst.msk [vmem:[#allocation2 + $0xe0] sm:$0xff] %vm217, 0.0
  %248 = vst.msk [vmem:[#allocation2 + $0xe8] sm:$0x3] %vm220, 0.0
  %249 = vst.msk [vmem:[#allocation2 + $0xf0] sm:$0xff] %vm217, 0.0
  %250 = vst.msk [vmem:[#allocation2 + $0xf8] sm:$0xff] %vm217, 0.0
  %251 = vst.msk [vmem:[#allocation2 + $0x100] sm:$0x3] %vm220, 0.0
  %252 = vst.msk [vmem:[#allocation2 + $0x108] sm:$0xff] %vm217, 0.0
  %253 = vst.msk [vmem:[#allocation2 + $0x110] sm:$0xff] %vm217, 0.0
  %254 = vst.msk [vmem:[#allocation2 + $0x118] sm:$0x3] %vm220, 0.0
  %255 = vst.msk [vmem:[#allocation2 + $0x120] sm:$0xff] %vm217, 0.0
  %256 = vst.msk [vmem:[#allocation2 + $0x128] sm:$0xff] %vm217, 0.0
  %257 = vst.msk [vmem:[#allocation2 + $0x130] sm:$0x3] %vm220, 0.0
  %258 = vst.msk [vmem:[#allocation2 + $0x138] sm:$0xff] %vm217, 0.0
  %259 = vst.msk [vmem:[#allocation2 + $0x140] sm:$0xff] %vm217, 0.0
  %260 = vst.msk [vmem:[#allocation2 + $0x148] sm:$0x3] %vm220, 0.0
  %261 = vst.msk [vmem:[#allocation2 + $0x150] sm:$0xff] %vm217, 0.0
  %262 = vst.msk [vmem:[#allocation2 + $0x158] sm:$0xff] %vm217, 0.0
  %263 = vst.msk [vmem:[#allocation2 + $0x160] sm:$0x3] %vm220, 0.0
  %264 = vst.msk [vmem:[#allocation2 + $0x168] sm:$0xff] %vm217, 0.0
  %265 = vst.msk [vmem:[#allocation2 + $0x170] sm:$0xff] %vm217, 0.0
  %266 = vst.msk [vmem:[#allocation2 + $0x178] sm:$0x3] %vm220, 0.0
  %267 = vst.msk [vmem:[#allocation2 + $0x180] sm:$0xff] %vm217, 0.0
  %268 = vst.msk [vmem:[#allocation2 + $0x188] sm:$0xff] %vm217, 0.0
  %269 = vst.msk [vmem:[#allocation2 + $0x190] sm:$0x3] %vm220, 0.0
  %270 = vst.msk [vmem:[#allocation2 + $0x198] sm:$0xff] %vm217, 0.0
  %271 = vst.msk [vmem:[#allocation2 + $0x1a0] sm:$0xff] %vm217, 0.0
  %272 = vst.msk [vmem:[#allocation2 + $0x1a8] sm:$0x3] %vm220, 0.0
  %273 = vst.msk [vmem:[#allocation2 + $0x1b0] sm:$0xff] %vm217, 0.0
  %274 = vst.msk [vmem:[#allocation2 + $0x1b8] sm:$0xff] %vm217, 0.0
  %275 = vst.msk [vmem:[#allocation2 + $0x1c0] sm:$0x3] %vm220, 0.0
  %276 = vst.msk [vmem:[#allocation2 + $0x1c8] sm:$0xff] %vm217, 0.0
  %277 = vst.msk [vmem:[#allocation2 + $0x1d0] sm:$0xff] %vm217, 0.0
  %278 = vst.msk [vmem:[#allocation2 + $0x1d8] sm:$0x3] %vm220, 0.0
  %279 = vst.msk [vmem:[#allocation2 + $0x1e0] sm:$0xff] %vm217, 0.0
  %280 = vst.msk [vmem:[#allocation2 + $0x1e8] sm:$0xff] %vm217, 0.0
  %281 = vst.msk [vmem:[#allocation2 + $0x1f0] sm:$0x3] %vm220, 0.0
  %282 = vst.msk [vmem:[#allocation2 + $0x1f8] sm:$0xff] %vm217, 0.0
  %283 = vst.msk [vmem:[#allocation2 + $0x200] sm:$0xff] %vm217, 0.0
  %284 = vst.msk [vmem:[#allocation2 + $0x208] sm:$0x3] %vm220, 0.0
  %285 = vst.msk [vmem:[#allocation2 + $0x210] sm:$0xff] %vm217, 0.0
  %286 = vst.msk [vmem:[#allocation2 + $0x218] sm:$0xff] %vm217, 0.0
  %287 = vst.msk [vmem:[#allocation2 + $0x220] sm:$0x3] %vm220, 0.0
  %288 = vst.msk [vmem:[#allocation2 + $0x228] sm:$0xff] %vm217, 0.0
  %289 = vst.msk [vmem:[#allocation2 + $0x230] sm:$0xff] %vm217, 0.0
  %290 = vst.msk [vmem:[#allocation2 + $0x238] sm:$0x3] %vm220, 0.0
  %291 = vst.msk [vmem:[#allocation2 + $0x240] sm:$0xff] %vm217, 0.0
  %292 = vst.msk [vmem:[#allocation2 + $0x248] sm:$0xff] %vm217, 0.0
  %293 = vst.msk [vmem:[#allocation2 + $0x250] sm:$0x3] %vm220, 0.0
  %294 = vst.msk [vmem:[#allocation2 + $0x258] sm:$0xff] %vm217, 0.0
  %295 = vst.msk [vmem:[#allocation2 + $0x260] sm:$0xff] %vm217, 0.0
  %296 = vst.msk [vmem:[#allocation2 + $0x268] sm:$0x3] %vm220, 0.0
  %297 = vst.msk [vmem:[#allocation2 + $0x270] sm:$0xff] %vm217, 0.0
  %298 = vst.msk [vmem:[#allocation2 + $0x278] sm:$0xff] %vm217, 0.0
  %299 = vst.msk [vmem:[#allocation2 + $0x280] sm:$0x3] %vm220, 0.0
  %300 = vst.msk [vmem:[#allocation2 + $0x288] sm:$0xff] %vm217, 0.0
  %301 = vst.msk [vmem:[#allocation2 + $0x290] sm:$0xff] %vm217, 0.0
  %302 = vst.msk [vmem:[#allocation2 + $0x298] sm:$0x3] %vm220, 0.0
  %303 = vst.msk [vmem:[#allocation2 + $0x2a0] sm:$0xff] %vm217, 0.0
  %304 = vst.msk [vmem:[#allocation2 + $0x2a8] sm:$0xff] %vm217, 0.0
  %305 = vst.msk [vmem:[#allocation2 + $0x2b0] sm:$0x3] %vm220, 0.0
  %306 = vst.msk [vmem:[#allocation2 + $0x2b8] sm:$0xff] %vm217, 0.0
  %307 = vst.msk [vmem:[#allocation2 + $0x2c0] sm:$0xff] %vm217, 0.0
  %308 = vst.msk [vmem:[#allocation2 + $0x2c8] sm:$0x3] %vm220, 0.0
  %309 = vst.msk [vmem:[#allocation2 + $0x2d0] sm:$0xff] %vm217, 0.0
  %310 = vst.msk [vmem:[#allocation2 + $0x2d8] sm:$0xff] %vm217, 0.0
  %311 = vst.msk [vmem:[#allocation2 + $0x2e0] sm:$0x3] %vm220, 0.0
  %312 = vst.msk [vmem:[#allocation2 + $0x2e8] sm:$0xff] %vm217, 0.0
  %313 = vst.msk [vmem:[#allocation2 + $0x2f0] sm:$0xff] %vm217, 0.0
  %314 = vst.msk [vmem:[#allocation2 + $0x2f8] sm:$0x3] %vm220, 0.0
  %315 = vst.msk [vmem:[#allocation2 + $0x300] sm:$0xff] %vm217, 0.0
  %316 = vst.msk [vmem:[#allocation2 + $0x308] sm:$0xff] %vm217, 0.0
  %317 = vst.msk [vmem:[#allocation2 + $0x310] sm:$0x3] %vm220, 0.0
  %318 = vst.msk [vmem:[#allocation2 + $0x318] sm:$0xff] %vm217, 0.0
  %319 = vst.msk [vmem:[#allocation2 + $0x320] sm:$0xff] %vm217, 0.0
  %320 = vst.msk [vmem:[#allocation2 + $0x328] sm:$0x3] %vm220, 0.0
  %321 = vst.msk [vmem:[#allocation2 + $0x330] sm:$0xff] %vm217, 0.0
  %322 = vst.msk [vmem:[#allocation2 + $0x338] sm:$0xff] %vm217, 0.0
  %323 = vst.msk [vmem:[#allocation2 + $0x340] sm:$0x3] %vm220, 0.0
  %324 = vst.msk [vmem:[#allocation2 + $0x348] sm:$0xff] %vm217, 0.0
  %325 = vst.msk [vmem:[#allocation2 + $0x350] sm:$0xff] %vm217, 0.0
  %326 = vst.msk [vmem:[#allocation2 + $0x358] sm:$0x3] %vm220, 0.0
  %v327 = vld [vmem:[%s1] sm:$0x1]
  %v328 = vld [vmem:[%s2] sm:$0x1]
  %v329 = vld [vmem:[%s3] sm:$0xff]
  %v330 = vld [vmem:[%s3 + $0x8] sm:$0xff]
  %v331 = vld [vmem:[%s3 + $0x10] sm:$0xff]
  %v332 = vld [vmem:[%s3 + $0x18] sm:$0xff]
  %v333 = vld [vmem:[%s3 + $0x20] sm:$0xf]
  %v334 = vld [vmem:[%s4] sm:$0x1]
  %v335 = vsel %vm217, %v20, 0.0
  %v336 = vsel %vm217, %v21, 0.0
  %v337 = vadd.f32 %v335, %v336
  %v338 = vsel %vm217, %v22, 0.0
  %v339 = vadd.f32 %v337, %v338
  %v340 = vsel %vm217, %v23, 0.0
  %v341 = vadd.f32 %v339, %v340
  %v342 = vsel %vm217, %v24, 0.0
  %v343 = vadd.f32 %v341, %v342
  %v344 = vsel %vm217, %v25, 0.0
  %v345 = vadd.f32 %v343, %v344
  %v346 = vsel %vm217, %v26, 0.0
  %v347 = vadd.f32 %v345, %v346
  %v348 = vsel %vm217, %v27, 0.0
  %v349 = vadd.f32 %v347, %v348
  %v350 = vsel %vm217, %v28, 0.0
  %v351 = vadd.f32 %v349, %v350
  %v352 = vsel %vm217, %v29, 0.0
  %v353 = vadd.f32 %v351, %v352
  %v354 = vsel %vm217, %v30, 0.0
  %v355 = vadd.f32 %v353, %v354
  %v356 = vsel %vm217, %v31, 0.0
  %v357 = vadd.f32 %v355, %v356
  %v358 = vsel %vm217, %v32, 0.0
  %v359 = vadd.f32 %v357, %v358
  %v360 = vsel %vm217, %v33, 0.0
  %v361 = vadd.f32 %v359, %v360
  %v362 = vsel %vm217, %v34, 0.0
  %v363 = vadd.f32 %v361, %v362
  %v364 = vsel %vm217, %v35, 0.0
  %v365 = vadd.f32 %v363, %v364
  %v366 = vsel %vm217, %v36, 0.0
  %v367 = vadd.f32 %v365, %v366
  %v368 = vsel %vm217, %v37, 0.0
  %v369 = vadd.f32 %v367, %v368
  %v370 = vsel %vm217, %v38, 0.0
  %v371 = vadd.f32 %v369, %v370
  %v372 = vsel %vm217, %v39, 0.0
  %v373 = vadd.f32 %v371, %v372
  %v374 = vsel %vm217, %v40, 0.0
  %v375 = vadd.f32 %v373, %v374
  %v376 = vsel %vm217, %v41, 0.0
  %v377 = vadd.f32 %v375, %v376
  %v378 = vsel %vm217, %v42, 0.0
  %v379 = vadd.f32 %v377, %v378
  %v380 = vsel %vm217, %v43, 0.0
  %v381 = vadd.f32 %v379, %v380
  %v382 = vsel %vm217, %v44, 0.0
  %v383 = vadd.f32 %v381, %v382
  %v384 = vsel %vm217, %v45, 0.0
  %v385 = vadd.f32 %v383, %v384
  %v386 = vsel %vm217, %v46, 0.0
  %v387 = vadd.f32 %v385, %v386
  %v388 = vsel %vm217, %v47, 0.0
  %v389 = vadd.f32 %v387, %v388
  %v390 = vsel %vm217, %v48, 0.0
  %v391 = vadd.f32 %v389, %v390
  %v392 = vsel %vm217, %v49, 0.0
  %v393 = vadd.f32 %v391, %v392
  %v394 = vsel %vm217, %v50, 0.0
  %v395 = vadd.f32 %v393, %v394
  %v396 = vsel %vm217, %v51, 0.0
  %v397 = vadd.f32 %v395, %v396
  %v398 = vsel %vm217, %v52, 0.0
  %v399 = vadd.f32 %v397, %v398
  %v400 = vsel %vm217, %v53, 0.0
  %v401 = vadd.f32 %v399, %v400
  %v402 = vsel %vm217, %v54, 0.0
  %v403 = vadd.f32 %v401, %v402
  %v404 = vsel %vm217, %v55, 0.0
  %v405 = vadd.f32 %v403, %v404
  %v406 = vsel %vm217, %v56, 0.0
  %v407 = vadd.f32 %v405, %v406
  %v408 = vsel %vm217, %v57, 0.0
  %v409 = vadd.f32 %v407, %v408
  %v410 = vsel %vm217, %v58, 0.0
  %v411 = vadd.f32 %v409, %v410
  %v412 = vsel %vm217, %v59, 0.0
  %v413 = vadd.f32 %v411, %v412
  %v414 = vsel %vm217, %v60, 0.0
  %v415 = vadd.f32 %v413, %v414
  %v416 = vsel %vm217, %v61, 0.0
  %v417 = vadd.f32 %v415, %v416
  %v418 = vsel %vm217, %v62, 0.0
  %v419 = vadd.f32 %v417, %v418
  %v420 = vsel %vm217, %v63, 0.0
  %v421 = vadd.f32 %v419, %v420
  %v422 = vsel %vm217, %v64, 0.0
  %v423 = vadd.f32 %v421, %v422
  %v424 = vsel %vm217, %v65, 0.0
  %v425 = vadd.f32 %v423, %v424
  %v426 = vsel %vm217, %v66, 0.0
  %v427 = vadd.f32 %v425, %v426
  %v428 = vsel %vm217, %v67, 0.0
  %v429 = vadd.f32 %v427, %v428
  %v430 = vsel %vm217, %v68, 0.0
  %v431 = vadd.f32 %v429, %v430
  %v432 = vsel %vm217, %v69, 0.0
  %v433 = vadd.f32 %v431, %v432
  %v434 = vsel %vm217, %v70, 0.0
  %v435 = vadd.f32 %v433, %v434
  %v436 = vsel %vm217, %v71, 0.0
  %v437 = vadd.f32 %v435, %v436
  %v438 = vsel %vm217, %v72, 0.0
  %v439 = vadd.f32 %v437, %v438
  %v440 = vsel %vm217, %v73, 0.0
  %v441 = vadd.f32 %v439, %v440
  %v442 = vsel %vm217, %v74, 0.0
  %v443 = vadd.f32 %v441, %v442
  %v444 = vsel %vm217, %v75, 0.0
  %v445 = vadd.f32 %v443, %v444
  %v446 = vsel %vm217, %v76, 0.0
  %v447 = vadd.f32 %v445, %v446
  %v448 = vsel %vm217, %v77, 0.0
  %v449 = vadd.f32 %v447, %v448
  %v450 = vsel %vm217, %v78, 0.0
  %v451 = vadd.f32 %v449, %v450
  %v452 = vsel %vm217, %v79, 0.0
  %v453 = vadd.f32 %v451, %v452
  %v454 = vsel %vm217, %v80, 0.0
  %v455 = vadd.f32 %v453, %v454
  %v456 = vsel %vm217, %v81, 0.0
  %v457 = vadd.f32 %v455, %v456
  %v458 = vsel %vm217, %v82, 0.0
  %v459 = vadd.f32 %v457, %v458
  %v460 = vsel %vm217, %v83, 0.0
  %v461 = vadd.f32 %v459, %v460
  %v462 = vrot.slane %v461, 4
  %v463 = vadd.f32 %v461, %v462
  %v464 = vrot.slane %v463, 2
  %v465 = vadd.f32 %v463, %v464
  %v466 = vrot.slane %v465, 1
  %v467 = vadd.f32 %v465, %v466
  %v468 = vrcp.pop 512.0
  %v469 = vmul.f32 %v467, %v468
  %v470 = vsub.f32 %v20, %v469
  %v471 = vsub.f32 %v21, %v469
  %v472 = vsub.f32 %v22, %v469
  %v473 = vsub.f32 %v23, %v469
  %v474 = vsub.f32 %v24, %v469
  %v475 = vsub.f32 %v25, %v469
  %v476 = vsub.f32 %v26, %v469
  %v477 = vsub.f32 %v27, %v469
  %v478 = vsub.f32 %v28, %v469
  %v479 = vsub.f32 %v29, %v469
  %v480 = vsub.f32 %v30, %v469
  %v481 = vsub.f32 %v31, %v469
  %v482 = vsub.f32 %v32, %v469
  %v483 = vsub.f32 %v33, %v469
  %v484 = vsub.f32 %v34, %v469
  %v485 = vsub.f32 %v35, %v469
  %v486 = vsub.f32 %v36, %v469
  %v487 = vsub.f32 %v37, %v469
  %v488 = vsub.f32 %v38, %v469
  %v489 = vsub.f32 %v39, %v469
  %v490 = vsub.f32 %v40, %v469
  %v491 = vsub.f32 %v41, %v469
  %v492 = vsub.f32 %v42, %v469
  %v493 = vsub.f32 %v43, %v469
  %v494 = vsub.f32 %v44, %v469
  %v495 = vsub.f32 %v45, %v469
  %v496 = vsub.f32 %v46, %v469
  %v497 = vsub.f32 %v47, %v469
  %v498 = vsub.f32 %v48, %v469
  %v499 = vsub.f32 %v49, %v469
  %v500 = vsub.f32 %v50, %v469
  %v501 = vsub.f32 %v51, %v469
  %v502 = vsub.f32 %v52, %v469
  %v503 = vsub.f32 %v53, %v469
  %v504 = vsub.f32 %v54, %v469
  %v505 = vsub.f32 %v55, %v469
  %v506 = vsub.f32 %v56, %v469
  %v507 = vsub.f32 %v57, %v469
  %v508 = vsub.f32 %v58, %v469
  %v509 = vsub.f32 %v59, %v469
  %v510 = vsub.f32 %v60, %v469
  %v511 = vsub.f32 %v61, %v469
  %v512 = vsub.f32 %v62, %v469
  %v513 = vsub.f32 %v63, %v469
  %v514 = vsub.f32 %v64, %v469
  %v515 = vsub.f32 %v65, %v469
  %v516 = vsub.f32 %v66, %v469
  %v517 = vsub.f32 %v67, %v469
  %v518 = vsub.f32 %v68, %v469
  %v519 = vsub.f32 %v69, %v469
  %v520 = vsub.f32 %v70, %v469
  %v521 = vsub.f32 %v71, %v469
  %v522 = vsub.f32 %v72, %v469
  %v523 = vsub.f32 %v73, %v469
  %v524 = vsub.f32 %v74, %v469
  %v525 = vsub.f32 %v75, %v469
  %v526 = vsub.f32 %v76, %v469
  %v527 = vsub.f32 %v77, %v469
  %v528 = vsub.f32 %v78, %v469
  %v529 = vsub.f32 %v79, %v469
  %v530 = vsub.f32 %v80, %v469
  %v531 = vsub.f32 %v81, %v469
  %v532 = vsub.f32 %v82, %v469
  %v533 = vsub.f32 %v83, %v469
  %v534 = vmul.f32 %v470, %v470
  %v535 = vmul.f32 %v471, %v471
  %v536 = vmul.f32 %v472, %v472
  %v537 = vmul.f32 %v473, %v473
  %v538 = vmul.f32 %v474, %v474
  %v539 = vmul.f32 %v475, %v475
  %v540 = vmul.f32 %v476, %v476
  %v541 = vmul.f32 %v477, %v477
  %v542 = vmul.f32 %v478, %v478
  %v543 = vmul.f32 %v479, %v479
  %v544 = vmul.f32 %v480, %v480
  %v545 = vmul.f32 %v481, %v481
  %v546 = vmul.f32 %v482, %v482
  %v547 = vmul.f32 %v483, %v483
  %v548 = vmul.f32 %v484, %v484
  %v549 = vmul.f32 %v485, %v485
  %v550 = vmul.f32 %v486, %v486
  %v551 = vmul.f32 %v487, %v487
  %v552 = vmul.f32 %v488, %v488
  %v553 = vmul.f32 %v489, %v489
  %v554 = vmul.f32 %v490, %v490
  %v555 = vmul.f32 %v491, %v491
  %v556 = vmul.f32 %v492, %v492
  %v557 = vmul.f32 %v493, %v493
  %v558 = vmul.f32 %v494, %v494
  %v559 = vmul.f32 %v495, %v495
  %v560 = vmul.f32 %v496, %v496
  %v561 = vmul.f32 %v497, %v497
  %v562 = vmul.f32 %v498, %v498
  %v563 = vmul.f32 %v499, %v499
  %v564 = vmul.f32 %v500, %v500
  %v565 = vmul.f32 %v501, %v501
  %v566 = vmul.f32 %v502, %v502
  %v567 = vmul.f32 %v503, %v503
  %v568 = vmul.f32 %v504, %v504
  %v569 = vmul.f32 %v505, %v505
  %v570 = vmul.f32 %v506, %v506
  %v571 = vmul.f32 %v507, %v507
  %v572 = vmul.f32 %v508, %v508
  %v573 = vmul.f32 %v509, %v509
  %v574 = vmul.f32 %v510, %v510
  %v575 = vmul.f32 %v511, %v511
  %v576 = vmul.f32 %v512, %v512
  %v577 = vmul.f32 %v513, %v513
  %v578 = vmul.f32 %v514, %v514
  %v579 = vmul.f32 %v515, %v515
  %v580 = vmul.f32 %v516, %v516
  %v581 = vmul.f32 %v517, %v517
  %v582 = vmul.f32 %v518, %v518
  %v583 = vmul.f32 %v519, %v519
  %v584 = vmul.f32 %v520, %v520
  %v585 = vmul.f32 %v521, %v521
  %v586 = vmul.f32 %v522, %v522
  %v587 = vmul.f32 %v523, %v523
  %v588 = vmul.f32 %v524, %v524
  %v589 = vmul.f32 %v525, %v525
  %v590 = vmul.f32 %v526, %v526
  %v591 = vmul.f32 %v527, %v527
  %v592 = vmul.f32 %v528, %v528
  %v593 = vmul.f32 %v529, %v529
  %v594 = vmul.f32 %v530, %v530
  %v595 = vmul.f32 %v531, %v531
  %v596 = vmul.f32 %v532, %v532
  %v597 = vmul.f32 %v533, %v533
  %v598 = vsel %vm217, %v534, 0.0
  %v599 = vsel %vm217, %v535, 0.0
  %v600 = vadd.f32 %v598, %v599
  %v601 = vsel %vm217, %v536, 0.0
  %v602 = vadd.f32 %v600, %v601
  %v603 = vsel %vm217, %v537, 0.0
  %v604 = vadd.f32 %v602, %v603
  %v605 = vsel %vm217, %v538, 0.0
  %v606 = vadd.f32 %v604, %v605
  %v607 = vsel %vm217, %v539, 0.0
  %v608 = vadd.f32 %v606, %v607
  %v609 = vsel %vm217, %v540, 0.0
  %v610 = vadd.f32 %v608, %v609
  %v611 = vsel %vm217, %v541, 0.0
  %v612 = vadd.f32 %v610, %v611
  %v613 = vsel %vm217, %v542, 0.0
  %v614 = vadd.f32 %v612, %v613
  %v615 = vsel %vm217, %v543, 0.0
  %v616 = vadd.f32 %v614, %v615
  %v617 = vsel %vm217, %v544, 0.0
  %v618 = vadd.f32 %v616, %v617
  %v619 = vsel %vm217, %v545, 0.0
  %v620 = vadd.f32 %v618, %v619
  %v621 = vsel %vm217, %v546, 0.0
  %v622 = vadd.f32 %v620, %v621
  %v623 = vsel %vm217, %v547, 0.0
  %v624 = vadd.f32 %v622, %v623
  %v625 = vsel %vm217, %v548, 0.0
  %v626 = vadd.f32 %v624, %v625
  %v627 = vsel %vm217, %v549, 0.0
  %v628 = vadd.f32 %v626, %v627
  %v629 = vsel %vm217, %v550, 0.0
  %v630 = vadd.f32 %v628, %v629
  %v631 = vsel %vm217, %v551, 0.0
  %v632 = vadd.f32 %v630, %v631
  %v633 = vsel %vm217, %v552, 0.0
  %v634 = vadd.f32 %v632, %v633
  %v635 = vsel %vm217, %v553, 0.0
  %v636 = vadd.f32 %v634, %v635
  %v637 = vsel %vm217, %v554, 0.0
  %v638 = vadd.f32 %v636, %v637
  %v639 = vsel %vm217, %v555, 0.0
  %v640 = vadd.f32 %v638, %v639
  %v641 = vsel %vm217, %v556, 0.0
  %v642 = vadd.f32 %v640, %v641
  %v643 = vsel %vm217, %v557, 0.0
  %v644 = vadd.f32 %v642, %v643
  %v645 = vsel %vm217, %v558, 0.0
  %v646 = vadd.f32 %v644, %v645
  %v647 = vsel %vm217, %v559, 0.0
  %v648 = vadd.f32 %v646, %v647
  %v649 = vsel %vm217, %v560, 0.0
  %v650 = vadd.f32 %v648, %v649
  %v651 = vsel %vm217, %v561, 0.0
  %v652 = vadd.f32 %v650, %v651
  %v653 = vsel %vm217, %v562, 0.0
  %v654 = vadd.f32 %v652, %v653
  %v655 = vsel %vm217, %v563, 0.0
  %v656 = vadd.f32 %v654, %v655
  %v657 = vsel %vm217, %v564, 0.0
  %v658 = vadd.f32 %v656, %v657
  %v659 = vsel %vm217, %v565, 0.0
  %v660 = vadd.f32 %v658, %v659
  %v661 = vsel %vm217, %v566, 0.0
  %v662 = vadd.f32 %v660, %v661
  %v663 = vsel %vm217, %v567, 0.0
  %v664 = vadd.f32 %v662, %v663
  %v665 = vsel %vm217, %v568, 0.0
  %v666 = vadd.f32 %v664, %v665
  %v667 = vsel %vm217, %v569, 0.0
  %v668 = vadd.f32 %v666, %v667
  %v669 = vsel %vm217, %v570, 0.0
  %v670 = vadd.f32 %v668, %v669
  %v671 = vsel %vm217, %v571, 0.0
  %v672 = vadd.f32 %v670, %v671
  %v673 = vsel %vm217, %v572, 0.0
  %v674 = vadd.f32 %v672, %v673
  %v675 = vsel %vm217, %v573, 0.0
  %v676 = vadd.f32 %v674, %v675
  %v677 = vsel %vm217, %v574, 0.0
  %v678 = vadd.f32 %v676, %v677
  %v679 = vsel %vm217, %v575, 0.0
  %v680 = vadd.f32 %v678, %v679
  %v681 = vsel %vm217, %v576, 0.0
  %v682 = vadd.f32 %v680, %v681
  %v683 = vsel %vm217, %v577, 0.0
  %v684 = vadd.f32 %v682, %v683
  %v685 = vsel %vm217, %v578, 0.0
  %v686 = vadd.f32 %v684, %v685
  %v687 = vsel %vm217, %v579, 0.0
  %v688 = vadd.f32 %v686, %v687
  %v689 = vsel %vm217, %v580, 0.0
  %v690 = vadd.f32 %v688, %v689
  %v691 = vsel %vm217, %v581, 0.0
  %v692 = vadd.f32 %v690, %v691
  %v693 = vsel %vm217, %v582, 0.0
  %v694 = vadd.f32 %v692, %v693
  %v695 = vsel %vm217, %v583, 0.0
  %v696 = vadd.f32 %v694, %v695
  %v697 = vsel %vm217, %v584, 0.0
  %v698 = vadd.f32 %v696, %v697
  %v699 = vsel %vm217, %v585, 0.0
  %v700 = vadd.f32 %v698, %v699
  %v701 = vsel %vm217, %v586, 0.0
  %v702 = vadd.f32 %v700, %v701
  %v703 = vsel %vm217, %v587, 0.0
  %v704 = vadd.f32 %v702, %v703
  %v705 = vsel %vm217, %v588, 0.0
  %v706 = vadd.f32 %v704, %v705
  %v707 = vsel %vm217, %v589, 0.0
  %v708 = vadd.f32 %v706, %v707
  %v709 = vsel %vm217, %v590, 0.0
  %v710 = vadd.f32 %v708, %v709
  %v711 = vsel %vm217, %v591, 0.0
  %v712 = vadd.f32 %v710, %v711
  %v713 = vsel %vm217, %v592, 0.0
  %v714 = vadd.f32 %v712, %v713
  %v715 = vsel %vm217, %v593, 0.0
  %v716 = vadd.f32 %v714, %v715
  %v717 = vsel %vm217, %v594, 0.0
  %v718 = vadd.f32 %v716, %v717
  %v719 = vsel %vm217, %v595, 0.0
  %v720 = vadd.f32 %v718, %v719
  %v721 = vsel %vm217, %v596, 0.0
  %v722 = vadd.f32 %v720, %v721
  %v723 = vsel %vm217, %v597, 0.0
  %v724 = vadd.f32 %v722, %v723
  %v725 = vrot.slane %v724, 4
  %v726 = vadd.f32 %v724, %v725
  %v727 = vrot.slane %v726, 2
  %v728 = vadd.f32 %v726, %v727
  %v729 = vrot.slane %v728, 1
  %v730 = vadd.f32 %v728, %v729
  %v731 = vmul.f32 %v730, %v468
  %v732 = vadd.f32 %v731, 1e-05
  %v733 = vrsqrt.pop %v732
  %v734 = vmul.f32 %v327, %v733
  %v736 = vlaneseq
  %v737 = vshrl.u32 %v736, 7
  %v738 = vsub.s32 0, %v737
  %v739 = vrot.slane %v734, %v738
  %v741 = vmul.f32 %v470, %v739
  %v742 = vmul.f32 %v471, %v739
  %v743 = vmul.f32 %v472, %v739
  %v744 = vmul.f32 %v473, %v739
  %v745 = vmul.f32 %v474, %v739
  %v746 = vmul.f32 %v475, %v739
  %v747 = vmul.f32 %v476, %v739
  %v748 = vmul.f32 %v477, %v739
  %v749 = vmul.f32 %v478, %v739
  %v750 = vmul.f32 %v479, %v739
  %v751 = vmul.f32 %v480, %v739
  %v752 = vmul.f32 %v481, %v739
  %v753 = vmul.f32 %v482, %v739
  %v754 = vmul.f32 %v483, %v739
  %v755 = vmul.f32 %v484, %v739
  %v756 = vmul.f32 %v485, %v739
  %v757 = vmul.f32 %v486, %v739
  %v758 = vmul.f32 %v487, %v739
  %v759 = vmul.f32 %v488, %v739
  %v760 = vmul.f32 %v489, %v739
  %v761 = vmul.f32 %v490, %v739
  %v762 = vmul.f32 %v491, %v739
  %v763 = vmul.f32 %v492, %v739
  %v764 = vmul.f32 %v493, %v739
  %v765 = vmul.f32 %v494, %v739
  %v766 = vmul.f32 %v495, %v739
  %v767 = vmul.f32 %v496, %v739
  %v768 = vmul.f32 %v497, %v739
  %v769 = vmul.f32 %v498, %v739
  %v770 = vmul.f32 %v499, %v739
  %v771 = vmul.f32 %v500, %v739
  %v772 = vmul.f32 %v501, %v739
  %v773 = vmul.f32 %v502, %v739
  %v774 = vmul.f32 %v503, %v739
  %v775 = vmul.f32 %v504, %v739
  %v776 = vmul.f32 %v505, %v739
  %v777 = vmul.f32 %v506, %v739
  %v778 = vmul.f32 %v507, %v739
  %v779 = vmul.f32 %v508, %v739
  %v780 = vmul.f32 %v509, %v739
  %v781 = vmul.f32 %v510, %v739
  %v782 = vmul.f32 %v511, %v739
  %v783 = vmul.f32 %v512, %v739
  %v784 = vmul.f32 %v513, %v739
  %v785 = vmul.f32 %v514, %v739
  %v786 = vmul.f32 %v515, %v739
  %v787 = vmul.f32 %v516, %v739
  %v788 = vmul.f32 %v517, %v739
  %v789 = vmul.f32 %v518, %v739
  %v790 = vmul.f32 %v519, %v739
  %v791 = vmul.f32 %v520, %v739
  %v792 = vmul.f32 %v521, %v739
  %v793 = vmul.f32 %v522, %v739
  %v794 = vmul.f32 %v523, %v739
  %v795 = vmul.f32 %v524, %v739
  %v796 = vmul.f32 %v525, %v739
  %v797 = vmul.f32 %v526, %v739
  %v798 = vmul.f32 %v527, %v739
  %v799 = vmul.f32 %v528, %v739
  %v800 = vmul.f32 %v529, %v739
  %v801 = vmul.f32 %v530, %v739
  %v802 = vmul.f32 %v531, %v739
  %v803 = vmul.f32 %v532, %v739
  %v804 = vmul.f32 %v533, %v739
  %v806 = vlaneseq
  %v807 = vshrl.u32 %v806, 7
  %v808 = vsub.s32 0, %v807
  %v809 = vrot.slane %v328, %v808
  %v811 = vadd.f32 %v741, %v809
  %v812 = vadd.f32 %v742, %v809
  %v813 = vadd.f32 %v743, %v809
  %v814 = vadd.f32 %v744, %v809
  %v815 = vadd.f32 %v745, %v809
  %v816 = vadd.f32 %v746, %v809
  %v817 = vadd.f32 %v747, %v809
  %v818 = vadd.f32 %v748, %v809
  %v819 = vadd.f32 %v749, %v809
  %v820 = vadd.f32 %v750, %v809
  %v821 = vadd.f32 %v751, %v809
  %v822 = vadd.f32 %v752, %v809
  %v823 = vadd.f32 %v753, %v809
  %v824 = vadd.f32 %v754, %v809
  %v825 = vadd.f32 %v755, %v809
  %v826 = vadd.f32 %v756, %v809
  %v827 = vadd.f32 %v757, %v809
  %v828 = vadd.f32 %v758, %v809
  %v829 = vadd.f32 %v759, %v809
  %v830 = vadd.f32 %v760, %v809
  %v831 = vadd.f32 %v761, %v809
  %v832 = vadd.f32 %v762, %v809
  %v833 = vadd.f32 %v763, %v809
  %v834 = vadd.f32 %v764, %v809
  %v835 = vadd.f32 %v765, %v809
  %v836 = vadd.f32 %v766, %v809
  %v837 = vadd.f32 %v767, %v809
  %v838 = vadd.f32 %v768, %v809
  %v839 = vadd.f32 %v769, %v809
  %v840 = vadd.f32 %v770, %v809
  %v841 = vadd.f32 %v771, %v809
  %v842 = vadd.f32 %v772, %v809
  %v843 = vadd.f32 %v773, %v809
  %v844 = vadd.f32 %v774, %v809
  %v845 = vadd.f32 %v775, %v809
  %v846 = vadd.f32 %v776, %v809
  %v847 = vadd.f32 %v777, %v809
  %v848 = vadd.f32 %v778, %v809
  %v849 = vadd.f32 %v779, %v809
  %v850 = vadd.f32 %v780, %v809
  %v851 = vadd.f32 %v781, %v809
  %v852 = vadd.f32 %v782, %v809
  %v853 = vadd.f32 %v783, %v809
  %v854 = vadd.f32 %v784, %v809
  %v855 = vadd.f32 %v785, %v809
  %v856 = vadd.f32 %v786, %v809
  %v857 = vadd.f32 %v787, %v809
  %v858 = vadd.f32 %v788, %v809
  %v859 = vadd.f32 %v789, %v809
  %v860 = vadd.f32 %v790, %v809
  %v861 = vadd.f32 %v791, %v809
  %v862 = vadd.f32 %v792, %v809
  %v863 = vadd.f32 %v793, %v809
  %v864 = vadd.f32 %v794, %v809
  %v865 = vadd.f32 %v795, %v809
  %v866 = vadd.f32 %v796, %v809
  %v867 = vadd.f32 %v797, %v809
  %v868 = vadd.f32 %v798, %v809
  %v869 = vadd.f32 %v799, %v809
  %v870 = vadd.f32 %v800, %v809
  %v871 = vadd.f32 %v801, %v809
  %v872 = vadd.f32 %v802, %v809
  %v873 = vadd.f32 %v803, %v809
  %v874 = vadd.f32 %v804, %v809
  %v875 = vmax.f32 %v811, 0.0
  %v876 = vmax.f32 %v812, 0.0
  %v877 = vmax.f32 %v813, 0.0
  %v878 = vmax.f32 %v814, 0.0
  %v879 = vmax.f32 %v815, 0.0
  %v880 = vmax.f32 %v816, 0.0
  %v881 = vmax.f32 %v817, 0.0
  %v882 = vmax.f32 %v818, 0.0
  %v883 = vmax.f32 %v819, 0.0
  %v884 = vmax.f32 %v820, 0.0
  %v885 = vmax.f32 %v821, 0.0
  %v886 = vmax.f32 %v822, 0.0
  %v887 = vmax.f32 %v823, 0.0
  %v888 = vmax.f32 %v824, 0.0
  %v889 = vmax.f32 %v825, 0.0
  %v890 = vmax.f32 %v826, 0.0
  %v891 = vmax.f32 %v827, 0.0
  %v892 = vmax.f32 %v828, 0.0
  %v893 = vmax.f32 %v829, 0.0
  %v894 = vmax.f32 %v830, 0.0
  %v895 = vmax.f32 %v831, 0.0
  %v896 = vmax.f32 %v832, 0.0
  %v897 = vmax.f32 %v833, 0.0
  %v898 = vmax.f32 %v834, 0.0
  %v899 = vmax.f32 %v835, 0.0
  %v900 = vmax.f32 %v836, 0.0
  %v901 = vmax.f32 %v837, 0.0
  %v902 = vmax.f32 %v838, 0.0
  %v903 = vmax.f32 %v839, 0.0
  %v904 = vmax.f32 %v840, 0.0
  %v905 = vmax.f32 %v841, 0.0
  %v906 = vmax.f32 %v842, 0.0
  %v907 = vmax.f32 %v843, 0.0
  %v908 = vmax.f32 %v844, 0.0
  %v909 = vmax.f32 %v845, 0.0
  %v910 = vmax.f32 %v846, 0.0
  %v911 = vmax.f32 %v847, 0.0
  %v912 = vmax.f32 %v848, 0.0
  %v913 = vmax.f32 %v849, 0.0
  %v914 = vmax.f32 %v850, 0.0
  %v915 = vmax.f32 %v851, 0.0
  %v916 = vmax.f32 %v852, 0.0
  %v917 = vmax.f32 %v853, 0.0
  %v918 = vmax.f32 %v854, 0.0
  %v919 = vmax.f32 %v855, 0.0
  %v920 = vmax.f32 %v856, 0.0
  %v921 = vmax.f32 %v857, 0.0
  %v922 = vmax.f32 %v858, 0.0
  %v923 = vmax.f32 %v859, 0.0
  %v924 = vmax.f32 %v860, 0.0
  %v925 = vmax.f32 %v861, 0.0
  %v926 = vmax.f32 %v862, 0.0
  %v927 = vmax.f32 %v863, 0.0
  %v928 = vmax.f32 %v864, 0.0
  %v929 = vmax.f32 %v865, 0.0
  %v930 = vmax.f32 %v866, 0.0
  %v931 = vmax.f32 %v867, 0.0
  %v932 = vmax.f32 %v868, 0.0
  %v933 = vmax.f32 %v869, 0.0
  %v934 = vmax.f32 %v870, 0.0
  %v935 = vmax.f32 %v871, 0.0
  %v936 = vmax.f32 %v872, 0.0
  %v937 = vmax.f32 %v873, 0.0
  %v938 = vmax.f32 %v874, 0.0
  %s939 = scalar_lea.vmem [#allocation2], 24
  %940 = vst.msk [vmem:[%s939 + $0x1] sm:$0xff] %vm217, %v875
  %941 = vst.msk [vmem:[%s939 + $0x9] sm:$0xff] %vm217, %v876
  %942 = vst.msk [vmem:[%s939 + $0x19] sm:$0xff] %vm217, %v877
  %943 = vst.msk [vmem:[%s939 + $0x21] sm:$0xff] %vm217, %v878
  %944 = vst.msk [vmem:[%s939 + $0x31] sm:$0xff] %vm217, %v879
  %945 = vst.msk [vmem:[%s939 + $0x39] sm:$0xff] %vm217, %v880
  %946 = vst.msk [vmem:[%s939 + $0x49] sm:$0xff] %vm217, %v881
  %947 = vst.msk [vmem:[%s939 + $0x51] sm:$0xff] %vm217, %v882
  %948 = vst.msk [vmem:[%s939 + $0x61] sm:$0xff] %vm217, %v883
  %949 = vst.msk [vmem:[%s939 + $0x69] sm:$0xff] %vm217, %v884
  %950 = vst.msk [vmem:[%s939 + $0x79] sm:$0xff] %vm217, %v885
  %951 = vst.msk [vmem:[%s939 + $0x81] sm:$0xff] %vm217, %v886
  %952 = vst.msk [vmem:[%s939 + $0x91] sm:$0xff] %vm217, %v887
  %953 = vst.msk [vmem:[%s939 + $0x99] sm:$0xff] %vm217, %v888
  %954 = vst.msk [vmem:[%s939 + $0xa9] sm:$0xff] %vm217, %v889
  %955 = vst.msk [vmem:[%s939 + $0xb1] sm:$0xff] %vm217, %v890
  %956 = vst.msk [vmem:[%s939 + $0xc1] sm:$0xff] %vm217, %v891
  %957 = vst.msk [vmem:[%s939 + $0xc9] sm:$0xff] %vm217, %v892
  %958 = vst.msk [vmem:[%s939 + $0xd9] sm:$0xff] %vm217, %v893
  %959 = vst.msk [vmem:[%s939 + $0xe1] sm:$0xff] %vm217, %v894
  %960 = vst.msk [vmem:[%s939 + $0xf1] sm:$0xff] %vm217, %v895
  %961 = vst.msk [vmem:[%s939 + $0xf9] sm:$0xff] %vm217, %v896
  %962 = vst.msk [vmem:[%s939 + $0x109] sm:$0xff] %vm217, %v897
  %963 = vst.msk [vmem:[%s939 + $0x111] sm:$0xff] %vm217, %v898
  %964 = vst.msk [vmem:[%s939 + $0x121] sm:$0xff] %vm217, %v899
  %965 = vst.msk [vmem:[%s939 + $0x129] sm:$0xff] %vm217, %v900
  %966 = vst.msk [vmem:[%s939 + $0x139] sm:$0xff] %vm217, %v901
  %967 = vst.msk [vmem:[%s939 + $0x141] sm:$0xff] %vm217, %v902
  %968 = vst.msk [vmem:[%s939 + $0x151] sm:$0xff] %vm217, %v903
  %969 = vst.msk [vmem:[%s939 + $0x159] sm:$0xff] %vm217, %v904
  %970 = vst.msk [vmem:[%s939 + $0x169] sm:$0xff] %vm217, %v905
  %971 = vst.msk [vmem:[%s939 + $0x171] sm:$0xff] %vm217, %v906
  %972 = vst.msk [vmem:[%s939 + $0x1b1] sm:$0xff] %vm217, %v907
  %973 = vst.msk [vmem:[%s939 + $0x1b9] sm:$0xff] %vm217, %v908
  %974 = vst.msk [vmem:[%s939 + $0x1c9] sm:$0xff] %vm217, %v909
  %975 = vst.msk [vmem:[%s939 + $0x1d1] sm:$0xff] %vm217, %v910
  %976 = vst.msk [vmem:[%s939 + $0x1e1] sm:$0xff] %vm217, %v911
  %977 = vst.msk [vmem:[%s939 + $0x1e9] sm:$0xff] %vm217, %v912
  %978 = vst.msk [vmem:[%s939 + $0x1f9] sm:$0xff] %vm217, %v913
  %979 = vst.msk [vmem:[%s939 + $0x201] sm:$0xff] %vm217, %v914
  %980 = vst.msk [vmem:[%s939 + $0x211] sm:$0xff] %vm217, %v915
  %981 = vst.msk [vmem:[%s939 + $0x219] sm:$0xff] %vm217, %v916
  %982 = vst.msk [vmem:[%s939 + $0x229] sm:$0xff] %vm217, %v917
  %983 = vst.msk [vmem:[%s939 + $0x231] sm:$0xff] %vm217, %v918
  %984 = vst.msk [vmem:[%s939 + $0x241] sm:$0xff] %vm217, %v919
  %985 = vst.msk [vmem:[%s939 + $0x249] sm:$0xff] %vm217, %v920
  %986 = vst.msk [vmem:[%s939 + $0x259] sm:$0xff] %vm217, %v921
  %987 = vst.msk [vmem:[%s939 + $0x261] sm:$0xff] %vm217, %v922
  %988 = vst.msk [vmem:[%s939 + $0x271] sm:$0xff] %vm217, %v923
  %989 = vst.msk [vmem:[%s939 + $0x279] sm:$0xff] %vm217, %v924
  %990 = vst.msk [vmem:[%s939 + $0x289] sm:$0xff] %vm217, %v925
  %991 = vst.msk [vmem:[%s939 + $0x291] sm:$0xff] %vm217, %v926
  %992 = vst.msk [vmem:[%s939 + $0x2a1] sm:$0xff] %vm217, %v927
  %993 = vst.msk [vmem:[%s939 + $0x2a9] sm:$0xff] %vm217, %v928
  %994 = vst.msk [vmem:[%s939 + $0x2b9] sm:$0xff] %vm217, %v929
  %995 = vst.msk [vmem:[%s939 + $0x2c1] sm:$0xff] %vm217, %v930
  %996 = vst.msk [vmem:[%s939 + $0x2d1] sm:$0xff] %vm217, %v931
  %997 = vst.msk [vmem:[%s939 + $0x2d9] sm:$0xff] %vm217, %v932
  %998 = vst.msk [vmem:[%s939 + $0x2e9] sm:$0xff] %vm217, %v933
  %999 = vst.msk [vmem:[%s939 + $0x2f1] sm:$0xff] %vm217, %v934
  %1000 = vst.msk [vmem:[%s939 + $0x301] sm:$0xff] %vm217, %v935
  %1001 = vst.msk [vmem:[%s939 + $0x309] sm:$0xff] %vm217, %v936
  %1002 = vst.msk [vmem:[%s939 + $0x319] sm:$0xff] %vm217, %v937
  %1003 = vst.msk [vmem:[%s939 + $0x321] sm:$0xff] %vm217, %v938
  %v1004 = vld [vmem:[#allocation2] sm:$0xff]
  %v1005 = vld [vmem:[#allocation2 + $0x8] sm:$0xff]
  %v1006 = vld [vmem:[#allocation2 + $0x10] sm:$0x3]
  %v1007 = vld [vmem:[#allocation2 + $0x18] sm:$0xff]
  %v1008 = vld [vmem:[#allocation2 + $0x20] sm:$0xff]
  %v1009 = vld [vmem:[#allocation2 + $0x28] sm:$0x3]
  %v1010 = vld [vmem:[#allocation2 + $0x30] sm:$0xff]
  %v1011 = vld [vmem:[#allocation2 + $0x38] sm:$0xff]
  %v1012 = vld [vmem:[#allocation2 + $0x40] sm:$0x3]
  %v1013 = vld [vmem:[#allocation2 + $0x48] sm:$0xff]
  %v1014 = vld [vmem:[#allocation2 + $0x50] sm:$0xff]
  %v1015 = vld [vmem:[#allocation2 + $0x58] sm:$0x3]
  %v1016 = vld [vmem:[#allocation2 + $0x60] sm:$0xff]
  %v1017 = vld [vmem:[#allocation2 + $0x68] sm:$0xff]
  %v1018 = vld [vmem:[#allocation2 + $0x70] sm:$0x3]
  %v1019 = vld [vmem:[#allocation2 + $0x78] sm:$0xff]
  %v1020 = vld [vmem:[#allocation2 + $0x80] sm:$0xff]
  %v1021 = vld [vmem:[#allocation2 + $0x88] sm:$0x3]
  %v1022 = vld [vmem:[#allocation2 + $0x90] sm:$0xff]
  %v1023 = vld [vmem:[#allocation2 + $0x98] sm:$0xff]
  %v1024 = vld [vmem:[#allocation2 + $0xa0] sm:$0x3]
  %v1025 = vld [vmem:[#allocation2 + $0xa8] sm:$0xff]
  %v1026 = vld [vmem:[#allocation2 + $0xb0] sm:$0xff]
  %v1027 = vld [vmem:[#allocation2 + $0xb8] sm:$0x3]
  %v1028 = vld [vmem:[#allocation2 + $0xc0] sm:$0xff]
  %v1029 = vld [vmem:[#allocation2 + $0xc8] sm:$0xff]
  %v1030 = vld [vmem:[#allocation2 + $0xd0] sm:$0x3]
  %v1031 = vld [vmem:[#allocation2 + $0xd8] sm:$0xff]
  %v1032 = vld [vmem:[#allocation2 + $0xe0] sm:$0xff]
  %v1033 = vld [vmem:[#allocation2 + $0xe8] sm:$0x3]
  %v1034 = vld [vmem:[#allocation2 + $0xf0] sm:$0xff]
  %v1035 = vld [vmem:[#allocation2 + $0xf8] sm:$0xff]
  %v1036 = vld [vmem:[#allocation2 + $0x100] sm:$0x3]
  %v1037 = vld [vmem:[#allocation2 + $0x108] sm:$0xff]
  %v1038 = vld [vmem:[#allocation2 + $0x110] sm:$0xff]
  %v1039 = vld [vmem:[#allocation2 + $0x118] sm:$0x3]
  %v1040 = vld [vmem:[#allocation2 + $0x120] sm:$0xff]
  %v1041 = vld [vmem:[#allocation2 + $0x128] sm:$0xff]
  %v1042 = vld [vmem:[#allocation2 + $0x130] sm:$0x3]
  %v1043 = vld [vmem:[#allocation2 + $0x138] sm:$0xff]
  %v1044 = vld [vmem:[#allocation2 + $0x140] sm:$0xff]
  %v1045 = vld [vmem:[#allocation2 + $0x148] sm:$0x3]
  %v1046 = vld [vmem:[#allocation2 + $0x150] sm:$0xff]
  %v1047 = vld [vmem:[#allocation2 + $0x158] sm:$0xff]
  %v1048 = vld [vmem:[#allocation2 + $0x160] sm:$0x3]
  %v1049 = vld [vmem:[#allocation2 + $0x168] sm:$0xff]
  %v1050 = vld [vmem:[#allocation2 + $0x170] sm:$0xff]
  %v1051 = vld [vmem:[#allocation2 + $0x178] sm:$0x3]
  %v1052 = vld [vmem:[#allocation2 + $0x180] sm:$0xff]
  %v1053 = vld [vmem:[#allocation2 + $0x188] sm:$0xff]
  %v1054 = vld [vmem:[#allocation2 + $0x190] sm:$0x3]
  %v1055 = vld [vmem:[#allocation2 + $0x198] sm:$0xff]
  %v1056 = vld [vmem:[#allocation2 + $0x1a0] sm:$0xff]
  %v1057 = vld [vmem:[#allocation2 + $0x1a8] sm:$0x3]
  %v1058 = vld [vmem:[#allocation2 + $0x1b0] sm:$0xff]
  %v1059 = vld [vmem:[#allocation2 + $0x1b8] sm:$0xff]
  %v1060 = vld [vmem:[#allocation2 + $0x1c0] sm:$0x3]
  %v1061 = vld [vmem:[#allocation2 + $0x1c8] sm:$0xff]
  %v1062 = vld [vmem:[#allocation2 + $0x1d0] sm:$0xff]
  %v1063 = vld [vmem:[#allocation2 + $0x1d8] sm:$0x3]
  %v1064 = vld [vmem:[#allocation2 + $0x1e0] sm:$0xff]
  %v1065 = vld [vmem:[#allocation2 + $0x1e8] sm:$0xff]
  %v1066 = vld [vmem:[#allocation2 + $0x1f0] sm:$0x3]
  %v1067 = vld [vmem:[#allocation2 + $0x1f8] sm:$0xff]
  %v1068 = vld [vmem:[#allocation2 + $0x200] sm:$0xff]
  %v1069 = vld [vmem:[#allocation2 + $0x208] sm:$0x3]
  %v1070 = vld [vmem:[#allocation2 + $0x210] sm:$0xff]
  %v1071 = vld [vmem:[#allocation2 + $0x218] sm:$0xff]
  %v1072 = vld [vmem:[#allocation2 + $0x220] sm:$0x3]
  %v1073 = vld [vmem:[#allocation2 + $0x228] sm:$0xff]
  %v1074 = vld [vmem:[#allocation2 + $0x230] sm:$0xff]
  %v1075 = vld [vmem:[#allocation2 + $0x238] sm:$0x3]
  %v1076 = vld [vmem:[#allocation2 + $0x240] sm:$0xff]
  %v1077 = vld [vmem:[#allocation2 + $0x248] sm:$0xff]
  %v1078 = vld [vmem:[#allocation2 + $0x250] sm:$0x3]
  %v1079 = vld [vmem:[#allocation2 + $0x258] sm:$0xff]
  %v1080 = vld [vmem:[#allocation2 + $0x260] sm:$0xff]
  %v1081 = vld [vmem:[#allocation2 + $0x268] sm:$0x3]
  %v1082 = vld [vmem:[#allocation2 + $0x270] sm:$0xff]
  %v1083 = vld [vmem:[#allocation2 + $0x278] sm:$0xff]
  %v1084 = vld [vmem:[#allocation2 + $0x280] sm:$0x3]
  %v1085 = vld [vmem:[#allocation2 + $0x288] sm:$0xff]
  %v1086 = vld [vmem:[#allocation2 + $0x290] sm:$0xff]
  %v1087 = vld [vmem:[#allocation2 + $0x298] sm:$0x3]
  %v1088 = vld [vmem:[#allocation2 + $0x2a0] sm:$0xff]
  %v1089 = vld [vmem:[#allocation2 + $0x2a8] sm:$0xff]
  %v1090 = vld [vmem:[#allocation2 + $0x2b0] sm:$0x3]
  %v1091 = vld [vmem:[#allocation2 + $0x2b8] sm:$0xff]
  %v1092 = vld [vmem:[#allocation2 + $0x2c0] sm:$0xff]
  %v1093 = vld [vmem:[#allocation2 + $0x2c8] sm:$0x3]
  %v1094 = vld [vmem:[#allocation2 + $0x2d0] sm:$0xff]
  %v1095 = vld [vmem:[#allocation2 + $0x2d8] sm:$0xff]
  %v1096 = vld [vmem:[#allocation2 + $0x2e0] sm:$0x3]
  %v1097 = vld [vmem:[#allocation2 + $0x2e8] sm:$0xff]
  %v1098 = vld [vmem:[#allocation2 + $0x2f0] sm:$0xff]
  %v1099 = vld [vmem:[#allocation2 + $0x2f8] sm:$0x3]
  %v1100 = vld [vmem:[#allocation2 + $0x300] sm:$0xff]
  %v1101 = vld [vmem:[#allocation2 + $0x308] sm:$0xff]
  %v1102 = vld [vmem:[#allocation2 + $0x310] sm:$0x3]
  %v1103 = vld [vmem:[#allocation2 + $0x318] sm:$0xff]
  %v1104 = vld [vmem:[#allocation2 + $0x320] sm:$0xff]
  %v1105 = vld [vmem:[#allocation2 + $0x328] sm:$0x3]
  %v1106 = vld [vmem:[#allocation2 + $0x330] sm:$0xff]
  %v1107 = vld [vmem:[#allocation2 + $0x338] sm:$0xff]
  %v1108 = vld [vmem:[#allocation2 + $0x340] sm:$0x3]
  %v1109 = vld [vmem:[#allocation2 + $0x348] sm:$0xff]
  %v1110 = vld [vmem:[#allocation2 + $0x350] sm:$0xff]
  %v1111 = vld [vmem:[#allocation2 + $0x358] sm:$0x3]
  %1208 = vrot.lane.b32.xlu0 %v1007, 4
  %v1209 = vpop.permute.xlu0 %1208
  %1210 = vrot.lane.b32.xlu0 %v1008, 4
  %v1211 = vpop.permute.xlu0 %1210
  %1212 = vrot.lane.b32.xlu0 %v1009, 4
  %v1213 = vpop.permute.xlu0 %1212
  %1214 = vrot.lane.b32.xlu0 %v1010, 4
  %v1215 = vpop.permute.xlu0 %1214
  %1216 = vrot.lane.b32.xlu0 %v1011, 4
  %v1217 = vpop.permute.xlu0 %1216
  %1218 = vrot.lane.b32.xlu0 %v1012, 4
  %v1219 = vpop.permute.xlu0 %1218
  %1220 = vrot.lane.b32.xlu0 %v1013, 4
  %v1221 = vpop.permute.xlu0 %1220
  %1222 = vrot.lane.b32.xlu0 %v1014, 4
  %v1223 = vpop.permute.xlu0 %1222
  %1224 = vrot.lane.b32.xlu0 %v1015, 4
  %v1225 = vpop.permute.xlu0 %1224
  %1226 = vrot.lane.b32.xlu0 %v1016, 4
  %v1227 = vpop.permute.xlu0 %1226
  %1228 = vrot.lane.b32.xlu0 %v1017, 4
  %v1229 = vpop.permute.xlu0 %1228
  %1230 = vrot.lane.b32.xlu0 %v1018, 4
  %v1231 = vpop.permute.xlu0 %1230
  %1232 = vrot.lane.b32.xlu0 %v1019, 4
  %v1233 = vpop.permute.xlu0 %1232
  %1234 = vrot.lane.b32.xlu0 %v1020, 4
  %v1235 = vpop.permute.xlu0 %1234
  %1236 = vrot.lane.b32.xlu0 %v1021, 4
  %v1237 = vpop.permute.xlu0 %1236
  %1238 = vrot.lane.b32.xlu0 %v1022, 4
  %v1239 = vpop.permute.xlu0 %1238
  %1240 = vrot.lane.b32.xlu0 %v1023, 4
  %v1241 = vpop.permute.xlu0 %1240
  %1242 = vrot.lane.b32.xlu0 %v1024, 4
  %v1243 = vpop.permute.xlu0 %1242
  %1244 = vrot.lane.b32.xlu0 %v1025, 4
  %v1245 = vpop.permute.xlu0 %1244
  %1246 = vrot.lane.b32.xlu0 %v1026, 4
  %v1247 = vpop.permute.xlu0 %1246
  %1248 = vrot.lane.b32.xlu0 %v1027, 4
  %v1249 = vpop.permute.xlu0 %1248
  %1250 = vrot.lane.b32.xlu0 %v1028, 4
  %v1251 = vpop.permute.xlu0 %1250
  %1252 = vrot.lane.b32.xlu0 %v1029, 4
  %v1253 = vpop.permute.xlu0 %1252
  %1254 = vrot.lane.b32.xlu0 %v1030, 4
  %v1255 = vpop.permute.xlu0 %1254
  %1256 = vrot.lane.b32.xlu0 %v1031, 4
  %v1257 = vpop.permute.xlu0 %1256
  %1258 = vrot.lane.b32.xlu0 %v1032, 4
  %v1259 = vpop.permute.xlu0 %1258
  %1260 = vrot.lane.b32.xlu0 %v1033, 4
  %v1261 = vpop.permute.xlu0 %1260
  %1262 = vrot.lane.b32.xlu0 %v1034, 4
  %v1263 = vpop.permute.xlu0 %1262
  %1264 = vrot.lane.b32.xlu0 %v1035, 4
  %v1265 = vpop.permute.xlu0 %1264
  %1266 = vrot.lane.b32.xlu0 %v1036, 4
  %v1267 = vpop.permute.xlu0 %1266
  %1268 = vrot.lane.b32.xlu0 %v1037, 4
  %v1269 = vpop.permute.xlu0 %1268
  %1270 = vrot.lane.b32.xlu0 %v1038, 4
  %v1271 = vpop.permute.xlu0 %1270
  %1272 = vrot.lane.b32.xlu0 %v1039, 4
  %v1273 = vpop.permute.xlu0 %1272
  %1274 = vrot.lane.b32.xlu0 %v1040, 4
  %v1275 = vpop.permute.xlu0 %1274
  %1276 = vrot.lane.b32.xlu0 %v1041, 4
  %v1277 = vpop.permute.xlu0 %1276
  %1278 = vrot.lane.b32.xlu0 %v1042, 4
  %v1279 = vpop.permute.xlu0 %1278
  %1280 = vrot.lane.b32.xlu0 %v1043, 4
  %v1281 = vpop.permute.xlu0 %1280
  %1282 = vrot.lane.b32.xlu0 %v1044, 4
  %v1283 = vpop.permute.xlu0 %1282
  %1284 = vrot.lane.b32.xlu0 %v1045, 4
  %v1285 = vpop.permute.xlu0 %1284
  %1286 = vrot.lane.b32.xlu0 %v1046, 4
  %v1287 = vpop.permute.xlu0 %1286
  %1288 = vrot.lane.b32.xlu0 %v1047, 4
  %v1289 = vpop.permute.xlu0 %1288
  %1290 = vrot.lane.b32.xlu0 %v1048, 4
  %v1291 = vpop.permute.xlu0 %1290
  %1292 = vrot.lane.b32.xlu0 %v1049, 4
  %v1293 = vpop.permute.xlu0 %1292
  %1294 = vrot.lane.b32.xlu0 %v1050, 4
  %v1295 = vpop.permute.xlu0 %1294
  %1296 = vrot.lane.b32.xlu0 %v1051, 4
  %v1297 = vpop.permute.xlu0 %1296
  %1298 = vrot.lane.b32.xlu0 %v1052, 4
  %v1299 = vpop.permute.xlu0 %1298
  %1300 = vrot.lane.b32.xlu0 %v1053, 4
  %v1301 = vpop.permute.xlu0 %1300
  %1302 = vrot.lane.b32.xlu0 %v1054, 4
  %v1303 = vpop.permute.xlu0 %1302
  %1304 = vrot.lane.b32.xlu0 %v1061, 4
  %v1305 = vpop.permute.xlu0 %1304
  %1306 = vrot.lane.b32.xlu0 %v1062, 4
  %v1307 = vpop.permute.xlu0 %1306
  %1308 = vrot.lane.b32.xlu0 %v1063, 4
  %v1309 = vpop.permute.xlu0 %1308
  %1310 = vrot.lane.b32.xlu0 %v1064, 4
  %v1311 = vpop.permute.xlu0 %1310
  %1312 = vrot.lane.b32.xlu0 %v1065, 4
  %v1313 = vpop.permute.xlu0 %1312
  %1314 = vrot.lane.b32.xlu0 %v1066, 4
  %v1315 = vpop.permute.xlu0 %1314
  %1316 = vrot.lane.b32.xlu0 %v1067, 4
  %v1317 = vpop.permute.xlu0 %1316
  %1318 = vrot.lane.b32.xlu0 %v1068, 4
  %v1319 = vpop.permute.xlu0 %1318
  %1320 = vrot.lane.b32.xlu0 %v1069, 4
  %v1321 = vpop.permute.xlu0 %1320
  %1322 = vrot.lane.b32.xlu0 %v1070, 4
  %v1323 = vpop.permute.xlu0 %1322
  %1324 = vrot.lane.b32.xlu0 %v1071, 4
  %v1325 = vpop.permute.xlu0 %1324
  %1326 = vrot.lane.b32.xlu0 %v1072, 4
  %v1327 = vpop.permute.xlu0 %1326
  %1328 = vrot.lane.b32.xlu0 %v1073, 4
  %v1329 = vpop.permute.xlu0 %1328
  %1330 = vrot.lane.b32.xlu0 %v1074, 4
  %v1331 = vpop.permute.xlu0 %1330
  %1332 = vrot.lane.b32.xlu0 %v1075, 4
  %v1333 = vpop.permute.xlu0 %1332
  %1334 = vrot.lane.b32.xlu0 %v1076, 4
  %v1335 = vpop.permute.xlu0 %1334
  %1336 = vrot.lane.b32.xlu0 %v1077, 4
  %v1337 = vpop.permute.xlu0 %1336
  %1338 = vrot.lane.b32.xlu0 %v1078, 4
  %v1339 = vpop.permute.xlu0 %1338
  %1340 = vrot.lane.b32.xlu0 %v1079, 4
  %v1341 = vpop.permute.xlu0 %1340
  %1342 = vrot.lane.b32.xlu0 %v1080, 4
  %v1343 = vpop.permute.xlu0 %1342
  %1344 = vrot.lane.b32.xlu0 %v1081, 4
  %v1345 = vpop.permute.xlu0 %1344
  %1346 = vrot.lane.b32.xlu0 %v1082, 4
  %v1347 = vpop.permute.xlu0 %1346
  %1348 = vrot.lane.b32.xlu0 %v1083, 4
  %v1349 = vpop.permute.xlu0 %1348
  %1350 = vrot.lane.b32.xlu0 %v1084, 4
  %v1351 = vpop.permute.xlu0 %1350
  %1352 = vrot.lane.b32.xlu0 %v1085, 4
  %v1353 = vpop.permute.xlu0 %1352
  %1354 = vrot.lane.b32.xlu0 %v1086, 4
  %v1355 = vpop.permute.xlu0 %1354
  %1356 = vrot.lane.b32.xlu0 %v1087, 4
  %v1357 = vpop.permute.xlu0 %1356
  %1358 = vrot.lane.b32.xlu0 %v1088, 4
  %v1359 = vpop.permute.xlu0 %1358
  %1360 = vrot.lane.b32.xlu0 %v1089, 4
  %v1361 = vpop.permute.xlu0 %1360
  %1362 = vrot.lane.b32.xlu0 %v1090, 4
  %v1363 = vpop.permute.xlu0 %1362
  %1364 = vrot.lane.b32.xlu0 %v1091, 4
  %v1365 = vpop.permute.xlu0 %1364
  %1366 = vrot.lane.b32.xlu0 %v1092, 4
  %v1367 = vpop.permute.xlu0 %1366
  %1368 = vrot.lane.b32.xlu0 %v1093, 4
  %v1369 = vpop.permute.xlu0 %1368
  %1370 = vrot.lane.b32.xlu0 %v1094, 4
  %v1371 = vpop.permute.xlu0 %1370
  %1372 = vrot.lane.b32.xlu0 %v1095, 4
  %v1373 = vpop.permute.xlu0 %1372
  %1374 = vrot.lane.b32.xlu0 %v1096, 4
  %v1375 = vpop.permute.xlu0 %1374
  %1376 = vrot.lane.b32.xlu0 %v1097, 4
  %v1377 = vpop.permute.xlu0 %1376
  %1378 = vrot.lane.b32.xlu0 %v1098, 4
  %v1379 = vpop.permute.xlu0 %1378
  %1380 = vrot.lane.b32.xlu0 %v1099, 4
  %v1381 = vpop.permute.xlu0 %1380
  %1382 = vrot.lane.b32.xlu0 %v1100, 4
  %v1383 = vpop.permute.xlu0 %1382
  %1384 = vrot.lane.b32.xlu0 %v1101, 4
  %v1385 = vpop.permute.xlu0 %1384
  %1386 = vrot.lane.b32.xlu0 %v1102, 4
  %v1387 = vpop.permute.xlu0 %1386
  %1388 = vrot.lane.b32.xlu0 %v1103, 4
  %v1389 = vpop.permute.xlu0 %1388
  %1390 = vrot.lane.b32.xlu0 %v1104, 4
  %v1391 = vpop.permute.xlu0 %1390
  %1392 = vrot.lane.b32.xlu0 %v1105, 4
  %v1393 = vpop.permute.xlu0 %1392
  %1394 = vrot.lane.b32.xlu0 %v1106, 4
  %v1395 = vpop.permute.xlu0 %1394
  %1396 = vrot.lane.b32.xlu0 %v1107, 4
  %v1397 = vpop.permute.xlu0 %1396
  %1398 = vrot.lane.b32.xlu0 %v1108, 4
  %v1399 = vpop.permute.xlu0 %1398
  %1502 = vrot.lane.b32.xlu0 %v1010, 8
  %v1503 = vpop.permute.xlu0 %1502
  %1504 = vrot.lane.b32.xlu0 %v1011, 8
  %v1505 = vpop.permute.xlu0 %1504
  %1506 = vrot.lane.b32.xlu0 %v1012, 8
  %v1507 = vpop.permute.xlu0 %1506
  %1508 = vrot.lane.b32.xlu0 %v1013, 8
  %v1509 = vpop.permute.xlu0 %1508
  %1510 = vrot.lane.b32.xlu0 %v1014, 8
  %v1511 = vpop.permute.xlu0 %1510
  %1512 = vrot.lane.b32.xlu0 %v1015, 8
  %v1513 = vpop.permute.xlu0 %1512
  %1514 = vrot.lane.b32.xlu0 %v1016, 8
  %v1515 = vpop.permute.xlu0 %1514
  %1516 = vrot.lane.b32.xlu0 %v1017, 8
  %v1517 = vpop.permute.xlu0 %1516
  %1518 = vrot.lane.b32.xlu0 %v1018, 8
  %v1519 = vpop.permute.xlu0 %1518
  %1520 = vrot.lane.b32.xlu0 %v1019, 8
  %v1521 = vpop.permute.xlu0 %1520
  %1522 = vrot.lane.b32.xlu0 %v1020, 8
  %v1523 = vpop.permute.xlu0 %1522
  %1524 = vrot.lane.b32.xlu0 %v1021, 8
  %v1525 = vpop.permute.xlu0 %1524
  %1526 = vrot.lane.b32.xlu0 %v1022, 8
  %v1527 = vpop.permute.xlu0 %1526
  %1528 = vrot.lane.b32.xlu0 %v1023, 8
  %v1529 = vpop.permute.xlu0 %1528
  %1530 = vrot.lane.b32.xlu0 %v1024, 8
  %v1531 = vpop.permute.xlu0 %1530
  %1532 = vrot.lane.b32.xlu0 %v1025, 8
  %v1533 = vpop.permute.xlu0 %1532
  %1534 = vrot.lane.b32.xlu0 %v1026, 8
  %v1535 = vpop.permute.xlu0 %1534
  %1536 = vrot.lane.b32.xlu0 %v1027, 8
  %v1537 = vpop.permute.xlu0 %1536
  %1538 = vrot.lane.b32.xlu0 %v1028, 8
  %v1539 = vpop.permute.xlu0 %1538
  %1540 = vrot.lane.b32.xlu0 %v1029, 8
  %v1541 = vpop.permute.xlu0 %1540
  %1542 = vrot.lane.b32.xlu0 %v1030, 8
  %v1543 = vpop.permute.xlu0 %1542
  %1544 = vrot.lane.b32.xlu0 %v1031, 8
  %v1545 = vpop.permute.xlu0 %1544
  %1546 = vrot.lane.b32.xlu0 %v1032, 8
  %v1547 = vpop.permute.xlu0 %1546
  %1548 = vrot.lane.b32.xlu0 %v1033, 8
  %v1549 = vpop.permute.xlu0 %1548
  %1550 = vrot.lane.b32.xlu0 %v1034, 8
  %v1551 = vpop.permute.xlu0 %1550
  %1552 = vrot.lane.b32.xlu0 %v1035, 8
  %v1553 = vpop.permute.xlu0 %1552
  %1554 = vrot.lane.b32.xlu0 %v1036, 8
  %v1555 = vpop.permute.xlu0 %1554
  %1556 = vrot.lane.b32.xlu0 %v1037, 8
  %v1557 = vpop.permute.xlu0 %1556
  %1558 = vrot.lane.b32.xlu0 %v1038, 8
  %v1559 = vpop.permute.xlu0 %1558
  %1560 = vrot.lane.b32.xlu0 %v1039, 8
  %v1561 = vpop.permute.xlu0 %1560
  %1562 = vrot.lane.b32.xlu0 %v1040, 8
  %v1563 = vpop.permute.xlu0 %1562
  %1564 = vrot.lane.b32.xlu0 %v1041, 8
  %v1565 = vpop.permute.xlu0 %1564
  %1566 = vrot.lane.b32.xlu0 %v1042, 8
  %v1567 = vpop.permute.xlu0 %1566
  %1568 = vrot.lane.b32.xlu0 %v1043, 8
  %v1569 = vpop.permute.xlu0 %1568
  %1570 = vrot.lane.b32.xlu0 %v1044, 8
  %v1571 = vpop.permute.xlu0 %1570
  %1572 = vrot.lane.b32.xlu0 %v1045, 8
  %v1573 = vpop.permute.xlu0 %1572
  %1574 = vrot.lane.b32.xlu0 %v1046, 8
  %v1575 = vpop.permute.xlu0 %1574
  %1576 = vrot.lane.b32.xlu0 %v1047, 8
  %v1577 = vpop.permute.xlu0 %1576
  %1578 = vrot.lane.b32.xlu0 %v1048, 8
  %v1579 = vpop.permute.xlu0 %1578
  %1580 = vrot.lane.b32.xlu0 %v1049, 8
  %v1581 = vpop.permute.xlu0 %1580
  %1582 = vrot.lane.b32.xlu0 %v1050, 8
  %v1583 = vpop.permute.xlu0 %1582
  %1584 = vrot.lane.b32.xlu0 %v1051, 8
  %v1585 = vpop.permute.xlu0 %1584
  %1586 = vrot.lane.b32.xlu0 %v1052, 8
  %v1587 = vpop.permute.xlu0 %1586
  %1588 = vrot.lane.b32.xlu0 %v1053, 8
  %v1589 = vpop.permute.xlu0 %1588
  %1590 = vrot.lane.b32.xlu0 %v1054, 8
  %v1591 = vpop.permute.xlu0 %1590
  %1592 = vrot.lane.b32.xlu0 %v1055, 8
  %v1593 = vpop.permute.xlu0 %1592
  %1594 = vrot.lane.b32.xlu0 %v1056, 8
  %v1595 = vpop.permute.xlu0 %1594
  %1596 = vrot.lane.b32.xlu0 %v1057, 8
  %v1597 = vpop.permute.xlu0 %1596
  %1598 = vrot.lane.b32.xlu0 %v1064, 8
  %v1599 = vpop.permute.xlu0 %1598
  %1600 = vrot.lane.b32.xlu0 %v1065, 8
  %v1601 = vpop.permute.xlu0 %1600
  %1602 = vrot.lane.b32.xlu0 %v1066, 8
  %v1603 = vpop.permute.xlu0 %1602
  %1604 = vrot.lane.b32.xlu0 %v1067, 8
  %v1605 = vpop.permute.xlu0 %1604
  %1606 = vrot.lane.b32.xlu0 %v1068, 8
  %v1607 = vpop.permute.xlu0 %1606
  %1608 = vrot.lane.b32.xlu0 %v1069, 8
  %v1609 = vpop.permute.xlu0 %1608
  %1610 = vrot.lane.b32.xlu0 %v1070, 8
  %v1611 = vpop.permute.xlu0 %1610
  %1612 = vrot.lane.b32.xlu0 %v1071, 8
  %v1613 = vpop.permute.xlu0 %1612
  %1614 = vrot.lane.b32.xlu0 %v1072, 8
  %v1615 = vpop.permute.xlu0 %1614
  %1616 = vrot.lane.b32.xlu0 %v1073, 8
  %v1617 = vpop.permute.xlu0 %1616
  %1618 = vrot.lane.b32.xlu0 %v1074, 8
  %v1619 = vpop.permute.xlu0 %1618
  %1620 = vrot.lane.b32.xlu0 %v1075, 8
  %v1621 = vpop.permute.xlu0 %1620
  %1622 = vrot.lane.b32.xlu0 %v1076, 8
  %v1623 = vpop.permute.xlu0 %1622
  %1624 = vrot.lane.b32.xlu0 %v1077, 8
  %v1625 = vpop.permute.xlu0 %1624
  %1626 = vrot.lane.b32.xlu0 %v1078, 8
  %v1627 = vpop.permute.xlu0 %1626
  %1628 = vrot.lane.b32.xlu0 %v1079, 8
  %v1629 = vpop.permute.xlu0 %1628
  %1630 = vrot.lane.b32.xlu0 %v1080, 8
  %v1631 = vpop.permute.xlu0 %1630
  %1632 = vrot.lane.b32.xlu0 %v1081, 8
  %v1633 = vpop.permute.xlu0 %1632
  %1634 = vrot.lane.b32.xlu0 %v1082, 8
  %v1635 = vpop.permute.xlu0 %1634
  %1636 = vrot.lane.b32.xlu0 %v1083, 8
  %v1637 = vpop.permute.xlu0 %1636
  %1638 = vrot.lane.b32.xlu0 %v1084, 8
  %v1639 = vpop.permute.xlu0 %1638
  %1640 = vrot.lane.b32.xlu0 %v1085, 8
  %v1641 = vpop.permute.xlu0 %1640
  %1642 = vrot.lane.b32.xlu0 %v1086, 8
  %v1643 = vpop.permute.xlu0 %1642
  %1644 = vrot.lane.b32.xlu0 %v1087, 8
  %v1645 = vpop.permute.xlu0 %1644
  %1646 = vrot.lane.b32.xlu0 %v1088, 8
  %v1647 = vpop.permute.xlu0 %1646
  %1648 = vrot.lane.b32.xlu0 %v1089, 8
  %v1649 = vpop.permute.xlu0 %1648
  %1650 = vrot.lane.b32.xlu0 %v1090, 8
  %v1651 = vpop.permute.xlu0 %1650
  %1652 = vrot.lane.b32.xlu0 %v1091, 8
  %v1653 = vpop.permute.xlu0 %1652
  %1654 = vrot.lane.b32.xlu0 %v1092, 8
  %v1655 = vpop.permute.xlu0 %1654
  %1656 = vrot.lane.b32.xlu0 %v1093, 8
  %v1657 = vpop.permute.xlu0 %1656
  %1658 = vrot.lane.b32.xlu0 %v1094, 8
  %v1659 = vpop.permute.xlu0 %1658
  %1660 = vrot.lane.b32.xlu0 %v1095, 8
  %v1661 = vpop.permute.xlu0 %1660
  %1662 = vrot.lane.b32.xlu0 %v1096, 8
  %v1663 = vpop.permute.xlu0 %1662
  %1664 = vrot.lane.b32.xlu0 %v1097, 8
  %v1665 = vpop.permute.xlu0 %1664
  %1666 = vrot.lane.b32.xlu0 %v1098, 8
  %v1667 = vpop.permute.xlu0 %1666
  %1668 = vrot.lane.b32.xlu0 %v1099, 8
  %v1669 = vpop.permute.xlu0 %1668
  %1670 = vrot.lane.b32.xlu0 %v1100, 8
  %v1671 = vpop.permute.xlu0 %1670
  %1672 = vrot.lane.b32.xlu0 %v1101, 8
  %v1673 = vpop.permute.xlu0 %1672
  %1674 = vrot.lane.b32.xlu0 %v1102, 8
  %v1675 = vpop.permute.xlu0 %1674
  %1676 = vrot.lane.b32.xlu0 %v1103, 8
  %v1677 = vpop.permute.xlu0 %1676
  %1678 = vrot.lane.b32.xlu0 %v1104, 8
  %v1679 = vpop.permute.xlu0 %1678
  %1680 = vrot.lane.b32.xlu0 %v1105, 8
  %v1681 = vpop.permute.xlu0 %1680
  %1682 = vrot.lane.b32.xlu0 %v1106, 8
  %v1683 = vpop.permute.xlu0 %1682
  %1684 = vrot.lane.b32.xlu0 %v1107, 8
  %v1685 = vpop.permute.xlu0 %1684
  %1686 = vrot.lane.b32.xlu0 %v1108, 8
  %v1687 = vpop.permute.xlu0 %1686
  %1688 = vrot.lane.b32.xlu0 %v1109, 8
  %v1689 = vpop.permute.xlu0 %1688
  %1690 = vrot.lane.b32.xlu0 %v1110, 8
  %v1691 = vpop.permute.xlu0 %1690
  %1692 = vrot.lane.b32.xlu0 %v1111, 8
  %v1693 = vpop.permute.xlu0 %1692
  %v1790 = vsel %vm217, %v1004, %v1209
  %v1791 = vsel %vm217, %v1005, %v1211
  %v1792 = vsel %vm217, %v1006, %v1213
  %v1793 = vsel %vm217, %v1007, %v1215
  %v1794 = vsel %vm217, %v1008, %v1217
  %v1795 = vsel %vm217, %v1009, %v1219
  %v1796 = vsel %vm217, %v1010, %v1221
  %v1797 = vsel %vm217, %v1011, %v1223
  %v1798 = vsel %vm217, %v1012, %v1225
  %v1799 = vsel %vm217, %v1013, %v1227
  %v1800 = vsel %vm217, %v1014, %v1229
  %v1801 = vsel %vm217, %v1015, %v1231
  %v1802 = vsel %vm217, %v1016, %v1233
  %v1803 = vsel %vm217, %v1017, %v1235
  %v1804 = vsel %vm217, %v1018, %v1237
  %v1805 = vsel %vm217, %v1019, %v1239
  %v1806 = vsel %vm217, %v1020, %v1241
  %v1807 = vsel %vm217, %v1021, %v1243
  %v1808 = vsel %vm217, %v1022, %v1245
  %v1809 = vsel %vm217, %v1023, %v1247
  %v1810 = vsel %vm217, %v1024, %v1249
  %v1811 = vsel %vm217, %v1025, %v1251
  %v1812 = vsel %vm217, %v1026, %v1253
  %v1813 = vsel %vm217, %v1027, %v1255
  %v1814 = vsel %vm217, %v1028, %v1257
  %v1815 = vsel %vm217, %v1029, %v1259
  %v1816 = vsel %vm217, %v1030, %v1261
  %v1817 = vsel %vm217, %v1031, %v1263
  %v1818 = vsel %vm217, %v1032, %v1265
  %v1819 = vsel %vm217, %v1033, %v1267
  %v1820 = vsel %vm217, %v1034, %v1269
  %v1821 = vsel %vm217, %v1035, %v1271
  %v1822 = vsel %vm217, %v1036, %v1273
  %v1823 = vsel %vm217, %v1037, %v1275
  %v1824 = vsel %vm217, %v1038, %v1277
  %v1825 = vsel %vm217, %v1039, %v1279
  %v1826 = vsel %vm217, %v1040, %v1281
  %v1827 = vsel %vm217, %v1041, %v1283
  %v1828 = vsel %vm217, %v1042, %v1285
  %v1829 = vsel %vm217, %v1043, %v1287
  %v1830 = vsel %vm217, %v1044, %v1289
  %v1831 = vsel %vm217, %v1045, %v1291
  %v1832 = vsel %vm217, %v1046, %v1293
  %v1833 = vsel %vm217, %v1047, %v1295
  %v1834 = vsel %vm217, %v1048, %v1297
  %v1835 = vsel %vm217, %v1049, %v1299
  %v1836 = vsel %vm217, %v1050, %v1301
  %v1837 = vsel %vm217, %v1051, %v1303
  %v1838 = vsel %vm217, %v1058, %v1305
  %v1839 = vsel %vm217, %v1059, %v1307
  %v1840 = vsel %vm217, %v1060, %v1309
  %v1841 = vsel %vm217, %v1061, %v1311
  %v1842 = vsel %vm217, %v1062, %v1313
  %v1843 = vsel %vm217, %v1063, %v1315
  %v1844 = vsel %vm217, %v1064, %v1317
  %v1845 = vsel %vm217, %v1065, %v1319
  %v1846 = vsel %vm217, %v1066, %v1321
  %v1847 = vsel %vm217, %v1067, %v1323
  %v1848 = vsel %vm217, %v1068, %v1325
  %v1849 = vsel %vm217, %v1069, %v1327
  %v1850 = vsel %vm217, %v1070, %v1329
  %v1851 = vsel %vm217, %v1071, %v1331
  %v1852 = vsel %vm217, %v1072, %v1333
  %v1853 = vsel %vm217, %v1073, %v1335
  %v1854 = vsel %vm217, %v1074, %v1337
  %v1855 = vsel %vm217, %v1075, %v1339
  %v1856 = vsel %vm217, %v1076, %v1341
  %v1857 = vsel %vm217, %v1077, %v1343
  %v1858 = vsel %vm217, %v1078, %v1345
  %v1859 = vsel %vm217, %v1079, %v1347
  %v1860 = vsel %vm217, %v1080, %v1349
  %v1861 = vsel %vm217, %v1081, %v1351
  %v1862 = vsel %vm217, %v1082, %v1353
  %v1863 = vsel %vm217, %v1083, %v1355
  %v1864 = vsel %vm217, %v1084, %v1357
  %v1865 = vsel %vm217, %v1085, %v1359
  %v1866 = vsel %vm217, %v1086, %v1361
  %v1867 = vsel %vm217, %v1087, %v1363
  %v1868 = vsel %vm217, %v1088, %v1365
  %v1869 = vsel %vm217, %v1089, %v1367
  %v1870 = vsel %vm217, %v1090, %v1369
  %v1871 = vsel %vm217, %v1091, %v1371
  %v1872 = vsel %vm217, %v1092, %v1373
  %v1873 = vsel %vm217, %v1093, %v1375
  %v1874 = vsel %vm217, %v1094, %v1377
  %v1875 = vsel %vm217, %v1095, %v1379
  %v1876 = vsel %vm217, %v1096, %v1381
  %v1877 = vsel %vm217, %v1097, %v1383
  %v1878 = vsel %vm217, %v1098, %v1385
  %v1879 = vsel %vm217, %v1099, %v1387
  %v1880 = vsel %vm217, %v1100, %v1389
  %v1881 = vsel %vm217, %v1101, %v1391
  %v1882 = vsel %vm217, %v1102, %v1393
  %v1883 = vsel %vm217, %v1103, %v1395
  %v1884 = vsel %vm217, %v1104, %v1397
  %v1885 = vsel %vm217, %v1105, %v1399
  %vm1886 = vcmask 64512
  %v1887 = vsel %vm1886, %v1790, %v1503
  %v1888 = vsel %vm1886, %v1791, %v1505
  %v1889 = vsel %vm1886, %v1792, %v1507
  %v1890 = vsel %vm1886, %v1793, %v1509
  %v1891 = vsel %vm1886, %v1794, %v1511
  %v1892 = vsel %vm1886, %v1795, %v1513
  %v1893 = vsel %vm1886, %v1796, %v1515
  %v1894 = vsel %vm1886, %v1797, %v1517
  %v1895 = vsel %vm1886, %v1798, %v1519
  %v1896 = vsel %vm1886, %v1799, %v1521
  %v1897 = vsel %vm1886, %v1800, %v1523
  %v1898 = vsel %vm1886, %v1801, %v1525
  %v1899 = vsel %vm1886, %v1802, %v1527
  %v1900 = vsel %vm1886, %v1803, %v1529
  %v1901 = vsel %vm1886, %v1804, %v1531
  %v1902 = vsel %vm1886, %v1805, %v1533
  %v1903 = vsel %vm1886, %v1806, %v1535
  %v1904 = vsel %vm1886, %v1807, %v1537
  %v1905 = vsel %vm1886, %v1808, %v1539
  %v1906 = vsel %vm1886, %v1809, %v1541
  %v1907 = vsel %vm1886, %v1810, %v1543
  %v1908 = vsel %vm1886, %v1811, %v1545
  %v1909 = vsel %vm1886, %v1812, %v1547
  %v1910 = vsel %vm1886, %v1813, %v1549
  %v1911 = vsel %vm1886, %v1814, %v1551
  %v1912 = vsel %vm1886, %v1815, %v1553
  %v1913 = vsel %vm1886, %v1816, %v1555
  %v1914 = vsel %vm1886, %v1817, %v1557
  %v1915 = vsel %vm1886, %v1818, %v1559
  %v1916 = vsel %vm1886, %v1819, %v1561
  %v1917 = vsel %vm1886, %v1820, %v1563
  %v1918 = vsel %vm1886, %v1821, %v1565
  %v1919 = vsel %vm1886, %v1822, %v1567
  %v1920 = vsel %vm1886, %v1823, %v1569
  %v1921 = vsel %vm1886, %v1824, %v1571
  %v1922 = vsel %vm1886, %v1825, %v1573
  %v1923 = vsel %vm1886, %v1826, %v1575
  %v1924 = vsel %vm1886, %v1827, %v1577
  %v1925 = vsel %vm1886, %v1828, %v1579
  %v1926 = vsel %vm1886, %v1829, %v1581
  %v1927 = vsel %vm1886, %v1830, %v1583
  %v1928 = vsel %vm1886, %v1831, %v1585
  %v1929 = vsel %vm1886, %v1832, %v1587
  %v1930 = vsel %vm1886, %v1833, %v1589
  %v1931 = vsel %vm1886, %v1834, %v1591
  %v1932 = vsel %vm1886, %v1835, %v1593
  %v1933 = vsel %vm1886, %v1836, %v1595
  %v1934 = vsel %vm1886, %v1837, %v1597
  %v1935 = vsel %vm1886, %v1838, %v1599
  %v1936 = vsel %vm1886, %v1839, %v1601
  %v1937 = vsel %vm1886, %v1840, %v1603
  %v1938 = vsel %vm1886, %v1841, %v1605
  %v1939 = vsel %vm1886, %v1842, %v1607
  %v1940 = vsel %vm1886, %v1843, %v1609
  %v1941 = vsel %vm1886, %v1844, %v1611
  %v1942 = vsel %vm1886, %v1845, %v1613
  %v1943 = vsel %vm1886, %v1846, %v1615
  %v1944 = vsel %vm1886, %v1847, %v1617
  %v1945 = vsel %vm1886, %v1848, %v1619
  %v1946 = vsel %vm1886, %v1849, %v1621
  %v1947 = vsel %vm1886, %v1850, %v1623
  %v1948 = vsel %vm1886, %v1851, %v1625
  %v1949 = vsel %vm1886, %v1852, %v1627
  %v1950 = vsel %vm1886, %v1853, %v1629
  %v1951 = vsel %vm1886, %v1854, %v1631
  %v1952 = vsel %vm1886, %v1855, %v1633
  %v1953 = vsel %vm1886, %v1856, %v1635
  %v1954 = vsel %vm1886, %v1857, %v1637
  %v1955 = vsel %vm1886, %v1858, %v1639
  %v1956 = vsel %vm1886, %v1859, %v1641
  %v1957 = vsel %vm1886, %v1860, %v1643
  %v1958 = vsel %vm1886, %v1861, %v1645
  %v1959 = vsel %vm1886, %v1862, %v1647
  %v1960 = vsel %vm1886, %v1863, %v1649
  %v1961 = vsel %vm1886, %v1864, %v1651
  %v1962 = vsel %vm1886, %v1865, %v1653
  %v1963 = vsel %vm1886, %v1866, %v1655
  %v1964 = vsel %vm1886, %v1867, %v1657
  %v1965 = vsel %vm1886, %v1868, %v1659
  %v1966 = vsel %vm1886, %v1869, %v1661
  %v1967 = vsel %vm1886, %v1870, %v1663
  %v1968 = vsel %vm1886, %v1871, %v1665
  %v1969 = vsel %vm1886, %v1872, %v1667
  %v1970 = vsel %vm1886, %v1873, %v1669
  %v1971 = vsel %vm1886, %v1874, %v1671
  %v1972 = vsel %vm1886, %v1875, %v1673
  %v1973 = vsel %vm1886, %v1876, %v1675
  %v1974 = vsel %vm1886, %v1877, %v1677
  %v1975 = vsel %vm1886, %v1878, %v1679
  %v1976 = vsel %vm1886, %v1879, %v1681
  %v1977 = vsel %vm1886, %v1880, %v1683
  %v1978 = vsel %vm1886, %v1881, %v1685
  %v1979 = vsel %vm1886, %v1882, %v1687
  %v1980 = vsel %vm1886, %v1883, %v1689
  %v1981 = vsel %vm1886, %v1884, %v1691
  %v1982 = vsel %vm1886, %v1885, %v1693
  %vm2079 = vcmask 1046528
  %v2080 = vrot.slane %v1887, 1
  %v2081 = vrot.slane %v1888, 1
  %v2082 = vsel %vm2079, %v2080, %v2081
  %v2083 = vrot.slane %v1889, 1
  %v2084 = vsel %vm2079, %v2081, %v2083
  %v2085 = vrot.slane %v1890, 1
  %v2086 = vrot.slane %v1891, 1
  %v2087 = vsel %vm2079, %v2085, %v2086
  %v2088 = vrot.slane %v1892, 1
  %v2089 = vsel %vm2079, %v2086, %v2088
  %v2090 = vrot.slane %v1893, 1
  %v2091 = vrot.slane %v1894, 1
  %v2092 = vsel %vm2079, %v2090, %v2091
  %v2093 = vrot.slane %v1895, 1
  %v2094 = vsel %vm2079, %v2091, %v2093
  %v2095 = vrot.slane %v1896, 1
  %v2096 = vrot.slane %v1897, 1
  %v2097 = vsel %vm2079, %v2095, %v2096
  %v2098 = vrot.slane %v1898, 1
  %v2099 = vsel %vm2079, %v2096, %v2098
  %v2100 = vrot.slane %v1899, 1
  %v2101 = vrot.slane %v1900, 1
  %v2102 = vsel %vm2079, %v2100, %v2101
  %v2103 = vrot.slane %v1901, 1
  %v2104 = vsel %vm2079, %v2101, %v2103
  %v2105 = vrot.slane %v1902, 1
  %v2106 = vrot.slane %v1903, 1
  %v2107 = vsel %vm2079, %v2105, %v2106
  %v2108 = vrot.slane %v1904, 1
  %v2109 = vsel %vm2079, %v2106, %v2108
  %v2110 = vrot.slane %v1905, 1
  %v2111 = vrot.slane %v1906, 1
  %v2112 = vsel %vm2079, %v2110, %v2111
  %v2113 = vrot.slane %v1907, 1
  %v2114 = vsel %vm2079, %v2111, %v2113
  %v2115 = vrot.slane %v1908, 1
  %v2116 = vrot.slane %v1909, 1
  %v2117 = vsel %vm2079, %v2115, %v2116
  %v2118 = vrot.slane %v1910, 1
  %v2119 = vsel %vm2079, %v2116, %v2118
  %v2120 = vrot.slane %v1911, 1
  %v2121 = vrot.slane %v1912, 1
  %v2122 = vsel %vm2079, %v2120, %v2121
  %v2123 = vrot.slane %v1913, 1
  %v2124 = vsel %vm2079, %v2121, %v2123
  %v2125 = vrot.slane %v1914, 1
  %v2126 = vrot.slane %v1915, 1
  %v2127 = vsel %vm2079, %v2125, %v2126
  %v2128 = vrot.slane %v1916, 1
  %v2129 = vsel %vm2079, %v2126, %v2128
  %v2130 = vrot.slane %v1917, 1
  %v2131 = vrot.slane %v1918, 1
  %v2132 = vsel %vm2079, %v2130, %v2131
  %v2133 = vrot.slane %v1919, 1
  %v2134 = vsel %vm2079, %v2131, %v2133
  %v2135 = vrot.slane %v1920, 1
  %v2136 = vrot.slane %v1921, 1
  %v2137 = vsel %vm2079, %v2135, %v2136
  %v2138 = vrot.slane %v1922, 1
  %v2139 = vsel %vm2079, %v2136, %v2138
  %v2140 = vrot.slane %v1923, 1
  %v2141 = vrot.slane %v1924, 1
  %v2142 = vsel %vm2079, %v2140, %v2141
  %v2143 = vrot.slane %v1925, 1
  %v2144 = vsel %vm2079, %v2141, %v2143
  %v2145 = vrot.slane %v1926, 1
  %v2146 = vrot.slane %v1927, 1
  %v2147 = vsel %vm2079, %v2145, %v2146
  %v2148 = vrot.slane %v1928, 1
  %v2149 = vsel %vm2079, %v2146, %v2148
  %v2150 = vrot.slane %v1929, 1
  %v2151 = vrot.slane %v1930, 1
  %v2152 = vsel %vm2079, %v2150, %v2151
  %v2153 = vrot.slane %v1931, 1
  %v2154 = vsel %vm2079, %v2151, %v2153
  %v2155 = vrot.slane %v1932, 1
  %v2156 = vrot.slane %v1933, 1
  %v2157 = vsel %vm2079, %v2155, %v2156
  %v2158 = vrot.slane %v1934, 1
  %v2159 = vsel %vm2079, %v2156, %v2158
  %v2160 = vrot.slane %v1935, 1
  %v2161 = vrot.slane %v1936, 1
  %v2162 = vsel %vm2079, %v2160, %v2161
  %v2163 = vrot.slane %v1937, 1
  %v2164 = vsel %vm2079, %v2161, %v2163
  %v2165 = vrot.slane %v1938, 1
  %v2166 = vrot.slane %v1939, 1
  %v2167 = vsel %vm2079, %v2165, %v2166
  %v2168 = vrot.slane %v1940, 1
  %v2169 = vsel %vm2079, %v2166, %v2168
  %v2170 = vrot.slane %v1941, 1
  %v2171 = vrot.slane %v1942, 1
  %v2172 = vsel %vm2079, %v2170, %v2171
  %v2173 = vrot.slane %v1943, 1
  %v2174 = vsel %vm2079, %v2171, %v2173
  %v2175 = vrot.slane %v1944, 1
  %v2176 = vrot.slane %v1945, 1
  %v2177 = vsel %vm2079, %v2175, %v2176
  %v2178 = vrot.slane %v1946, 1
  %v2179 = vsel %vm2079, %v2176, %v2178
  %v2180 = vrot.slane %v1947, 1
  %v2181 = vrot.slane %v1948, 1
  %v2182 = vsel %vm2079, %v2180, %v2181
  %v2183 = vrot.slane %v1949, 1
  %v2184 = vsel %vm2079, %v2181, %v2183
  %v2185 = vrot.slane %v1950, 1
  %v2186 = vrot.slane %v1951, 1
  %v2187 = vsel %vm2079, %v2185, %v2186
  %v2188 = vrot.slane %v1952, 1
  %v2189 = vsel %vm2079, %v2186, %v2188
  %v2190 = vrot.slane %v1953, 1
  %v2191 = vrot.slane %v1954, 1
  %v2192 = vsel %vm2079, %v2190, %v2191
  %v2193 = vrot.slane %v1955, 1
  %v2194 = vsel %vm2079, %v2191, %v2193
  %v2195 = vrot.slane %v1956, 1
  %v2196 = vrot.slane %v1957, 1
  %v2197 = vsel %vm2079, %v2195, %v2196
  %v2198 = vrot.slane %v1958, 1
  %v2199 = vsel %vm2079, %v2196, %v2198
  %v2200 = vrot.slane %v1959, 1
  %v2201 = vrot.slane %v1960, 1
  %v2202 = vsel %vm2079, %v2200, %v2201
  %v2203 = vrot.slane %v1961, 1
  %v2204 = vsel %vm2079, %v2201, %v2203
  %v2205 = vrot.slane %v1962, 1
  %v2206 = vrot.slane %v1963, 1
  %v2207 = vsel %vm2079, %v2205, %v2206
  %v2208 = vrot.slane %v1964, 1
  %v2209 = vsel %vm2079, %v2206, %v2208
  %v2210 = vrot.slane %v1965, 1
  %v2211 = vrot.slane %v1966, 1
  %v2212 = vsel %vm2079, %v2210, %v2211
  %v2213 = vrot.slane %v1967, 1
  %v2214 = vsel %vm2079, %v2211, %v2213
  %v2215 = vrot.slane %v1968, 1
  %v2216 = vrot.slane %v1969, 1
  %v2217 = vsel %vm2079, %v2215, %v2216
  %v2218 = vrot.slane %v1970, 1
  %v2219 = vsel %vm2079, %v2216, %v2218
  %v2220 = vrot.slane %v1971, 1
  %v2221 = vrot.slane %v1972, 1
  %v2222 = vsel %vm2079, %v2220, %v2221
  %v2223 = vrot.slane %v1973, 1
  %v2224 = vsel %vm2079, %v2221, %v2223
  %v2225 = vrot.slane %v1974, 1
  %v2226 = vrot.slane %v1975, 1
  %v2227 = vsel %vm2079, %v2225, %v2226
  %v2228 = vrot.slane %v1976, 1
  %v2229 = vsel %vm2079, %v2226, %v2228
  %v2230 = vrot.slane %v1977, 1
  %v2231 = vrot.slane %v1978, 1
  %v2232 = vsel %vm2079, %v2230, %v2231
  %v2233 = vrot.slane %v1979, 1
  %v2234 = vsel %vm2079, %v2231, %v2233
  %v2235 = vrot.slane %v1980, 1
  %v2236 = vrot.slane %v1981, 1
  %v2237 = vsel %vm2079, %v2235, %v2236
  %v2238 = vrot.slane %v1982, 1
  %v2239 = vsel %vm2079, %v2236, %v2238
  %2240 = vrot.lane.b32.xlu0 %v2082, 12
  %v2241 = vpop.permute.xlu0 %2240
  %2242 = vrot.lane.b32.xlu0 %v2084, 12
  %v2243 = vpop.permute.xlu0 %2242
  %2244 = vrot.lane.b32.xlu0 %v2087, 12
  %v2245 = vpop.permute.xlu0 %2244
  %2246 = vrot.lane.b32.xlu0 %v2089, 12
  %v2247 = vpop.permute.xlu0 %2246
  %2248 = vrot.lane.b32.xlu0 %v2092, 12
  %v2249 = vpop.permute.xlu0 %2248
  %2250 = vrot.lane.b32.xlu0 %v2094, 12
  %v2251 = vpop.permute.xlu0 %2250
  %2252 = vrot.lane.b32.xlu0 %v2097, 12
  %v2253 = vpop.permute.xlu0 %2252
  %2254 = vrot.lane.b32.xlu0 %v2099, 12
  %v2255 = vpop.permute.xlu0 %2254
  %2256 = vrot.lane.b32.xlu0 %v2102, 12
  %v2257 = vpop.permute.xlu0 %2256
  %2258 = vrot.lane.b32.xlu0 %v2104, 12
  %v2259 = vpop.permute.xlu0 %2258
  %2260 = vrot.lane.b32.xlu0 %v2107, 12
  %v2261 = vpop.permute.xlu0 %2260
  %2262 = vrot.lane.b32.xlu0 %v2109, 12
  %v2263 = vpop.permute.xlu0 %2262
  %2264 = vrot.lane.b32.xlu0 %v2112, 12
  %v2265 = vpop.permute.xlu0 %2264
  %2266 = vrot.lane.b32.xlu0 %v2114, 12
  %v2267 = vpop.permute.xlu0 %2266
  %2268 = vrot.lane.b32.xlu0 %v2117, 12
  %v2269 = vpop.permute.xlu0 %2268
  %2270 = vrot.lane.b32.xlu0 %v2119, 12
  %v2271 = vpop.permute.xlu0 %2270
  %2272 = vrot.lane.b32.xlu0 %v2122, 12
  %v2273 = vpop.permute.xlu0 %2272
  %2274 = vrot.lane.b32.xlu0 %v2124, 12
  %v2275 = vpop.permute.xlu0 %2274
  %2276 = vrot.lane.b32.xlu0 %v2127, 12
  %v2277 = vpop.permute.xlu0 %2276
  %2278 = vrot.lane.b32.xlu0 %v2129, 12
  %v2279 = vpop.permute.xlu0 %2278
  %2280 = vrot.lane.b32.xlu0 %v2132, 12
  %v2281 = vpop.permute.xlu0 %2280
  %2282 = vrot.lane.b32.xlu0 %v2134, 12
  %v2283 = vpop.permute.xlu0 %2282
  %2284 = vrot.lane.b32.xlu0 %v2137, 12
  %v2285 = vpop.permute.xlu0 %2284
  %2286 = vrot.lane.b32.xlu0 %v2139, 12
  %v2287 = vpop.permute.xlu0 %2286
  %2288 = vrot.lane.b32.xlu0 %v2142, 12
  %v2289 = vpop.permute.xlu0 %2288
  %2290 = vrot.lane.b32.xlu0 %v2144, 12
  %v2291 = vpop.permute.xlu0 %2290
  %2292 = vrot.lane.b32.xlu0 %v2147, 12
  %v2293 = vpop.permute.xlu0 %2292
  %2294 = vrot.lane.b32.xlu0 %v2149, 12
  %v2295 = vpop.permute.xlu0 %2294
  %2296 = vrot.lane.b32.xlu0 %v2152, 12
  %v2297 = vpop.permute.xlu0 %2296
  %2298 = vrot.lane.b32.xlu0 %v2154, 12
  %v2299 = vpop.permute.xlu0 %2298
  %2300 = vrot.lane.b32.xlu0 %v2157, 12
  %v2301 = vpop.permute.xlu0 %2300
  %2302 = vrot.lane.b32.xlu0 %v2159, 12
  %v2303 = vpop.permute.xlu0 %2302
  %2304 = vrot.lane.b32.xlu0 %v2162, 12
  %v2305 = vpop.permute.xlu0 %2304
  %2306 = vrot.lane.b32.xlu0 %v2164, 12
  %v2307 = vpop.permute.xlu0 %2306
  %2308 = vrot.lane.b32.xlu0 %v2167, 12
  %v2309 = vpop.permute.xlu0 %2308
  %2310 = vrot.lane.b32.xlu0 %v2169, 12
  %v2311 = vpop.permute.xlu0 %2310
  %2312 = vrot.lane.b32.xlu0 %v2172, 12
  %v2313 = vpop.permute.xlu0 %2312
  %2314 = vrot.lane.b32.xlu0 %v2174, 12
  %v2315 = vpop.permute.xlu0 %2314
  %2316 = vrot.lane.b32.xlu0 %v2177, 12
  %v2317 = vpop.permute.xlu0 %2316
  %2318 = vrot.lane.b32.xlu0 %v2179, 12
  %v2319 = vpop.permute.xlu0 %2318
  %2320 = vrot.lane.b32.xlu0 %v2182, 12
  %v2321 = vpop.permute.xlu0 %2320
  %2322 = vrot.lane.b32.xlu0 %v2184, 12
  %v2323 = vpop.permute.xlu0 %2322
  %2324 = vrot.lane.b32.xlu0 %v2187, 12
  %v2325 = vpop.permute.xlu0 %2324
  %2326 = vrot.lane.b32.xlu0 %v2189, 12
  %v2327 = vpop.permute.xlu0 %2326
  %2328 = vrot.lane.b32.xlu0 %v2192, 12
  %v2329 = vpop.permute.xlu0 %2328
  %2330 = vrot.lane.b32.xlu0 %v2194, 12
  %v2331 = vpop.permute.xlu0 %2330
  %2332 = vrot.lane.b32.xlu0 %v2197, 12
  %v2333 = vpop.permute.xlu0 %2332
  %2334 = vrot.lane.b32.xlu0 %v2199, 12
  %v2335 = vpop.permute.xlu0 %2334
  %2336 = vrot.lane.b32.xlu0 %v2202, 12
  %v2337 = vpop.permute.xlu0 %2336
  %2338 = vrot.lane.b32.xlu0 %v2204, 12
  %v2339 = vpop.permute.xlu0 %2338
  %2340 = vrot.lane.b32.xlu0 %v2207, 12
  %v2341 = vpop.permute.xlu0 %2340
  %2342 = vrot.lane.b32.xlu0 %v2209, 12
  %v2343 = vpop.permute.xlu0 %2342
  %2344 = vrot.lane.b32.xlu0 %v2212, 12
  %v2345 = vpop.permute.xlu0 %2344
  %2346 = vrot.lane.b32.xlu0 %v2214, 12
  %v2347 = vpop.permute.xlu0 %2346
  %2348 = vrot.lane.b32.xlu0 %v2217, 12
  %v2349 = vpop.permute.xlu0 %2348
  %2350 = vrot.lane.b32.xlu0 %v2219, 12
  %v2351 = vpop.permute.xlu0 %2350
  %2352 = vrot.lane.b32.xlu0 %v2222, 12
  %v2353 = vpop.permute.xlu0 %2352
  %2354 = vrot.lane.b32.xlu0 %v2224, 12
  %v2355 = vpop.permute.xlu0 %2354
  %2356 = vrot.lane.b32.xlu0 %v2227, 12
  %v2357 = vpop.permute.xlu0 %2356
  %2358 = vrot.lane.b32.xlu0 %v2229, 12
  %v2359 = vpop.permute.xlu0 %2358
  %2360 = vrot.lane.b32.xlu0 %v2232, 12
  %v2361 = vpop.permute.xlu0 %2360
  %2362 = vrot.lane.b32.xlu0 %v2234, 12
  %v2363 = vpop.permute.xlu0 %2362
  %2364 = vrot.lane.b32.xlu0 %v2237, 12
  %v2365 = vpop.permute.xlu0 %2364
  %2366 = vrot.lane.b32.xlu0 %v2239, 12
  %v2367 = vpop.permute.xlu0 %2366
  %vm2432 = vcmask 1045504
  %v2433 = vrot.slane %v1887, 2
  %v2434 = vrot.slane %v1888, 2
  %v2435 = vsel %vm2432, %v2433, %v2434
  %v2436 = vrot.slane %v1889, 2
  %v2437 = vsel %vm2432, %v2434, %v2436
  %v2438 = vrot.slane %v1890, 2
  %v2439 = vrot.slane %v1891, 2
  %v2440 = vsel %vm2432, %v2438, %v2439
  %v2441 = vrot.slane %v1892, 2
  %v2442 = vsel %vm2432, %v2439, %v2441
  %v2443 = vrot.slane %v1893, 2
  %v2444 = vrot.slane %v1894, 2
  %v2445 = vsel %vm2432, %v2443, %v2444
  %v2446 = vrot.slane %v1895, 2
  %v2447 = vsel %vm2432, %v2444, %v2446
  %v2448 = vrot.slane %v1896, 2
  %v2449 = vrot.slane %v1897, 2
  %v2450 = vsel %vm2432, %v2448, %v2449
  %v2451 = vrot.slane %v1898, 2
  %v2452 = vsel %vm2432, %v2449, %v2451
  %v2453 = vrot.slane %v1899, 2
  %v2454 = vrot.slane %v1900, 2
  %v2455 = vsel %vm2432, %v2453, %v2454
  %v2456 = vrot.slane %v1901, 2
  %v2457 = vsel %vm2432, %v2454, %v2456
  %v2458 = vrot.slane %v1902, 2
  %v2459 = vrot.slane %v1903, 2
  %v2460 = vsel %vm2432, %v2458, %v2459
  %v2461 = vrot.slane %v1904, 2
  %v2462 = vsel %vm2432, %v2459, %v2461
  %v2463 = vrot.slane %v1905, 2
  %v2464 = vrot.slane %v1906, 2
  %v2465 = vsel %vm2432, %v2463, %v2464
  %v2466 = vrot.slane %v1907, 2
  %v2467 = vsel %vm2432, %v2464, %v2466
  %v2468 = vrot.slane %v1908, 2
  %v2469 = vrot.slane %v1909, 2
  %v2470 = vsel %vm2432, %v2468, %v2469
  %v2471 = vrot.slane %v1910, 2
  %v2472 = vsel %vm2432, %v2469, %v2471
  %v2473 = vrot.slane %v1911, 2
  %v2474 = vrot.slane %v1912, 2
  %v2475 = vsel %vm2432, %v2473, %v2474
  %v2476 = vrot.slane %v1913, 2
  %v2477 = vsel %vm2432, %v2474, %v2476
  %v2478 = vrot.slane %v1914, 2
  %v2479 = vrot.slane %v1915, 2
  %v2480 = vsel %vm2432, %v2478, %v2479
  %v2481 = vrot.slane %v1916, 2
  %v2482 = vsel %vm2432, %v2479, %v2481
  %v2483 = vrot.slane %v1917, 2
  %v2484 = vrot.slane %v1918, 2
  %v2485 = vsel %vm2432, %v2483, %v2484
  %v2486 = vrot.slane %v1919, 2
  %v2487 = vsel %vm2432, %v2484, %v2486
  %v2488 = vrot.slane %v1920, 2
  %v2489 = vrot.slane %v1921, 2
  %v2490 = vsel %vm2432, %v2488, %v2489
  %v2491 = vrot.slane %v1922, 2
  %v2492 = vsel %vm2432, %v2489, %v2491
  %v2493 = vrot.slane %v1923, 2
  %v2494 = vrot.slane %v1924, 2
  %v2495 = vsel %vm2432, %v2493, %v2494
  %v2496 = vrot.slane %v1925, 2
  %v2497 = vsel %vm2432, %v2494, %v2496
  %v2498 = vrot.slane %v1926, 2
  %v2499 = vrot.slane %v1927, 2
  %v2500 = vsel %vm2432, %v2498, %v2499
  %v2501 = vrot.slane %v1928, 2
  %v2502 = vsel %vm2432, %v2499, %v2501
  %v2503 = vrot.slane %v1929, 2
  %v2504 = vrot.slane %v1930, 2
  %v2505 = vsel %vm2432, %v2503, %v2504
  %v2506 = vrot.slane %v1931, 2
  %v2507 = vsel %vm2432, %v2504, %v2506
  %v2508 = vrot.slane %v1932, 2
  %v2509 = vrot.slane %v1933, 2
  %v2510 = vsel %vm2432, %v2508, %v2509
  %v2511 = vrot.slane %v1934, 2
  %v2512 = vsel %vm2432, %v2509, %v2511
  %v2513 = vrot.slane %v1935, 2
  %v2514 = vrot.slane %v1936, 2
  %v2515 = vsel %vm2432, %v2513, %v2514
  %v2516 = vrot.slane %v1937, 2
  %v2517 = vsel %vm2432, %v2514, %v2516
  %v2518 = vrot.slane %v1938, 2
  %v2519 = vrot.slane %v1939, 2
  %v2520 = vsel %vm2432, %v2518, %v2519
  %v2521 = vrot.slane %v1940, 2
  %v2522 = vsel %vm2432, %v2519, %v2521
  %v2523 = vrot.slane %v1941, 2
  %v2524 = vrot.slane %v1942, 2
  %v2525 = vsel %vm2432, %v2523, %v2524
  %v2526 = vrot.slane %v1943, 2
  %v2527 = vsel %vm2432, %v2524, %v2526
  %v2528 = vrot.slane %v1944, 2
  %v2529 = vrot.slane %v1945, 2
  %v2530 = vsel %vm2432, %v2528, %v2529
  %v2531 = vrot.slane %v1946, 2
  %v2532 = vsel %vm2432, %v2529, %v2531
  %v2533 = vrot.slane %v1947, 2
  %v2534 = vrot.slane %v1948, 2
  %v2535 = vsel %vm2432, %v2533, %v2534
  %v2536 = vrot.slane %v1949, 2
  %v2537 = vsel %vm2432, %v2534, %v2536
  %v2538 = vrot.slane %v1950, 2
  %v2539 = vrot.slane %v1951, 2
  %v2540 = vsel %vm2432, %v2538, %v2539
  %v2541 = vrot.slane %v1952, 2
  %v2542 = vsel %vm2432, %v2539, %v2541
  %v2543 = vrot.slane %v1953, 2
  %v2544 = vrot.slane %v1954, 2
  %v2545 = vsel %vm2432, %v2543, %v2544
  %v2546 = vrot.slane %v1955, 2
  %v2547 = vsel %vm2432, %v2544, %v2546
  %v2548 = vrot.slane %v1956, 2
  %v2549 = vrot.slane %v1957, 2
  %v2550 = vsel %vm2432, %v2548, %v2549
  %v2551 = vrot.slane %v1958, 2
  %v2552 = vsel %vm2432, %v2549, %v2551
  %v2553 = vrot.slane %v1959, 2
  %v2554 = vrot.slane %v1960, 2
  %v2555 = vsel %vm2432, %v2553, %v2554
  %v2556 = vrot.slane %v1961, 2
  %v2557 = vsel %vm2432, %v2554, %v2556
  %v2558 = vrot.slane %v1962, 2
  %v2559 = vrot.slane %v1963, 2
  %v2560 = vsel %vm2432, %v2558, %v2559
  %v2561 = vrot.slane %v1964, 2
  %v2562 = vsel %vm2432, %v2559, %v2561
  %v2563 = vrot.slane %v1965, 2
  %v2564 = vrot.slane %v1966, 2
  %v2565 = vsel %vm2432, %v2563, %v2564
  %v2566 = vrot.slane %v1967, 2
  %v2567 = vsel %vm2432, %v2564, %v2566
  %v2568 = vrot.slane %v1968, 2
  %v2569 = vrot.slane %v1969, 2
  %v2570 = vsel %vm2432, %v2568, %v2569
  %v2571 = vrot.slane %v1970, 2
  %v2572 = vsel %vm2432, %v2569, %v2571
  %v2573 = vrot.slane %v1971, 2
  %v2574 = vrot.slane %v1972, 2
  %v2575 = vsel %vm2432, %v2573, %v2574
  %v2576 = vrot.slane %v1973, 2
  %v2577 = vsel %vm2432, %v2574, %v2576
  %v2578 = vrot.slane %v1974, 2
  %v2579 = vrot.slane %v1975, 2
  %v2580 = vsel %vm2432, %v2578, %v2579
  %v2581 = vrot.slane %v1976, 2
  %v2582 = vsel %vm2432, %v2579, %v2581
  %v2583 = vrot.slane %v1977, 2
  %v2584 = vrot.slane %v1978, 2
  %v2585 = vsel %vm2432, %v2583, %v2584
  %v2586 = vrot.slane %v1979, 2
  %v2587 = vsel %vm2432, %v2584, %v2586
  %v2588 = vrot.slane %v1980, 2
  %v2589 = vrot.slane %v1981, 2
  %v2590 = vsel %vm2432, %v2588, %v2589
  %v2591 = vrot.slane %v1982, 2
  %v2592 = vsel %vm2432, %v2589, %v2591
  %2593 = vrot.lane.b32.xlu0 %v2435, 24
  %v2594 = vpop.permute.xlu0 %2593
  %2595 = vrot.lane.b32.xlu0 %v2437, 24
  %v2596 = vpop.permute.xlu0 %2595
  %2597 = vrot.lane.b32.xlu0 %v2440, 24
  %v2598 = vpop.permute.xlu0 %2597
  %2599 = vrot.lane.b32.xlu0 %v2442, 24
  %v2600 = vpop.permute.xlu0 %2599
  %2601 = vrot.lane.b32.xlu0 %v2445, 24
  %v2602 = vpop.permute.xlu0 %2601
  %2603 = vrot.lane.b32.xlu0 %v2447, 24
  %v2604 = vpop.permute.xlu0 %2603
  %2605 = vrot.lane.b32.xlu0 %v2450, 24
  %v2606 = vpop.permute.xlu0 %2605
  %2607 = vrot.lane.b32.xlu0 %v2452, 24
  %v2608 = vpop.permute.xlu0 %2607
  %2609 = vrot.lane.b32.xlu0 %v2455, 24
  %v2610 = vpop.permute.xlu0 %2609
  %2611 = vrot.lane.b32.xlu0 %v2457, 24
  %v2612 = vpop.permute.xlu0 %2611
  %2613 = vrot.lane.b32.xlu0 %v2460, 24
  %v2614 = vpop.permute.xlu0 %2613
  %2615 = vrot.lane.b32.xlu0 %v2462, 24
  %v2616 = vpop.permute.xlu0 %2615
  %2617 = vrot.lane.b32.xlu0 %v2465, 24
  %v2618 = vpop.permute.xlu0 %2617
  %2619 = vrot.lane.b32.xlu0 %v2467, 24
  %v2620 = vpop.permute.xlu0 %2619
  %2621 = vrot.lane.b32.xlu0 %v2470, 24
  %v2622 = vpop.permute.xlu0 %2621
  %2623 = vrot.lane.b32.xlu0 %v2472, 24
  %v2624 = vpop.permute.xlu0 %2623
  %2625 = vrot.lane.b32.xlu0 %v2475, 24
  %v2626 = vpop.permute.xlu0 %2625
  %2627 = vrot.lane.b32.xlu0 %v2477, 24
  %v2628 = vpop.permute.xlu0 %2627
  %2629 = vrot.lane.b32.xlu0 %v2480, 24
  %v2630 = vpop.permute.xlu0 %2629
  %2631 = vrot.lane.b32.xlu0 %v2482, 24
  %v2632 = vpop.permute.xlu0 %2631
  %2633 = vrot.lane.b32.xlu0 %v2485, 24
  %v2634 = vpop.permute.xlu0 %2633
  %2635 = vrot.lane.b32.xlu0 %v2487, 24
  %v2636 = vpop.permute.xlu0 %2635
  %2637 = vrot.lane.b32.xlu0 %v2490, 24
  %v2638 = vpop.permute.xlu0 %2637
  %2639 = vrot.lane.b32.xlu0 %v2492, 24
  %v2640 = vpop.permute.xlu0 %2639
  %2641 = vrot.lane.b32.xlu0 %v2495, 24
  %v2642 = vpop.permute.xlu0 %2641
  %2643 = vrot.lane.b32.xlu0 %v2497, 24
  %v2644 = vpop.permute.xlu0 %2643
  %2645 = vrot.lane.b32.xlu0 %v2500, 24
  %v2646 = vpop.permute.xlu0 %2645
  %2647 = vrot.lane.b32.xlu0 %v2502, 24
  %v2648 = vpop.permute.xlu0 %2647
  %2649 = vrot.lane.b32.xlu0 %v2505, 24
  %v2650 = vpop.permute.xlu0 %2649
  %2651 = vrot.lane.b32.xlu0 %v2507, 24
  %v2652 = vpop.permute.xlu0 %2651
  %2653 = vrot.lane.b32.xlu0 %v2510, 24
  %v2654 = vpop.permute.xlu0 %2653
  %2655 = vrot.lane.b32.xlu0 %v2512, 24
  %v2656 = vpop.permute.xlu0 %2655
  %2657 = vrot.lane.b32.xlu0 %v2515, 24
  %v2658 = vpop.permute.xlu0 %2657
  %2659 = vrot.lane.b32.xlu0 %v2517, 24
  %v2660 = vpop.permute.xlu0 %2659
  %2661 = vrot.lane.b32.xlu0 %v2520, 24
  %v2662 = vpop.permute.xlu0 %2661
  %2663 = vrot.lane.b32.xlu0 %v2522, 24
  %v2664 = vpop.permute.xlu0 %2663
  %2665 = vrot.lane.b32.xlu0 %v2525, 24
  %v2666 = vpop.permute.xlu0 %2665
  %2667 = vrot.lane.b32.xlu0 %v2527, 24
  %v2668 = vpop.permute.xlu0 %2667
  %2669 = vrot.lane.b32.xlu0 %v2530, 24
  %v2670 = vpop.permute.xlu0 %2669
  %2671 = vrot.lane.b32.xlu0 %v2532, 24
  %v2672 = vpop.permute.xlu0 %2671
  %2673 = vrot.lane.b32.xlu0 %v2535, 24
  %v2674 = vpop.permute.xlu0 %2673
  %2675 = vrot.lane.b32.xlu0 %v2537, 24
  %v2676 = vpop.permute.xlu0 %2675
  %2677 = vrot.lane.b32.xlu0 %v2540, 24
  %v2678 = vpop.permute.xlu0 %2677
  %2679 = vrot.lane.b32.xlu0 %v2542, 24
  %v2680 = vpop.permute.xlu0 %2679
  %2681 = vrot.lane.b32.xlu0 %v2545, 24
  %v2682 = vpop.permute.xlu0 %2681
  %2683 = vrot.lane.b32.xlu0 %v2547, 24
  %v2684 = vpop.permute.xlu0 %2683
  %2685 = vrot.lane.b32.xlu0 %v2550, 24
  %v2686 = vpop.permute.xlu0 %2685
  %2687 = vrot.lane.b32.xlu0 %v2552, 24
  %v2688 = vpop.permute.xlu0 %2687
  %2689 = vrot.lane.b32.xlu0 %v2555, 24
  %v2690 = vpop.permute.xlu0 %2689
  %2691 = vrot.lane.b32.xlu0 %v2557, 24
  %v2692 = vpop.permute.xlu0 %2691
  %2693 = vrot.lane.b32.xlu0 %v2560, 24
  %v2694 = vpop.permute.xlu0 %2693
  %2695 = vrot.lane.b32.xlu0 %v2562, 24
  %v2696 = vpop.permute.xlu0 %2695
  %2697 = vrot.lane.b32.xlu0 %v2565, 24
  %v2698 = vpop.permute.xlu0 %2697
  %2699 = vrot.lane.b32.xlu0 %v2567, 24
  %v2700 = vpop.permute.xlu0 %2699
  %2701 = vrot.lane.b32.xlu0 %v2570, 24
  %v2702 = vpop.permute.xlu0 %2701
  %2703 = vrot.lane.b32.xlu0 %v2572, 24
  %v2704 = vpop.permute.xlu0 %2703
  %2705 = vrot.lane.b32.xlu0 %v2575, 24
  %v2706 = vpop.permute.xlu0 %2705
  %2707 = vrot.lane.b32.xlu0 %v2577, 24
  %v2708 = vpop.permute.xlu0 %2707
  %2709 = vrot.lane.b32.xlu0 %v2580, 24
  %v2710 = vpop.permute.xlu0 %2709
  %2711 = vrot.lane.b32.xlu0 %v2582, 24
  %v2712 = vpop.permute.xlu0 %2711
  %2713 = vrot.lane.b32.xlu0 %v2585, 24
  %v2714 = vpop.permute.xlu0 %2713
  %2715 = vrot.lane.b32.xlu0 %v2587, 24
  %v2716 = vpop.permute.xlu0 %2715
  %2717 = vrot.lane.b32.xlu0 %v2590, 24
  %v2718 = vpop.permute.xlu0 %2717
  %2719 = vrot.lane.b32.xlu0 %v2592, 24
  %v2720 = vpop.permute.xlu0 %2719
  %vm2785 = vcmask 97280
  %v2786 = vsel %vm2785, %v1887, %v2241
  %v2787 = vsel %vm2785, %v1888, %v2243
  %v2788 = vsel %vm2785, %v1890, %v2245
  %v2789 = vsel %vm2785, %v1891, %v2247
  %v2790 = vsel %vm2785, %v1893, %v2249
  %v2791 = vsel %vm2785, %v1894, %v2251
  %v2792 = vsel %vm2785, %v1896, %v2253
  %v2793 = vsel %vm2785, %v1897, %v2255
  %v2794 = vsel %vm2785, %v1899, %v2257
  %v2795 = vsel %vm2785, %v1900, %v2259
  %v2796 = vsel %vm2785, %v1902, %v2261
  %v2797 = vsel %vm2785, %v1903, %v2263
  %v2798 = vsel %vm2785, %v1905, %v2265
  %v2799 = vsel %vm2785, %v1906, %v2267
  %v2800 = vsel %vm2785, %v1908, %v2269
  %v2801 = vsel %vm2785, %v1909, %v2271
  %v2802 = vsel %vm2785, %v1911, %v2273
  %v2803 = vsel %vm2785, %v1912, %v2275
  %v2804 = vsel %vm2785, %v1914, %v2277
  %v2805 = vsel %vm2785, %v1915, %v2279
  %v2806 = vsel %vm2785, %v1917, %v2281
  %v2807 = vsel %vm2785, %v1918, %v2283
  %v2808 = vsel %vm2785, %v1920, %v2285
  %v2809 = vsel %vm2785, %v1921, %v2287
  %v2810 = vsel %vm2785, %v1923, %v2289
  %v2811 = vsel %vm2785, %v1924, %v2291
  %v2812 = vsel %vm2785, %v1926, %v2293
  %v2813 = vsel %vm2785, %v1927, %v2295
  %v2814 = vsel %vm2785, %v1929, %v2297
  %v2815 = vsel %vm2785, %v1930, %v2299
  %v2816 = vsel %vm2785, %v1932, %v2301
  %v2817 = vsel %vm2785, %v1933, %v2303
  %v2818 = vsel %vm2785, %v1935, %v2305
  %v2819 = vsel %vm2785, %v1936, %v2307
  %v2820 = vsel %vm2785, %v1938, %v2309
  %v2821 = vsel %vm2785, %v1939, %v2311
  %v2822 = vsel %vm2785, %v1941, %v2313
  %v2823 = vsel %vm2785, %v1942, %v2315
  %v2824 = vsel %vm2785, %v1944, %v2317
  %v2825 = vsel %vm2785, %v1945, %v2319
  %v2826 = vsel %vm2785, %v1947, %v2321
  %v2827 = vsel %vm2785, %v1948, %v2323
  %v2828 = vsel %vm2785, %v1950, %v2325
  %v2829 = vsel %vm2785, %v1951, %v2327
  %v2830 = vsel %vm2785, %v1953, %v2329
  %v2831 = vsel %vm2785, %v1954, %v2331
  %v2832 = vsel %vm2785, %v1956, %v2333
  %v2833 = vsel %vm2785, %v1957, %v2335
  %v2834 = vsel %vm2785, %v1959, %v2337
  %v2835 = vsel %vm2785, %v1960, %v2339
  %v2836 = vsel %vm2785, %v1962, %v2341
  %v2837 = vsel %vm2785, %v1963, %v2343
  %v2838 = vsel %vm2785, %v1965, %v2345
  %v2839 = vsel %vm2785, %v1966, %v2347
  %v2840 = vsel %vm2785, %v1968, %v2349
  %v2841 = vsel %vm2785, %v1969, %v2351
  %v2842 = vsel %vm2785, %v1971, %v2353
  %v2843 = vsel %vm2785, %v1972, %v2355
  %v2844 = vsel %vm2785, %v1974, %v2357
  %v2845 = vsel %vm2785, %v1975, %v2359
  %v2846 = vsel %vm2785, %v1977, %v2361
  %v2847 = vsel %vm2785, %v1978, %v2363
  %v2848 = vsel %vm2785, %v1980, %v2365
  %v2849 = vsel %vm2785, %v1981, %v2367
  %vm2850 = vcmask 195584
  %v2851 = vsel %vm2850, %v2786, %v2594
  %v2852 = vsel %vm2850, %v2787, %v2596
  %v2853 = vsel %vm2850, %v2788, %v2598
  %v2854 = vsel %vm2850, %v2789, %v2600
  %v2855 = vsel %vm2850, %v2790, %v2602
  %v2856 = vsel %vm2850, %v2791, %v2604
  %v2857 = vsel %vm2850, %v2792, %v2606
  %v2858 = vsel %vm2850, %v2793, %v2608
  %v2859 = vsel %vm2850, %v2794, %v2610
  %v2860 = vsel %vm2850, %v2795, %v2612
  %v2861 = vsel %vm2850, %v2796, %v2614
  %v2862 = vsel %vm2850, %v2797, %v2616
  %v2863 = vsel %vm2850, %v2798, %v2618
  %v2864 = vsel %vm2850, %v2799, %v2620
  %v2865 = vsel %vm2850, %v2800, %v2622
  %v2866 = vsel %vm2850, %v2801, %v2624
  %v2867 = vsel %vm2850, %v2802, %v2626
  %v2868 = vsel %vm2850, %v2803, %v2628
  %v2869 = vsel %vm2850, %v2804, %v2630
  %v2870 = vsel %vm2850, %v2805, %v2632
  %v2871 = vsel %vm2850, %v2806, %v2634
  %v2872 = vsel %vm2850, %v2807, %v2636
  %v2873 = vsel %vm2850, %v2808, %v2638
  %v2874 = vsel %vm2850, %v2809, %v2640
  %v2875 = vsel %vm2850, %v2810, %v2642
  %v2876 = vsel %vm2850, %v2811, %v2644
  %v2877 = vsel %vm2850, %v2812, %v2646
  %v2878 = vsel %vm2850, %v2813, %v2648
  %v2879 = vsel %vm2850, %v2814, %v2650
  %v2880 = vsel %vm2850, %v2815, %v2652
  %v2881 = vsel %vm2850, %v2816, %v2654
  %v2882 = vsel %vm2850, %v2817, %v2656
  %v2883 = vsel %vm2850, %v2818, %v2658
  %v2884 = vsel %vm2850, %v2819, %v2660
  %v2885 = vsel %vm2850, %v2820, %v2662
  %v2886 = vsel %vm2850, %v2821, %v2664
  %v2887 = vsel %vm2850, %v2822, %v2666
  %v2888 = vsel %vm2850, %v2823, %v2668
  %v2889 = vsel %vm2850, %v2824, %v2670
  %v2890 = vsel %vm2850, %v2825, %v2672
  %v2891 = vsel %vm2850, %v2826, %v2674
  %v2892 = vsel %vm2850, %v2827, %v2676
  %v2893 = vsel %vm2850, %v2828, %v2678
  %v2894 = vsel %vm2850, %v2829, %v2680
  %v2895 = vsel %vm2850, %v2830, %v2682
  %v2896 = vsel %vm2850, %v2831, %v2684
  %v2897 = vsel %vm2850, %v2832, %v2686
  %v2898 = vsel %vm2850, %v2833, %v2688
  %v2899 = vsel %vm2850, %v2834, %v2690
  %v2900 = vsel %vm2850, %v2835, %v2692
  %v2901 = vsel %vm2850, %v2836, %v2694
  %v2902 = vsel %vm2850, %v2837, %v2696
  %v2903 = vsel %vm2850, %v2838, %v2698
  %v2904 = vsel %vm2850, %v2839, %v2700
  %v2905 = vsel %vm2850, %v2840, %v2702
  %v2906 = vsel %vm2850, %v2841, %v2704
  %v2907 = vsel %vm2850, %v2842, %v2706
  %v2908 = vsel %vm2850, %v2843, %v2708
  %v2909 = vsel %vm2850, %v2844, %v2710
  %v2910 = vsel %vm2850, %v2845, %v2712
  %v2911 = vsel %vm2850, %v2846, %v2714
  %v2912 = vsel %vm2850, %v2847, %v2716
  %v2913 = vsel %vm2850, %v2848, %v2718
  %v2914 = vsel %vm2850, %v2849, %v2720
  %v2916 = vlaneseq
  %v2917 = vshrl.u32 %v2916, 7
  %v2918 = vsub.s32 0, %v2917
  %v2919 = vrot.slane %v334, %v2918
  %vm2921 = vcmask 293888
  %v2923 = vsel %vm2921, %v2851, 0
  %v2926 = vsel %vm2921, %v2852, 0
  %v2929 = vsel %vm2921, %v2853, 0
  %v2932 = vsel %vm2921, %v2854, 0
  %v2935 = vsel %vm2921, %v2855, 0
  %v2938 = vsel %vm2921, %v2856, 0
  %v2941 = vsel %vm2921, %v2857, 0
  %v2944 = vsel %vm2921, %v2858, 0
  %v2947 = vsel %vm2921, %v2859, 0
  %v2950 = vsel %vm2921, %v2860, 0
  %v2953 = vsel %vm2921, %v2861, 0
  %v2956 = vsel %vm2921, %v2862, 0
  %v2959 = vsel %vm2921, %v2863, 0
  %v2962 = vsel %vm2921, %v2864, 0
  %v2965 = vsel %vm2921, %v2865, 0
  %v2968 = vsel %vm2921, %v2866, 0
  %v2971 = vsel %vm2921, %v2867, 0
  %v2974 = vsel %vm2921, %v2868, 0
  %v2977 = vsel %vm2921, %v2869, 0
  %v2980 = vsel %vm2921, %v2870, 0
  %v2983 = vsel %vm2921, %v2871, 0
  %v2986 = vsel %vm2921, %v2872, 0
  %v2989 = vsel %vm2921, %v2873, 0
  %v2992 = vsel %vm2921, %v2874, 0
  %v2995 = vsel %vm2921, %v2875, 0
  %v2998 = vsel %vm2921, %v2876, 0
  %v3001 = vsel %vm2921, %v2877, 0
  %v3004 = vsel %vm2921, %v2878, 0
  %v3007 = vsel %vm2921, %v2879, 0
  %v3010 = vsel %vm2921, %v2880, 0
  %v3013 = vsel %vm2921, %v2881, 0
  %v3016 = vsel %vm2921, %v2882, 0
  %v3019 = vsel %vm2921, %v2883, 0
  %v3022 = vsel %vm2921, %v2884, 0
  %v3025 = vsel %vm2921, %v2885, 0
  %v3028 = vsel %vm2921, %v2886, 0
  %v3031 = vsel %vm2921, %v2887, 0
  %v3034 = vsel %vm2921, %v2888, 0
  %v3037 = vsel %vm2921, %v2889, 0
  %v3040 = vsel %vm2921, %v2890, 0
  %v3043 = vsel %vm2921, %v2891, 0
  %v3046 = vsel %vm2921, %v2892, 0
  %v3049 = vsel %vm2921, %v2893, 0
  %v3052 = vsel %vm2921, %v2894, 0
  %v3055 = vsel %vm2921, %v2895, 0
  %v3058 = vsel %vm2921, %v2896, 0
  %v3061 = vsel %vm2921, %v2897, 0
  %v3064 = vsel %vm2921, %v2898, 0
  %v3067 = vsel %vm2921, %v2899, 0
  %v3070 = vsel %vm2921, %v2900, 0
  %v3073 = vsel %vm2921, %v2901, 0
  %v3076 = vsel %vm2921, %v2902, 0
  %v3079 = vsel %vm2921, %v2903, 0
  %v3082 = vsel %vm2921, %v2904, 0
  %v3085 = vsel %vm2921, %v2905, 0
  %v3088 = vsel %vm2921, %v2906, 0
  %v3091 = vsel %vm2921, %v2907, 0
  %v3094 = vsel %vm2921, %v2908, 0
  %v3097 = vsel %vm2921, %v2909, 0
  %v3100 = vsel %vm2921, %v2910, 0
  %v3103 = vsel %vm2921, %v2911, 0
  %v3106 = vsel %vm2921, %v2912, 0
  %v3109 = vsel %vm2921, %v2913, 0
  %v3112 = vsel %vm2921, %v2914, 0
  %vm3114 = vcmask 1043456
  %v3116 = vsel %vm3114, %v333, 0
  %3118 = vmatprep.subr.mxu0 0.0
  %3119 = vmatpush1.msra.mxu0 %v329
  %3120 = vmatprep.subr.mxu0 0.0
  %3121 = vmatpush1.msra.mxu0 %v330
  %3122 = vmatprep.subr.mxu0 0.0
  %3123 = vmatpush1.msra.mxu0 %v331
  %3124 = vmatprep.subr.mxu0 0.0
  %3125 = vmatpush1.msra.mxu0 %v332
  %3126 = vmatprep.subr.mxu0 0.0
  %3127 = vmatpush1.msra.mxu0 %v3116
  %3128 = vmatprep.subr.mxu0 0.0
  %3129 = vmatpush1.msra.mxu0 0.0
  %3130 = vmatprep.subr.mxu0 0.0
  %3131 = vmatpush1.msra.mxu0 0.0
  %3132 = vmatprep.subr.mxu0 0.0
  %3133 = vmatpush1.msra.mxu0 0.0
  %3134 = vmatprep.subr.mxu0 0.0
  %3135 = vmatpush1.msra.mxu0 0.0
  %3136 = vmatprep.subr.mxu0 0.0
  %3137 = vmatpush1.msra.mxu0 0.0
  %3138 = vmatprep.subr.mxu0 0.0
  %3139 = vmatpush1.msra.mxu0 0.0
  %3140 = vmatprep.subr.mxu0 0.0
  %3141 = vmatpush1.msra.mxu0 0.0
  %3142 = vmatprep.subr.mxu0 0.0
  %3143 = vmatpush1.msra.mxu0 0.0
  %3144 = vmatprep.subr.mxu0 0.0
  %3145 = vmatpush1.msra.mxu0 0.0
  %3146 = vmatprep.subr.mxu0 0.0
  %3147 = vmatpush1.msra.mxu0 0.0
  %3148 = vmatprep.subr.mxu0 0.0
  %3149 = vmatpush1.msra.mxu0 0.0
  %3150 = vmatprep.subr.mxu0 0.0
  %3151 = vmatpush1.msra.mxu0 0.0
  %3152 = vmatprep.subr.mxu0 0.0
  %3153 = vmatpush1.msra.mxu0 0.0
  %3154 = vmatprep.subr.mxu0 0.0
  %3155 = vmatpush1.msra.mxu0 0.0
  %3156 = vmatprep.subr.mxu0 0.0
  %3157 = vmatpush1.msra.mxu0 0.0
  %3158 = vmatprep.subr.mxu0 0.0
  %3159 = vmatpush1.msra.mxu0 0.0
  %3160 = vmatprep.subr.mxu0 0.0
  %3161 = vmatpush1.msra.mxu0 0.0
  %3162 = vmatprep.subr.mxu0 0.0
  %3163 = vmatpush1.msra.mxu0 0.0
  %3164 = vmatprep.subr.mxu0 0.0
  %3165 = vmatpush1.msra.mxu0 0.0
  %3166 = vmatprep.subr.mxu0 0.0
  %3167 = vmatpush1.msra.mxu0 0.0
  %3168 = vmatprep.subr.mxu0 0.0
  %3169 = vmatpush1.msra.mxu0 0.0
  %3170 = vmatprep.subr.mxu0 0.0
  %3171 = vmatpush1.msra.mxu0 0.0
  %3172 = vmatprep.subr.mxu0 0.0
  %3173 = vmatpush1.msra.mxu0 0.0
  %3174 = vmatprep.subr.mxu0 0.0
  %3175 = vmatpush1.msra.mxu0 0.0
  %3176 = vmatprep.subr.mxu0 0.0
  %3177 = vmatpush1.msra.mxu0 0.0
  %3178 = vmatprep.subr.mxu0 0.0
  %3179 = vmatpush1.msra.mxu0 0.0
  %3180 = vmatprep.subr.mxu0 0.0
  %3181 = vmatpush1.msra.mxu0 0.0
  %3182 = vmatprep.mubr.f32.mxu0 0.0
  %3183 = vmatmul.mubr.f32.gmra.mrb[0].mxu0 %v2923
  %v3184 = vpop.f32.mrb[0].mxu0
  %v3185 = vadd.f32 %v2919, %v3184
  %v3186 = vpop.f32.mrb[0].mxu0
  %3187 = vmatprep.mubr.f32.mxu0 0.0
  %3188 = vmatmul.mubr.f32.gmra.mrb[0].mxu0 %v2926
  %v3189 = vpop.f32.mrb[0].mxu0
  %v3190 = vadd.f32 %v2919, %v3189
  %v3191 = vpop.f32.mrb[0].mxu0
  %3192 = vmatprep.mubr.f32.mxu0 0.0
  %3193 = vmatmul.mubr.f32.gmra.mrb[0].mxu0 %v2929
  %v3194 = vpop.f32.mrb[0].mxu0
  %v3195 = vadd.f32 %v2919, %v3194
  %v3196 = vpop.f32.mrb[0].mxu0
  %3197 = vmatprep.mubr.f32.mxu0 0.0
  %3198 = vmatmul.mubr.f32.gmra.mrb[0].mxu0 %v2932
  %v3199 = vpop.f32.mrb[0].mxu0
  %v3200 = vadd.f32 %v2919, %v3199
  %v3201 = vpop.f32.mrb[0].mxu0
  %3202 = vmatprep.mubr.f32.mxu0 0.0
  %3203 = vmatmul.mubr.f32.gmra.mrb[0].mxu0 %v2935
  %v3204 = vpop.f32.mrb[0].mxu0
  %v3205 = vadd.f32 %v2919, %v3204
  %v3206 = vpop.f32.mrb[0].mxu0
  %3207 = vmatprep.mubr.f32.mxu0 0.0
  %3208 = vmatmul.mubr.f32.gmra.mrb[0].mxu0 %v2938
  %v3209 = vpop.f32.mrb[0].mxu0
  %v3210 = vadd.f32 %v2919, %v3209
  %v3211 = vpop.f32.mrb[0].mxu0
  %3212 = vmatprep.mubr.f32.mxu0 0.0
  %3213 = vmatmul.mubr.f32.gmra.mrb[0].mxu0 %v2941
  %v3214 = vpop.f32.mrb[0].mxu0
  %v3215 = vadd.f32 %v2919, %v3214
  %v3216 = vpop.f32.mrb[0].mxu0
  %3217 = vmatprep.mubr.f32.mxu0 0.0
  %3218 = vmatmul.mubr.f32.gmra.mrb[0].mxu0 %v2944
  %v3219 = vpop.f32.mrb[0].mxu0
  %v3220 = vadd.f32 %v2919, %v3219
  %v3221 = vpop.f32.mrb[0].mxu0
  %3222 = vmatprep.mubr.f32.mxu0 0.0
  %3223 = vmatmul.mubr.f32.gmra.mrb[0].mxu0 %v2947
  %v3224 = vpop.f32.mrb[0].mxu0
  %v3225 = vadd.f32 %v2919, %v3224
  %v3226 = vpop.f32.mrb[0].mxu0
  %3227 = vmatprep.mubr.f32.mxu0 0.0
  %3228 = vmatmul.mubr.f32.gmra.mrb[0].mxu0 %v2950
  %v3229 = vpop.f32.mrb[0].mxu0
  %v3230 = vadd.f32 %v2919, %v3229
  %v3231 = vpop.f32.mrb[0].mxu0
  %3232 = vmatprep.mubr.f32.mxu0 0.0
  %3233 = vmatmul.mubr.f32.gmra.mrb[0].mxu0 %v2953
  %v3234 = vpop.f32.mrb[0].mxu0
  %v3235 = vadd.f32 %v2919, %v3234
  %v3236 = vpop.f32.mrb[0].mxu0
  %3237 = vmatprep.mubr.f32.mxu0 0.0
  %3238 = vmatmul.mubr.f32.gmra.mrb[0].mxu0 %v2956
  %v3239 = vpop.f32.mrb[0].mxu0
  %v3240 = vadd.f32 %v2919, %v3239
  %v3241 = vpop.f32.mrb[0].mxu0
  %3242 = vmatprep.mubr.f32.mxu0 0.0
  %3243 = vmatmul.mubr.f32.gmra.mrb[0].mxu0 %v2959
  %v3244 = vpop.f32.mrb[0].mxu0
  %v3245 = vadd.f32 %v2919, %v3244
  %v3246 = vpop.f32.mrb[0].mxu0
  %3247 = vmatprep.mubr.f32.mxu0 0.0
  %3248 = vmatmul.mubr.f32.gmra.mrb[0].mxu0 %v2962
  %v3249 = vpop.f32.mrb[0].mxu0
  %v3250 = vadd.f32 %v2919, %v3249
  %v3251 = vpop.f32.mrb[0].mxu0
  %3252 = vmatprep.mubr.f32.mxu0 0.0
  %3253 = vmatmul.mubr.f32.gmra.mrb[0].mxu0 %v2965
  %v3254 = vpop.f32.mrb[0].mxu0
  %v3255 = vadd.f32 %v2919, %v3254
  %v3256 = vpop.f32.mrb[0].mxu0
  %3257 = vmatprep.mubr.f32.mxu0 0.0
  %3258 = vmatmul.mubr.f32.gmra.mrb[0].mxu0 %v2968
  %v3259 = vpop.f32.mrb[0].mxu0
  %v3260 = vadd.f32 %v2919, %v3259
  %v3261 = vpop.f32.mrb[0].mxu0
  %3262 = vmatprep.mubr.f32.mxu0 0.0
  %3263 = vmatmul.mubr.f32.gmra.mrb[0].mxu0 %v2971
  %v3264 = vpop.f32.mrb[0].mxu0
  %v3265 = vadd.f32 %v2919, %v3264
  %v3266 = vpop.f32.mrb[0].mxu0
  %3267 = vmatprep.mubr.f32.mxu0 0.0
  %3268 = vmatmul.mubr.f32.gmra.mrb[0].mxu0 %v2974
  %v3269 = vpop.f32.mrb[0].mxu0
  %v3270 = vadd.f32 %v2919, %v3269
  %v3271 = vpop.f32.mrb[0].mxu0
  %3272 = vmatprep.mubr.f32.mxu0 0.0
  %3273 = vmatmul.mubr.f32.gmra.mrb[0].mxu0 %v2977
  %v3274 = vpop.f32.mrb[0].mxu0
  %v3275 = vadd.f32 %v2919, %v3274
  %v3276 = vpop.f32.mrb[0].mxu0
  %3277 = vmatprep.mubr.f32.mxu0 0.0
  %3278 = vmatmul.mubr.f32.gmra.mrb[0].mxu0 %v2980
  %v3279 = vpop.f32.mrb[0].mxu0
  %v3280 = vadd.f32 %v2919, %v3279
  %v3281 = vpop.f32.mrb[0].mxu0
  %3282 = vmatprep.mubr.f32.mxu0 0.0
  %3283 = vmatmul.mubr.f32.gmra.mrb[0].mxu0 %v2983
  %v3284 = vpop.f32.mrb[0].mxu0
  %v3285 = vadd.f32 %v2919, %v3284
  %v3286 = vpop.f32.mrb[0].mxu0
  %3287 = vmatprep.mubr.f32.mxu0 0.0
  %3288 = vmatmul.mubr.f32.gmra.mrb[0].mxu0 %v2986
  %v3289 = vpop.f32.mrb[0].mxu0
  %v3290 = vadd.f32 %v2919, %v3289
  %v3291 = vpop.f32.mrb[0].mxu0
  %3292 = vmatprep.mubr.f32.mxu0 0.0
  %3293 = vmatmul.mubr.f32.gmra.mrb[0].mxu0 %v2989
  %v3294 = vpop.f32.mrb[0].mxu0
  %v3295 = vadd.f32 %v2919, %v3294
  %v3296 = vpop.f32.mrb[0].mxu0
  %3297 = vmatprep.mubr.f32.mxu0 0.0
  %3298 = vmatmul.mubr.f32.gmra.mrb[0].mxu0 %v2992
  %v3299 = vpop.f32.mrb[0].mxu0
  %v3300 = vadd.f32 %v2919, %v3299
  %v3301 = vpop.f32.mrb[0].mxu0
  %3302 = vmatprep.mubr.f32.mxu0 0.0
  %3303 = vmatmul.mubr.f32.gmra.mrb[0].mxu0 %v2995
  %v3304 = vpop.f32.mrb[0].mxu0
  %v3305 = vadd.f32 %v2919, %v3304
  %v3306 = vpop.f32.mrb[0].mxu0
  %3307 = vmatprep.mubr.f32.mxu0 0.0
  %3308 = vmatmul.mubr.f32.gmra.mrb[0].mxu0 %v2998
  %v3309 = vpop.f32.mrb[0].mxu0
  %v3310 = vadd.f32 %v2919, %v3309
  %v3311 = vpop.f32.mrb[0].mxu0
  %3312 = vmatprep.mubr.f32.mxu0 0.0
  %3313 = vmatmul.mubr.f32.gmra.mrb[0].mxu0 %v3001
  %v3314 = vpop.f32.mrb[0].mxu0
  %v3315 = vadd.f32 %v2919, %v3314
  %v3316 = vpop.f32.mrb[0].mxu0
  %3317 = vmatprep.mubr.f32.mxu0 0.0
  %3318 = vmatmul.mubr.f32.gmra.mrb[0].mxu0 %v3004
  %v3319 = vpop.f32.mrb[0].mxu0
  %v3320 = vadd.f32 %v2919, %v3319
  %v3321 = vpop.f32.mrb[0].mxu0
  %3322 = vmatprep.mubr.f32.mxu0 0.0
  %3323 = vmatmul.mubr.f32.gmra.mrb[0].mxu0 %v3007
  %v3324 = vpop.f32.mrb[0].mxu0
  %v3325 = vadd.f32 %v2919, %v3324
  %v3326 = vpop.f32.mrb[0].mxu0
  %3327 = vmatprep.mubr.f32.mxu0 0.0
  %3328 = vmatmul.mubr.f32.gmra.mrb[0].mxu0 %v3010
  %v3329 = vpop.f32.mrb[0].mxu0
  %v3330 = vadd.f32 %v2919, %v3329
  %v3331 = vpop.f32.mrb[0].mxu0
  %3332 = vmatprep.mubr.f32.mxu0 0.0
  %3333 = vmatmul.mubr.f32.gmra.mrb[0].mxu0 %v3013
  %v3334 = vpop.f32.mrb[0].mxu0
  %v3335 = vadd.f32 %v2919, %v3334
  %v3336 = vpop.f32.mrb[0].mxu0
  %3337 = vmatprep.mubr.f32.mxu0 0.0
  %3338 = vmatmul.mubr.f32.gmra.mrb[0].mxu0 %v3016
  %v3339 = vpop.f32.mrb[0].mxu0
  %v3340 = vadd.f32 %v2919, %v3339
  %v3341 = vpop.f32.mrb[0].mxu0
  %3342 = vmatprep.mubr.f32.mxu0 0.0
  %3343 = vmatmul.mubr.f32.gmra.mrb[0].mxu0 %v3019
  %v3344 = vpop.f32.mrb[0].mxu0
  %v3345 = vadd.f32 %v2919, %v3344
  %v3346 = vpop.f32.mrb[0].mxu0
  %3347 = vmatprep.mubr.f32.mxu0 0.0
  %3348 = vmatmul.mubr.f32.gmra.mrb[0].mxu0 %v3022
  %v3349 = vpop.f32.mrb[0].mxu0
  %v3350 = vadd.f32 %v2919, %v3349
  %v3351 = vpop.f32.mrb[0].mxu0
  %3352 = vmatprep.mubr.f32.mxu0 0.0
  %3353 = vmatmul.mubr.f32.gmra.mrb[0].mxu0 %v3025
  %v3354 = vpop.f32.mrb[0].mxu0
  %v3355 = vadd.f32 %v2919, %v3354
  %v3356 = vpop.f32.mrb[0].mxu0
  %3357 = vmatprep.mubr.f32.mxu0 0.0
  %3358 = vmatmul.mubr.f32.gmra.mrb[0].mxu0 %v3028
  %v3359 = vpop.f32.mrb[0].mxu0
  %v3360 = vadd.f32 %v2919, %v3359
  %v3361 = vpop.f32.mrb[0].mxu0
  %3362 = vmatprep.mubr.f32.mxu0 0.0
  %3363 = vmatmul.mubr.f32.gmra.mrb[0].mxu0 %v3031
  %v3364 = vpop.f32.mrb[0].mxu0
  %v3365 = vadd.f32 %v2919, %v3364
  %v3366 = vpop.f32.mrb[0].mxu0
  %3367 = vmatprep.mubr.f32.mxu0 0.0
  %3368 = vmatmul.mubr.f32.gmra.mrb[0].mxu0 %v3034
  %v3369 = vpop.f32.mrb[0].mxu0
  %v3370 = vadd.f32 %v2919, %v3369
  %v3371 = vpop.f32.mrb[0].mxu0
  %3372 = vmatprep.mubr.f32.mxu0 0.0
  %3373 = vmatmul.mubr.f32.gmra.mrb[0].mxu0 %v3037
  %v3374 = vpop.f32.mrb[0].mxu0
  %v3375 = vadd.f32 %v2919, %v3374
  %v3376 = vpop.f32.mrb[0].mxu0
  %3377 = vmatprep.mubr.f32.mxu0 0.0
  %3378 = vmatmul.mubr.f32.gmra.mrb[0].mxu0 %v3040
  %v3379 = vpop.f32.mrb[0].mxu0
  %v3380 = vadd.f32 %v2919, %v3379
  %v3381 = vpop.f32.mrb[0].mxu0
  %3382 = vmatprep.mubr.f32.mxu0 0.0
  %3383 = vmatmul.mubr.f32.gmra.mrb[0].mxu0 %v3043
  %v3384 = vpop.f32.mrb[0].mxu0
  %v3385 = vadd.f32 %v2919, %v3384
  %v3386 = vpop.f32.mrb[0].mxu0
  %3387 = vmatprep.mubr.f32.mxu0 0.0
  %3388 = vmatmul.mubr.f32.gmra.mrb[0].mxu0 %v3046
  %v3389 = vpop.f32.mrb[0].mxu0
  %v3390 = vadd.f32 %v2919, %v3389
  %v3391 = vpop.f32.mrb[0].mxu0
  %3392 = vmatprep.mubr.f32.mxu0 0.0
  %3393 = vmatmul.mubr.f32.gmra.mrb[0].mxu0 %v3049
  %v3394 = vpop.f32.mrb[0].mxu0
  %v3395 = vadd.f32 %v2919, %v3394
  %v3396 = vpop.f32.mrb[0].mxu0
  %3397 = vmatprep.mubr.f32.mxu0 0.0
  %3398 = vmatmul.mubr.f32.gmra.mrb[0].mxu0 %v3052
  %v3399 = vpop.f32.mrb[0].mxu0
  %v3400 = vadd.f32 %v2919, %v3399
  %v3401 = vpop.f32.mrb[0].mxu0
  %3402 = vmatprep.mubr.f32.mxu0 0.0
  %3403 = vmatmul.mubr.f32.gmra.mrb[0].mxu0 %v3055
  %v3404 = vpop.f32.mrb[0].mxu0
  %v3405 = vadd.f32 %v2919, %v3404
  %v3406 = vpop.f32.mrb[0].mxu0
  %3407 = vmatprep.mubr.f32.mxu0 0.0
  %3408 = vmatmul.mubr.f32.gmra.mrb[0].mxu0 %v3058
  %v3409 = vpop.f32.mrb[0].mxu0
  %v3410 = vadd.f32 %v2919, %v3409
  %v3411 = vpop.f32.mrb[0].mxu0
  %3412 = vmatprep.mubr.f32.mxu0 0.0
  %3413 = vmatmul.mubr.f32.gmra.mrb[0].mxu0 %v3061
  %v3414 = vpop.f32.mrb[0].mxu0
  %v3415 = vadd.f32 %v2919, %v3414
  %v3416 = vpop.f32.mrb[0].mxu0
  %3417 = vmatprep.mubr.f32.mxu0 0.0
  %3418 = vmatmul.mubr.f32.gmra.mrb[0].mxu0 %v3064
  %v3419 = vpop.f32.mrb[0].mxu0
  %v3420 = vadd.f32 %v2919, %v3419
  %v3421 = vpop.f32.mrb[0].mxu0
  %3422 = vmatprep.mubr.f32.mxu0 0.0
  %3423 = vmatmul.mubr.f32.gmra.mrb[0].mxu0 %v3067
  %v3424 = vpop.f32.mrb[0].mxu0
  %v3425 = vadd.f32 %v2919, %v3424
  %v3426 = vpop.f32.mrb[0].mxu0
  %3427 = vmatprep.mubr.f32.mxu0 0.0
  %3428 = vmatmul.mubr.f32.gmra.mrb[0].mxu0 %v3070
  %v3429 = vpop.f32.mrb[0].mxu0
  %v3430 = vadd.f32 %v2919, %v3429
  %v3431 = vpop.f32.mrb[0].mxu0
  %3432 = vmatprep.mubr.f32.mxu0 0.0
  %3433 = vmatmul.mubr.f32.gmra.mrb[0].mxu0 %v3073
  %v3434 = vpop.f32.mrb[0].mxu0
  %v3435 = vadd.f32 %v2919, %v3434
  %v3436 = vpop.f32.mrb[0].mxu0
  %3437 = vmatprep.mubr.f32.mxu0 0.0
  %3438 = vmatmul.mubr.f32.gmra.mrb[0].mxu0 %v3076
  %v3439 = vpop.f32.mrb[0].mxu0
  %v3440 = vadd.f32 %v2919, %v3439
  %v3441 = vpop.f32.mrb[0].mxu0
  %3442 = vmatprep.mubr.f32.mxu0 0.0
  %3443 = vmatmul.mubr.f32.gmra.mrb[0].mxu0 %v3079
  %v3444 = vpop.f32.mrb[0].mxu0
  %v3445 = vadd.f32 %v2919, %v3444
  %v3446 = vpop.f32.mrb[0].mxu0
  %3447 = vmatprep.mubr.f32.mxu0 0.0
  %3448 = vmatmul.mubr.f32.gmra.mrb[0].mxu0 %v3082
  %v3449 = vpop.f32.mrb[0].mxu0
  %v3450 = vadd.f32 %v2919, %v3449
  %v3451 = vpop.f32.mrb[0].mxu0
  %3452 = vmatprep.mubr.f32.mxu0 0.0
  %3453 = vmatmul.mubr.f32.gmra.mrb[0].mxu0 %v3085
  %v3454 = vpop.f32.mrb[0].mxu0
  %v3455 = vadd.f32 %v2919, %v3454
  %v3456 = vpop.f32.mrb[0].mxu0
  %3457 = vmatprep.mubr.f32.mxu0 0.0
  %3458 = vmatmul.mubr.f32.gmra.mrb[0].mxu0 %v3088
  %v3459 = vpop.f32.mrb[0].mxu0
  %v3460 = vadd.f32 %v2919, %v3459
  %v3461 = vpop.f32.mrb[0].mxu0
  %3462 = vmatprep.mubr.f32.mxu0 0.0
  %3463 = vmatmul.mubr.f32.gmra.mrb[0].mxu0 %v3091
  %v3464 = vpop.f32.mrb[0].mxu0
  %v3465 = vadd.f32 %v2919, %v3464
  %v3466 = vpop.f32.mrb[0].mxu0
  %3467 = vmatprep.mubr.f32.mxu0 0.0
  %3468 = vmatmul.mubr.f32.gmra.mrb[0].mxu0 %v3094
  %v3469 = vpop.f32.mrb[0].mxu0
  %v3470 = vadd.f32 %v2919, %v3469
  %v3471 = vpop.f32.mrb[0].mxu0
  %3472 = vmatprep.mubr.f32.mxu0 0.0
  %3473 = vmatmul.mubr.f32.gmra.mrb[0].mxu0 %v3097
  %v3474 = vpop.f32.mrb[0].mxu0
  %v3475 = vadd.f32 %v2919, %v3474
  %v3476 = vpop.f32.mrb[0].mxu0
  %3477 = vmatprep.mubr.f32.mxu0 0.0
  %3478 = vmatmul.mubr.f32.gmra.mrb[0].mxu0 %v3100
  %v3479 = vpop.f32.mrb[0].mxu0
  %v3480 = vadd.f32 %v2919, %v3479
  %v3481 = vpop.f32.mrb[0].mxu0
  %3482 = vmatprep.mubr.f32.mxu0 0.0
  %3483 = vmatmul.mubr.f32.gmra.mrb[0].mxu0 %v3103
  %v3484 = vpop.f32.mrb[0].mxu0
  %v3485 = vadd.f32 %v2919, %v3484
  %v3486 = vpop.f32.mrb[0].mxu0
  %3487 = vmatprep.mubr.f32.mxu0 0.0
  %3488 = vmatmul.mubr.f32.gmra.mrb[0].mxu0 %v3106
  %v3489 = vpop.f32.mrb[0].mxu0
  %v3490 = vadd.f32 %v2919, %v3489
  %v3491 = vpop.f32.mrb[0].mxu0
  %3492 = vmatprep.mubr.f32.mxu0 0.0
  %3493 = vmatmul.mubr.f32.gmra.mrb[0].mxu0 %v3109
  %v3494 = vpop.f32.mrb[0].mxu0
  %v3495 = vadd.f32 %v2919, %v3494
  %v3496 = vpop.f32.mrb[0].mxu0
  %3497 = vmatprep.mubr.f32.mxu0 0.0
  %3498 = vmatmul.mubr.f32.gmra.mrb[0].mxu0 %v3112
  %v3499 = vpop.f32.mrb[0].mxu0
  %v3500 = vadd.f32 %v2919, %v3499
  %v3501 = vpop.f32.mrb[0].mxu0
  %3502 = vdwg.mxu0
  %v3503 = vsel %vm217, %v3185, 0.0
  %v3504 = vsel %vm217, %v3190, 0.0
  %v3505 = vadd.f32 %v3503, %v3504
  %v3506 = vsel %vm217, %v3195, 0.0
  %v3507 = vadd.f32 %v3505, %v3506
  %v3508 = vsel %vm217, %v3200, 0.0
  %v3509 = vadd.f32 %v3507, %v3508
  %v3510 = vsel %vm217, %v3205, 0.0
  %v3511 = vadd.f32 %v3509, %v3510
  %v3512 = vsel %vm217, %v3210, 0.0
  %v3513 = vadd.f32 %v3511, %v3512
  %v3514 = vsel %vm217, %v3215, 0.0
  %v3515 = vadd.f32 %v3513, %v3514
  %v3516 = vsel %vm217, %v3220, 0.0
  %v3517 = vadd.f32 %v3515, %v3516
  %v3518 = vsel %vm217, %v3225, 0.0
  %v3519 = vadd.f32 %v3517, %v3518
  %v3520 = vsel %vm217, %v3230, 0.0
  %v3521 = vadd.f32 %v3519, %v3520
  %v3522 = vsel %vm217, %v3235, 0.0
  %v3523 = vadd.f32 %v3521, %v3522
  %v3524 = vsel %vm217, %v3240, 0.0
  %v3525 = vadd.f32 %v3523, %v3524
  %v3526 = vsel %vm217, %v3245, 0.0
  %v3527 = vadd.f32 %v3525, %v3526
  %v3528 = vsel %vm217, %v3250, 0.0
  %v3529 = vadd.f32 %v3527, %v3528
  %v3530 = vsel %vm217, %v3255, 0.0
  %v3531 = vadd.f32 %v3529, %v3530
  %v3532 = vsel %vm217, %v3260, 0.0
  %v3533 = vadd.f32 %v3531, %v3532
  %v3534 = vsel %vm217, %v3265, 0.0
  %v3535 = vadd.f32 %v3533, %v3534
  %v3536 = vsel %vm217, %v3270, 0.0
  %v3537 = vadd.f32 %v3535, %v3536
  %v3538 = vsel %vm217, %v3275, 0.0
  %v3539 = vadd.f32 %v3537, %v3538
  %v3540 = vsel %vm217, %v3280, 0.0
  %v3541 = vadd.f32 %v3539, %v3540
  %v3542 = vsel %vm217, %v3285, 0.0
  %v3543 = vadd.f32 %v3541, %v3542
  %v3544 = vsel %vm217, %v3290, 0.0
  %v3545 = vadd.f32 %v3543, %v3544
  %v3546 = vsel %vm217, %v3295, 0.0
  %v3547 = vadd.f32 %v3545, %v3546
  %v3548 = vsel %vm217, %v3300, 0.0
  %v3549 = vadd.f32 %v3547, %v3548
  %v3550 = vsel %vm217, %v3305, 0.0
  %v3551 = vadd.f32 %v3549, %v3550
  %v3552 = vsel %vm217, %v3310, 0.0
  %v3553 = vadd.f32 %v3551, %v3552
  %v3554 = vsel %vm217, %v3315, 0.0
  %v3555 = vadd.f32 %v3553, %v3554
  %v3556 = vsel %vm217, %v3320, 0.0
  %v3557 = vadd.f32 %v3555, %v3556
  %v3558 = vsel %vm217, %v3325, 0.0
  %v3559 = vadd.f32 %v3557, %v3558
  %v3560 = vsel %vm217, %v3330, 0.0
  %v3561 = vadd.f32 %v3559, %v3560
  %v3562 = vsel %vm217, %v3335, 0.0
  %v3563 = vadd.f32 %v3561, %v3562
  %v3564 = vsel %vm217, %v3340, 0.0
  %v3565 = vadd.f32 %v3563, %v3564
  %v3566 = vsel %vm217, %v3345, 0.0
  %v3567 = vadd.f32 %v3565, %v3566
  %v3568 = vsel %vm217, %v3350, 0.0
  %v3569 = vadd.f32 %v3567, %v3568
  %v3570 = vsel %vm217, %v3355, 0.0
  %v3571 = vadd.f32 %v3569, %v3570
  %v3572 = vsel %vm217, %v3360, 0.0
  %v3573 = vadd.f32 %v3571, %v3572
  %v3574 = vsel %vm217, %v3365, 0.0
  %v3575 = vadd.f32 %v3573, %v3574
  %v3576 = vsel %vm217, %v3370, 0.0
  %v3577 = vadd.f32 %v3575, %v3576
  %v3578 = vsel %vm217, %v3375, 0.0
  %v3579 = vadd.f32 %v3577, %v3578
  %v3580 = vsel %vm217, %v3380, 0.0
  %v3581 = vadd.f32 %v3579, %v3580
  %v3582 = vsel %vm217, %v3385, 0.0
  %v3583 = vadd.f32 %v3581, %v3582
  %v3584 = vsel %vm217, %v3390, 0.0
  %v3585 = vadd.f32 %v3583, %v3584
  %v3586 = vsel %vm217, %v3395, 0.0
  %v3587 = vadd.f32 %v3585, %v3586
  %v3588 = vsel %vm217, %v3400, 0.0
  %v3589 = vadd.f32 %v3587, %v3588
  %v3590 = vsel %vm217, %v3405, 0.0
  %v3591 = vadd.f32 %v3589, %v3590
  %v3592 = vsel %vm217, %v3410, 0.0
  %v3593 = vadd.f32 %v3591, %v3592
  %v3594 = vsel %vm217, %v3415, 0.0
  %v3595 = vadd.f32 %v3593, %v3594
  %v3596 = vsel %vm217, %v3420, 0.0
  %v3597 = vadd.f32 %v3595, %v3596
  %v3598 = vsel %vm217, %v3425, 0.0
  %v3599 = vadd.f32 %v3597, %v3598
  %v3600 = vsel %vm217, %v3430, 0.0
  %v3601 = vadd.f32 %v3599, %v3600
  %v3602 = vsel %vm217, %v3435, 0.0
  %v3603 = vadd.f32 %v3601, %v3602
  %v3604 = vsel %vm217, %v3440, 0.0
  %v3605 = vadd.f32 %v3603, %v3604
  %v3606 = vsel %vm217, %v3445, 0.0
  %v3607 = vadd.f32 %v3605, %v3606
  %v3608 = vsel %vm217, %v3450, 0.0
  %v3609 = vadd.f32 %v3607, %v3608
  %v3610 = vsel %vm217, %v3455, 0.0
  %v3611 = vadd.f32 %v3609, %v3610
  %v3612 = vsel %vm217, %v3460, 0.0
  %v3613 = vadd.f32 %v3611, %v3612
  %v3614 = vsel %vm217, %v3465, 0.0
  %v3615 = vadd.f32 %v3613, %v3614
  %v3616 = vsel %vm217, %v3470, 0.0
  %v3617 = vadd.f32 %v3615, %v3616
  %v3618 = vsel %vm217, %v3475, 0.0
  %v3619 = vadd.f32 %v3617, %v3618
  %v3620 = vsel %vm217, %v3480, 0.0
  %v3621 = vadd.f32 %v3619, %v3620
  %v3622 = vsel %vm217, %v3485, 0.0
  %v3623 = vadd.f32 %v3621, %v3622
  %v3624 = vsel %vm217, %v3490, 0.0
  %v3625 = vadd.f32 %v3623, %v3624
  %v3626 = vsel %vm217, %v3495, 0.0
  %v3627 = vadd.f32 %v3625, %v3626
  %v3628 = vsel %vm217, %v3500, 0.0
  %v3629 = vadd.f32 %v3627, %v3628
  %v3630 = vrot.slane %v3629, 4
  %v3631 = vadd.f32 %v3629, %v3630
  %v3632 = vrot.slane %v3631, 2
  %v3633 = vadd.f32 %v3631, %v3632
  %v3634 = vrot.slane %v3633, 1
  %v3635 = vadd.f32 %v3633, %v3634
  %v3636 = vmul.f32 %v3635, %v468
  %v3637 = vsub.f32 %v3185, %v3636
  %v3638 = vsub.f32 %v3190, %v3636
  %v3639 = vsub.f32 %v3195, %v3636
  %v3640 = vsub.f32 %v3200, %v3636
  %v3641 = vsub.f32 %v3205, %v3636
  %v3642 = vsub.f32 %v3210, %v3636
  %v3643 = vsub.f32 %v3215, %v3636
  %v3644 = vsub.f32 %v3220, %v3636
  %v3645 = vsub.f32 %v3225, %v3636
  %v3646 = vsub.f32 %v3230, %v3636
  %v3647 = vsub.f32 %v3235, %v3636
  %v3648 = vsub.f32 %v3240, %v3636
  %v3649 = vsub.f32 %v3245, %v3636
  %v3650 = vsub.f32 %v3250, %v3636
  %v3651 = vsub.f32 %v3255, %v3636
  %v3652 = vsub.f32 %v3260, %v3636
  %v3653 = vsub.f32 %v3265, %v3636
  %v3654 = vsub.f32 %v3270, %v3636
  %v3655 = vsub.f32 %v3275, %v3636
  %v3656 = vsub.f32 %v3280, %v3636
  %v3657 = vsub.f32 %v3285, %v3636
  %v3658 = vsub.f32 %v3290, %v3636
  %v3659 = vsub.f32 %v3295, %v3636
  %v3660 = vsub.f32 %v3300, %v3636
  %v3661 = vsub.f32 %v3305, %v3636
  %v3662 = vsub.f32 %v3310, %v3636
  %v3663 = vsub.f32 %v3315, %v3636
  %v3664 = vsub.f32 %v3320, %v3636
  %v3665 = vsub.f32 %v3325, %v3636
  %v3666 = vsub.f32 %v3330, %v3636
  %v3667 = vsub.f32 %v3335, %v3636
  %v3668 = vsub.f32 %v3340, %v3636
  %v3669 = vsub.f32 %v3345, %v3636
  %v3670 = vsub.f32 %v3350, %v3636
  %v3671 = vsub.f32 %v3355, %v3636
  %v3672 = vsub.f32 %v3360, %v3636
  %v3673 = vsub.f32 %v3365, %v3636
  %v3674 = vsub.f32 %v3370, %v3636
  %v3675 = vsub.f32 %v3375, %v3636
  %v3676 = vsub.f32 %v3380, %v3636
  %v3677 = vsub.f32 %v3385, %v3636
  %v3678 = vsub.f32 %v3390, %v3636
  %v3679 = vsub.f32 %v3395, %v3636
  %v3680 = vsub.f32 %v3400, %v3636
  %v3681 = vsub.f32 %v3405, %v3636
  %v3682 = vsub.f32 %v3410, %v3636
  %v3683 = vsub.f32 %v3415, %v3636
  %v3684 = vsub.f32 %v3420, %v3636
  %v3685 = vsub.f32 %v3425, %v3636
  %v3686 = vsub.f32 %v3430, %v3636
  %v3687 = vsub.f32 %v3435, %v3636
  %v3688 = vsub.f32 %v3440, %v3636
  %v3689 = vsub.f32 %v3445, %v3636
  %v3690 = vsub.f32 %v3450, %v3636
  %v3691 = vsub.f32 %v3455, %v3636
  %v3692 = vsub.f32 %v3460, %v3636
  %v3693 = vsub.f32 %v3465, %v3636
  %v3694 = vsub.f32 %v3470, %v3636
  %v3695 = vsub.f32 %v3475, %v3636
  %v3696 = vsub.f32 %v3480, %v3636
  %v3697 = vsub.f32 %v3485, %v3636
  %v3698 = vsub.f32 %v3490, %v3636
  %v3699 = vsub.f32 %v3495, %v3636
  %v3700 = vsub.f32 %v3500, %v3636
  %v3701 = vmul.f32 %v3637, %v3637
  %v3702 = vmul.f32 %v3638, %v3638
  %v3703 = vmul.f32 %v3639, %v3639
  %v3704 = vmul.f32 %v3640, %v3640
  %v3705 = vmul.f32 %v3641, %v3641
  %v3706 = vmul.f32 %v3642, %v3642
  %v3707 = vmul.f32 %v3643, %v3643
  %v3708 = vmul.f32 %v3644, %v3644
  %v3709 = vmul.f32 %v3645, %v3645
  %v3710 = vmul.f32 %v3646, %v3646
  %v3711 = vmul.f32 %v3647, %v3647
  %v3712 = vmul.f32 %v3648, %v3648
  %v3713 = vmul.f32 %v3649, %v3649
  %v3714 = vmul.f32 %v3650, %v3650
  %v3715 = vmul.f32 %v3651, %v3651
  %v3716 = vmul.f32 %v3652, %v3652
  %v3717 = vmul.f32 %v3653, %v3653
  %v3718 = vmul.f32 %v3654, %v3654
  %v3719 = vmul.f32 %v3655, %v3655
  %v3720 = vmul.f32 %v3656, %v3656
  %v3721 = vmul.f32 %v3657, %v3657
  %v3722 = vmul.f32 %v3658, %v3658
  %v3723 = vmul.f32 %v3659, %v3659
  %v3724 = vmul.f32 %v3660, %v3660
  %v3725 = vmul.f32 %v3661, %v3661
  %v3726 = vmul.f32 %v3662, %v3662
  %v3727 = vmul.f32 %v3663, %v3663
  %v3728 = vmul.f32 %v3664, %v3664
  %v3729 = vmul.f32 %v3665, %v3665
  %v3730 = vmul.f32 %v3666, %v3666
  %v3731 = vmul.f32 %v3667, %v3667
  %v3732 = vmul.f32 %v3668, %v3668
  %v3733 = vmul.f32 %v3669, %v3669
  %v3734 = vmul.f32 %v3670, %v3670
  %v3735 = vmul.f32 %v3671, %v3671
  %v3736 = vmul.f32 %v3672, %v3672
  %v3737 = vmul.f32 %v3673, %v3673
  %v3738 = vmul.f32 %v3674, %v3674
  %v3739 = vmul.f32 %v3675, %v3675
  %v3740 = vmul.f32 %v3676, %v3676
  %v3741 = vmul.f32 %v3677, %v3677
  %v3742 = vmul.f32 %v3678, %v3678
  %v3743 = vmul.f32 %v3679, %v3679
  %v3744 = vmul.f32 %v3680, %v3680
  %v3745 = vmul.f32 %v3681, %v3681
  %v3746 = vmul.f32 %v3682, %v3682
  %v3747 = vmul.f32 %v3683, %v3683
  %v3748 = vmul.f32 %v3684, %v3684
  %v3749 = vmul.f32 %v3685, %v3685
  %v3750 = vmul.f32 %v3686, %v3686
  %v3751 = vmul.f32 %v3687, %v3687
  %v3752 = vmul.f32 %v3688, %v3688
  %v3753 = vmul.f32 %v3689, %v3689
  %v3754 = vmul.f32 %v3690, %v3690
  %v3755 = vmul.f32 %v3691, %v3691
  %v3756 = vmul.f32 %v3692, %v3692
  %v3757 = vmul.f32 %v3693, %v3693
  %v3758 = vmul.f32 %v3694, %v3694
  %v3759 = vmul.f32 %v3695, %v3695
  %v3760 = vmul.f32 %v3696, %v3696
  %v3761 = vmul.f32 %v3697, %v3697
  %v3762 = vmul.f32 %v3698, %v3698
  %v3763 = vmul.f32 %v3699, %v3699
  %v3764 = vmul.f32 %v3700, %v3700
  %v3765 = vsel %vm217, %v3701, 0.0
  %v3766 = vsel %vm217, %v3702, 0.0
  %v3767 = vadd.f32 %v3765, %v3766
  %v3768 = vsel %vm217, %v3703, 0.0
  %v3769 = vadd.f32 %v3767, %v3768
  %v3770 = vsel %vm217, %v3704, 0.0
  %v3771 = vadd.f32 %v3769, %v3770
  %v3772 = vsel %vm217, %v3705, 0.0
  %v3773 = vadd.f32 %v3771, %v3772
  %v3774 = vsel %vm217, %v3706, 0.0
  %v3775 = vadd.f32 %v3773, %v3774
  %v3776 = vsel %vm217, %v3707, 0.0
  %v3777 = vadd.f32 %v3775, %v3776
  %v3778 = vsel %vm217, %v3708, 0.0
  %v3779 = vadd.f32 %v3777, %v3778
  %v3780 = vsel %vm217, %v3709, 0.0
  %v3781 = vadd.f32 %v3779, %v3780
  %v3782 = vsel %vm217, %v3710, 0.0
  %v3783 = vadd.f32 %v3781, %v3782
  %v3784 = vsel %vm217, %v3711, 0.0
  %v3785 = vadd.f32 %v3783, %v3784
  %v3786 = vsel %vm217, %v3712, 0.0
  %v3787 = vadd.f32 %v3785, %v3786
  %v3788 = vsel %vm217, %v3713, 0.0
  %v3789 = vadd.f32 %v3787, %v3788
  %v3790 = vsel %vm217, %v3714, 0.0
  %v3791 = vadd.f32 %v3789, %v3790
  %v3792 = vsel %vm217, %v3715, 0.0
  %v3793 = vadd.f32 %v3791, %v3792
  %v3794 = vsel %vm217, %v3716, 0.0
  %v3795 = vadd.f32 %v3793, %v3794
  %v3796 = vsel %vm217, %v3717, 0.0
  %v3797 = vadd.f32 %v3795, %v3796
  %v3798 = vsel %vm217, %v3718, 0.0
  %v3799 = vadd.f32 %v3797, %v3798
  %v3800 = vsel %vm217, %v3719, 0.0
  %v3801 = vadd.f32 %v3799, %v3800
  %v3802 = vsel %vm217, %v3720, 0.0
  %v3803 = vadd.f32 %v3801, %v3802
  %v3804 = vsel %vm217, %v3721, 0.0
  %v3805 = vadd.f32 %v3803, %v3804
  %v3806 = vsel %vm217, %v3722, 0.0
  %v3807 = vadd.f32 %v3805, %v3806
  %v3808 = vsel %vm217, %v3723, 0.0
  %v3809 = vadd.f32 %v3807, %v3808
  %v3810 = vsel %vm217, %v3724, 0.0
  %v3811 = vadd.f32 %v3809, %v3810
  %v3812 = vsel %vm217, %v3725, 0.0
  %v3813 = vadd.f32 %v3811, %v3812
  %v3814 = vsel %vm217, %v3726, 0.0
  %v3815 = vadd.f32 %v3813, %v3814
  %v3816 = vsel %vm217, %v3727, 0.0
  %v3817 = vadd.f32 %v3815, %v3816
  %v3818 = vsel %vm217, %v3728, 0.0
  %v3819 = vadd.f32 %v3817, %v3818
  %v3820 = vsel %vm217, %v3729, 0.0
  %v3821 = vadd.f32 %v3819, %v3820
  %v3822 = vsel %vm217, %v3730, 0.0
  %v3823 = vadd.f32 %v3821, %v3822
  %v3824 = vsel %vm217, %v3731, 0.0
  %v3825 = vadd.f32 %v3823, %v3824
  %v3826 = vsel %vm217, %v3732, 0.0
  %v3827 = vadd.f32 %v3825, %v3826
  %v3828 = vsel %vm217, %v3733, 0.0
  %v3829 = vadd.f32 %v3827, %v3828
  %v3830 = vsel %vm217, %v3734, 0.0
  %v3831 = vadd.f32 %v3829, %v3830
  %v3832 = vsel %vm217, %v3735, 0.0
  %v3833 = vadd.f32 %v3831, %v3832
  %v3834 = vsel %vm217, %v3736, 0.0
  %v3835 = vadd.f32 %v3833, %v3834
  %v3836 = vsel %vm217, %v3737, 0.0
  %v3837 = vadd.f32 %v3835, %v3836
  %v3838 = vsel %vm217, %v3738, 0.0
  %v3839 = vadd.f32 %v3837, %v3838
  %v3840 = vsel %vm217, %v3739, 0.0
  %v3841 = vadd.f32 %v3839, %v3840
  %v3842 = vsel %vm217, %v3740, 0.0
  %v3843 = vadd.f32 %v3841, %v3842
  %v3844 = vsel %vm217, %v3741, 0.0
  %v3845 = vadd.f32 %v3843, %v3844
  %v3846 = vsel %vm217, %v3742, 0.0
  %v3847 = vadd.f32 %v3845, %v3846
  %v3848 = vsel %vm217, %v3743, 0.0
  %v3849 = vadd.f32 %v3847, %v3848
  %v3850 = vsel %vm217, %v3744, 0.0
  %v3851 = vadd.f32 %v3849, %v3850
  %v3852 = vsel %vm217, %v3745, 0.0
  %v3853 = vadd.f32 %v3851, %v3852
  %v3854 = vsel %vm217, %v3746, 0.0
  %v3855 = vadd.f32 %v3853, %v3854
  %v3856 = vsel %vm217, %v3747, 0.0
  %v3857 = vadd.f32 %v3855, %v3856
  %v3858 = vsel %vm217, %v3748, 0.0
  %v3859 = vadd.f32 %v3857, %v3858
  %v3860 = vsel %vm217, %v3749, 0.0
  %v3861 = vadd.f32 %v3859, %v3860
  %v3862 = vsel %vm217, %v3750, 0.0
  %v3863 = vadd.f32 %v3861, %v3862
  %v3864 = vsel %vm217, %v3751, 0.0
  %v3865 = vadd.f32 %v3863, %v3864
  %v3866 = vsel %vm217, %v3752, 0.0
  %v3867 = vadd.f32 %v3865, %v3866
  %v3868 = vsel %vm217, %v3753, 0.0
  %v3869 = vadd.f32 %v3867, %v3868
  %v3870 = vsel %vm217, %v3754, 0.0
  %v3871 = vadd.f32 %v3869, %v3870
  %v3872 = vsel %vm217, %v3755, 0.0
  %v3873 = vadd.f32 %v3871, %v3872
  %v3874 = vsel %vm217, %v3756, 0.0
  %v3875 = vadd.f32 %v3873, %v3874
  %v3876 = vsel %vm217, %v3757, 0.0
  %v3877 = vadd.f32 %v3875, %v3876
  %v3878 = vsel %vm217, %v3758, 0.0
  %v3879 = vadd.f32 %v3877, %v3878
  %v3880 = vsel %vm217, %v3759, 0.0
  %v3881 = vadd.f32 %v3879, %v3880
  %v3882 = vsel %vm217, %v3760, 0.0
  %v3883 = vadd.f32 %v3881, %v3882
  %v3884 = vsel %vm217, %v3761, 0.0
  %v3885 = vadd.f32 %v3883, %v3884
  %v3886 = vsel %vm217, %v3762, 0.0
  %v3887 = vadd.f32 %v3885, %v3886
  %v3888 = vsel %vm217, %v3763, 0.0
  %v3889 = vadd.f32 %v3887, %v3888
  %v3890 = vsel %vm217, %v3764, 0.0
  %v3891 = vadd.f32 %v3889, %v3890
  %v3892 = vrot.slane %v3891, 4
  %v3893 = vadd.f32 %v3891, %v3892
  %v3894 = vrot.slane %v3893, 2
  %v3895 = vadd.f32 %v3893, %v3894
  %v3896 = vrot.slane %v3895, 1
  %v3897 = vadd.f32 %v3895, %v3896
  %v3898 = vmul.f32 %v3897, %v468
  %v3899 = vadd.f32 %v3898, 1e-05
  %v3900 = vrsqrt.pop %v3899
  %v3901 = vmul.f32 %v327, %v3900
  %v3903 = vlaneseq
  %v3904 = vshrl.u32 %v3903, 7
  %v3905 = vsub.s32 0, %v3904
  %v3906 = vrot.slane %v3901, %v3905
  %v3908 = vmul.f32 %v3637, %v3906
  %v3909 = vmul.f32 %v3638, %v3906
  %v3910 = vmul.f32 %v3639, %v3906
  %v3911 = vmul.f32 %v3640, %v3906
  %v3912 = vmul.f32 %v3641, %v3906
  %v3913 = vmul.f32 %v3642, %v3906
  %v3914 = vmul.f32 %v3643, %v3906
  %v3915 = vmul.f32 %v3644, %v3906
  %v3916 = vmul.f32 %v3645, %v3906
  %v3917 = vmul.f32 %v3646, %v3906
  %v3918 = vmul.f32 %v3647, %v3906
  %v3919 = vmul.f32 %v3648, %v3906
  %v3920 = vmul.f32 %v3649, %v3906
  %v3921 = vmul.f32 %v3650, %v3906
  %v3922 = vmul.f32 %v3651, %v3906
  %v3923 = vmul.f32 %v3652, %v3906
  %v3924 = vmul.f32 %v3653, %v3906
  %v3925 = vmul.f32 %v3654, %v3906
  %v3926 = vmul.f32 %v3655, %v3906
  %v3927 = vmul.f32 %v3656, %v3906
  %v3928 = vmul.f32 %v3657, %v3906
  %v3929 = vmul.f32 %v3658, %v3906
  %v3930 = vmul.f32 %v3659, %v3906
  %v3931 = vmul.f32 %v3660, %v3906
  %v3932 = vmul.f32 %v3661, %v3906
  %v3933 = vmul.f32 %v3662, %v3906
  %v3934 = vmul.f32 %v3663, %v3906
  %v3935 = vmul.f32 %v3664, %v3906
  %v3936 = vmul.f32 %v3665, %v3906
  %v3937 = vmul.f32 %v3666, %v3906
  %v3938 = vmul.f32 %v3667, %v3906
  %v3939 = vmul.f32 %v3668, %v3906
  %v3940 = vmul.f32 %v3669, %v3906
  %v3941 = vmul.f32 %v3670, %v3906
  %v3942 = vmul.f32 %v3671, %v3906
  %v3943 = vmul.f32 %v3672, %v3906
  %v3944 = vmul.f32 %v3673, %v3906
  %v3945 = vmul.f32 %v3674, %v3906
  %v3946 = vmul.f32 %v3675, %v3906
  %v3947 = vmul.f32 %v3676, %v3906
  %v3948 = vmul.f32 %v3677, %v3906
  %v3949 = vmul.f32 %v3678, %v3906
  %v3950 = vmul.f32 %v3679, %v3906
  %v3951 = vmul.f32 %v3680, %v3906
  %v3952 = vmul.f32 %v3681, %v3906
  %v3953 = vmul.f32 %v3682, %v3906
  %v3954 = vmul.f32 %v3683, %v3906
  %v3955 = vmul.f32 %v3684, %v3906
  %v3956 = vmul.f32 %v3685, %v3906
  %v3957 = vmul.f32 %v3686, %v3906
  %v3958 = vmul.f32 %v3687, %v3906
  %v3959 = vmul.f32 %v3688, %v3906
  %v3960 = vmul.f32 %v3689, %v3906
  %v3961 = vmul.f32 %v3690, %v3906
  %v3962 = vmul.f32 %v3691, %v3906
  %v3963 = vmul.f32 %v3692, %v3906
  %v3964 = vmul.f32 %v3693, %v3906
  %v3965 = vmul.f32 %v3694, %v3906
  %v3966 = vmul.f32 %v3695, %v3906
  %v3967 = vmul.f32 %v3696, %v3906
  %v3968 = vmul.f32 %v3697, %v3906
  %v3969 = vmul.f32 %v3698, %v3906
  %v3970 = vmul.f32 %v3699, %v3906
  %v3971 = vmul.f32 %v3700, %v3906
  %v3972 = vadd.f32 %v3908, %v809
  %v3973 = vadd.f32 %v3909, %v809
  %v3974 = vadd.f32 %v3910, %v809
  %v3975 = vadd.f32 %v3911, %v809
  %v3976 = vadd.f32 %v3912, %v809
  %v3977 = vadd.f32 %v3913, %v809
  %v3978 = vadd.f32 %v3914, %v809
  %v3979 = vadd.f32 %v3915, %v809
  %v3980 = vadd.f32 %v3916, %v809
  %v3981 = vadd.f32 %v3917, %v809
  %v3982 = vadd.f32 %v3918, %v809
  %v3983 = vadd.f32 %v3919, %v809
  %v3984 = vadd.f32 %v3920, %v809
  %v3985 = vadd.f32 %v3921, %v809
  %v3986 = vadd.f32 %v3922, %v809
  %v3987 = vadd.f32 %v3923, %v809
  %v3988 = vadd.f32 %v3924, %v809
  %v3989 = vadd.f32 %v3925, %v809
  %v3990 = vadd.f32 %v3926, %v809
  %v3991 = vadd.f32 %v3927, %v809
  %v3992 = vadd.f32 %v3928, %v809
  %v3993 = vadd.f32 %v3929, %v809
  %v3994 = vadd.f32 %v3930, %v809
  %v3995 = vadd.f32 %v3931, %v809
  %v3996 = vadd.f32 %v3932, %v809
  %v3997 = vadd.f32 %v3933, %v809
  %v3998 = vadd.f32 %v3934, %v809
  %v3999 = vadd.f32 %v3935, %v809
  %v4000 = vadd.f32 %v3936, %v809
  %v4001 = vadd.f32 %v3937, %v809
  %v4002 = vadd.f32 %v3938, %v809
  %v4003 = vadd.f32 %v3939, %v809
  %v4004 = vadd.f32 %v3940, %v809
  %v4005 = vadd.f32 %v3941, %v809
  %v4006 = vadd.f32 %v3942, %v809
  %v4007 = vadd.f32 %v3943, %v809
  %v4008 = vadd.f32 %v3944, %v809
  %v4009 = vadd.f32 %v3945, %v809
  %v4010 = vadd.f32 %v3946, %v809
  %v4011 = vadd.f32 %v3947, %v809
  %v4012 = vadd.f32 %v3948, %v809
  %v4013 = vadd.f32 %v3949, %v809
  %v4014 = vadd.f32 %v3950, %v809
  %v4015 = vadd.f32 %v3951, %v809
  %v4016 = vadd.f32 %v3952, %v809
  %v4017 = vadd.f32 %v3953, %v809
  %v4018 = vadd.f32 %v3954, %v809
  %v4019 = vadd.f32 %v3955, %v809
  %v4020 = vadd.f32 %v3956, %v809
  %v4021 = vadd.f32 %v3957, %v809
  %v4022 = vadd.f32 %v3958, %v809
  %v4023 = vadd.f32 %v3959, %v809
  %v4024 = vadd.f32 %v3960, %v809
  %v4025 = vadd.f32 %v3961, %v809
  %v4026 = vadd.f32 %v3962, %v809
  %v4027 = vadd.f32 %v3963, %v809
  %v4028 = vadd.f32 %v3964, %v809
  %v4029 = vadd.f32 %v3965, %v809
  %v4030 = vadd.f32 %v3966, %v809
  %v4031 = vadd.f32 %v3967, %v809
  %v4032 = vadd.f32 %v3968, %v809
  %v4033 = vadd.f32 %v3969, %v809
  %v4034 = vadd.f32 %v3970, %v809
  %v4035 = vadd.f32 %v3971, %v809
  %v4036 = vmax.f32 %v3972, 0.0
  %v4037 = vmax.f32 %v3973, 0.0
  %v4038 = vmax.f32 %v3974, 0.0
  %v4039 = vmax.f32 %v3975, 0.0
  %v4040 = vmax.f32 %v3976, 0.0
  %v4041 = vmax.f32 %v3977, 0.0
  %v4042 = vmax.f32 %v3978, 0.0
  %v4043 = vmax.f32 %v3979, 0.0
  %v4044 = vmax.f32 %v3980, 0.0
  %v4045 = vmax.f32 %v3981, 0.0
  %v4046 = vmax.f32 %v3982, 0.0
  %v4047 = vmax.f32 %v3983, 0.0
  %v4048 = vmax.f32 %v3984, 0.0
  %v4049 = vmax.f32 %v3985, 0.0
  %v4050 = vmax.f32 %v3986, 0.0
  %v4051 = vmax.f32 %v3987, 0.0
  %v4052 = vmax.f32 %v3988, 0.0
  %v4053 = vmax.f32 %v3989, 0.0
  %v4054 = vmax.f32 %v3990, 0.0
  %v4055 = vmax.f32 %v3991, 0.0
  %v4056 = vmax.f32 %v3992, 0.0
  %v4057 = vmax.f32 %v3993, 0.0
  %v4058 = vmax.f32 %v3994, 0.0
  %v4059 = vmax.f32 %v3995, 0.0
  %v4060 = vmax.f32 %v3996, 0.0
  %v4061 = vmax.f32 %v3997, 0.0
  %v4062 = vmax.f32 %v3998, 0.0
  %v4063 = vmax.f32 %v3999, 0.0
  %v4064 = vmax.f32 %v4000, 0.0
  %v4065 = vmax.f32 %v4001, 0.0
  %v4066 = vmax.f32 %v4002, 0.0
  %v4067 = vmax.f32 %v4003, 0.0
  %v4068 = vmax.f32 %v4004, 0.0
  %v4069 = vmax.f32 %v4005, 0.0
  %v4070 = vmax.f32 %v4006, 0.0
  %v4071 = vmax.f32 %v4007, 0.0
  %v4072 = vmax.f32 %v4008, 0.0
  %v4073 = vmax.f32 %v4009, 0.0
  %v4074 = vmax.f32 %v4010, 0.0
  %v4075 = vmax.f32 %v4011, 0.0
  %v4076 = vmax.f32 %v4012, 0.0
  %v4077 = vmax.f32 %v4013, 0.0
  %v4078 = vmax.f32 %v4014, 0.0
  %v4079 = vmax.f32 %v4015, 0.0
  %v4080 = vmax.f32 %v4016, 0.0
  %v4081 = vmax.f32 %v4017, 0.0
  %v4082 = vmax.f32 %v4018, 0.0
  %v4083 = vmax.f32 %v4019, 0.0
  %v4084 = vmax.f32 %v4020, 0.0
  %v4085 = vmax.f32 %v4021, 0.0
  %v4086 = vmax.f32 %v4022, 0.0
  %v4087 = vmax.f32 %v4023, 0.0
  %v4088 = vmax.f32 %v4024, 0.0
  %v4089 = vmax.f32 %v4025, 0.0
  %v4090 = vmax.f32 %v4026, 0.0
  %v4091 = vmax.f32 %v4027, 0.0
  %v4092 = vmax.f32 %v4028, 0.0
  %v4093 = vmax.f32 %v4029, 0.0
  %v4094 = vmax.f32 %v4030, 0.0
  %v4095 = vmax.f32 %v4031, 0.0
  %v4096 = vmax.f32 %v4032, 0.0
  %v4097 = vmax.f32 %v4033, 0.0
  %v4098 = vmax.f32 %v4034, 0.0
  %v4099 = vmax.f32 %v4035, 0.0
  %4100 = vst.msk [vmem:[%s939 + $0x1] sm:$0xff] %vm217, %v4036
  %4101 = vst.msk [vmem:[%s939 + $0x9] sm:$0xff] %vm217, %v4037
  %4102 = vst.msk [vmem:[%s939 + $0x19] sm:$0xff] %vm217, %v4038
  %4103 = vst.msk [vmem:[%s939 + $0x21] sm:$0xff] %vm217, %v4039
  %4104 = vst.msk [vmem:[%s939 + $0x31] sm:$0xff] %vm217, %v4040
  %4105 = vst.msk [vmem:[%s939 + $0x39] sm:$0xff] %vm217, %v4041
  %4106 = vst.msk [vmem:[%s939 + $0x49] sm:$0xff] %vm217, %v4042
  %4107 = vst.msk [vmem:[%s939 + $0x51] sm:$0xff] %vm217, %v4043
  %4108 = vst.msk [vmem:[%s939 + $0x61] sm:$0xff] %vm217, %v4044
  %4109 = vst.msk [vmem:[%s939 + $0x69] sm:$0xff] %vm217, %v4045
  %4110 = vst.msk [vmem:[%s939 + $0x79] sm:$0xff] %vm217, %v4046
  %4111 = vst.msk [vmem:[%s939 + $0x81] sm:$0xff] %vm217, %v4047
  %4112 = vst.msk [vmem:[%s939 + $0x91] sm:$0xff] %vm217, %v4048
  %4113 = vst.msk [vmem:[%s939 + $0x99] sm:$0xff] %vm217, %v4049
  %4114 = vst.msk [vmem:[%s939 + $0xa9] sm:$0xff] %vm217, %v4050
  %4115 = vst.msk [vmem:[%s939 + $0xb1] sm:$0xff] %vm217, %v4051
  %4116 = vst.msk [vmem:[%s939 + $0xc1] sm:$0xff] %vm217, %v4052
  %4117 = vst.msk [vmem:[%s939 + $0xc9] sm:$0xff] %vm217, %v4053
  %4118 = vst.msk [vmem:[%s939 + $0xd9] sm:$0xff] %vm217, %v4054
  %4119 = vst.msk [vmem:[%s939 + $0xe1] sm:$0xff] %vm217, %v4055
  %4120 = vst.msk [vmem:[%s939 + $0xf1] sm:$0xff] %vm217, %v4056
  %4121 = vst.msk [vmem:[%s939 + $0xf9] sm:$0xff] %vm217, %v4057
  %4122 = vst.msk [vmem:[%s939 + $0x109] sm:$0xff] %vm217, %v4058
  %4123 = vst.msk [vmem:[%s939 + $0x111] sm:$0xff] %vm217, %v4059
  %4124 = vst.msk [vmem:[%s939 + $0x121] sm:$0xff] %vm217, %v4060
  %4125 = vst.msk [vmem:[%s939 + $0x129] sm:$0xff] %vm217, %v4061
  %4126 = vst.msk [vmem:[%s939 + $0x139] sm:$0xff] %vm217, %v4062
  %4127 = vst.msk [vmem:[%s939 + $0x141] sm:$0xff] %vm217, %v4063
  %4128 = vst.msk [vmem:[%s939 + $0x151] sm:$0xff] %vm217, %v4064
  %4129 = vst.msk [vmem:[%s939 + $0x159] sm:$0xff] %vm217, %v4065
  %4130 = vst.msk [vmem:[%s939 + $0x169] sm:$0xff] %vm217, %v4066
  %4131 = vst.msk [vmem:[%s939 + $0x171] sm:$0xff] %vm217, %v4067
  %4132 = vst.msk [vmem:[%s939 + $0x1b1] sm:$0xff] %vm217, %v4068
  %4133 = vst.msk [vmem:[%s939 + $0x1b9] sm:$0xff] %vm217, %v4069
  %4134 = vst.msk [vmem:[%s939 + $0x1c9] sm:$0xff] %vm217, %v4070
  %4135 = vst.msk [vmem:[%s939 + $0x1d1] sm:$0xff] %vm217, %v4071
  %4136 = vst.msk [vmem:[%s939 + $0x1e1] sm:$0xff] %vm217, %v4072
  %4137 = vst.msk [vmem:[%s939 + $0x1e9] sm:$0xff] %vm217, %v4073
  %4138 = vst.msk [vmem:[%s939 + $0x1f9] sm:$0xff] %vm217, %v4074
  %4139 = vst.msk [vmem:[%s939 + $0x201] sm:$0xff] %vm217, %v4075
  %4140 = vst.msk [vmem:[%s939 + $0x211] sm:$0xff] %vm217, %v4076
  %4141 = vst.msk [vmem:[%s939 + $0x219] sm:$0xff] %vm217, %v4077
  %4142 = vst.msk [vmem:[%s939 + $0x229] sm:$0xff] %vm217, %v4078
  %4143 = vst.msk [vmem:[%s939 + $0x231] sm:$0xff] %vm217, %v4079
  %4144 = vst.msk [vmem:[%s939 + $0x241] sm:$0xff] %vm217, %v4080
  %4145 = vst.msk [vmem:[%s939 + $0x249] sm:$0xff] %vm217, %v4081
  %4146 = vst.msk [vmem:[%s939 + $0x259] sm:$0xff] %vm217, %v4082
  %4147 = vst.msk [vmem:[%s939 + $0x261] sm:$0xff] %vm217, %v4083
  %4148 = vst.msk [vmem:[%s939 + $0x271] sm:$0xff] %vm217, %v4084
  %4149 = vst.msk [vmem:[%s939 + $0x279] sm:$0xff] %vm217, %v4085
  %4150 = vst.msk [vmem:[%s939 + $0x289] sm:$0xff] %vm217, %v4086
  %4151 = vst.msk [vmem:[%s939 + $0x291] sm:$0xff] %vm217, %v4087
  %4152 = vst.msk [vmem:[%s939 + $0x2a1] sm:$0xff] %vm217, %v4088
  %4153 = vst.msk [vmem:[%s939 + $0x2a9] sm:$0xff] %vm217, %v4089
  %4154 = vst.msk [vmem:[%s939 + $0x2b9] sm:$0xff] %vm217, %v4090
  %4155 = vst.msk [vmem:[%s939 + $0x2c1] sm:$0xff] %vm217, %v4091
  %4156 = vst.msk [vmem:[%s939 + $0x2d1] sm:$0xff] %vm217, %v4092
  %4157 = vst.msk [vmem:[%s939 + $0x2d9] sm:$0xff] %vm217, %v4093
  %4158 = vst.msk [vmem:[%s939 + $0x2e9] sm:$0xff] %vm217, %v4094
  %4159 = vst.msk [vmem:[%s939 + $0x2f1] sm:$0xff] %vm217, %v4095
  %4160 = vst.msk [vmem:[%s939 + $0x301] sm:$0xff] %vm217, %v4096
  %4161 = vst.msk [vmem:[%s939 + $0x309] sm:$0xff] %vm217, %v4097
  %4162 = vst.msk [vmem:[%s939 + $0x319] sm:$0xff] %vm217, %v4098
  %4163 = vst.msk [vmem:[%s939 + $0x321] sm:$0xff] %vm217, %v4099
  %v4164 = vld [vmem:[#allocation2] sm:$0xff]
  %v4165 = vld [vmem:[#allocation2 + $0x8] sm:$0xff]
  %v4166 = vld [vmem:[#allocation2 + $0x10] sm:$0x3]
  %v4167 = vld [vmem:[#allocation2 + $0x18] sm:$0xff]
  %v4168 = vld [vmem:[#allocation2 + $0x20] sm:$0xff]
  %v4169 = vld [vmem:[#allocation2 + $0x28] sm:$0x3]
  %v4170 = vld [vmem:[#allocation2 + $0x30] sm:$0xff]
  %v4171 = vld [vmem:[#allocation2 + $0x38] sm:$0xff]
  %v4172 = vld [vmem:[#allocation2 + $0x40] sm:$0x3]
  %v4173 = vld [vmem:[#allocation2 + $0x48] sm:$0xff]
  %v4174 = vld [vmem:[#allocation2 + $0x50] sm:$0xff]
  %v4175 = vld [vmem:[#allocation2 + $0x58] sm:$0x3]
  %v4176 = vld [vmem:[#allocation2 + $0x60] sm:$0xff]
  %v4177 = vld [vmem:[#allocation2 + $0x68] sm:$0xff]
  %v4178 = vld [vmem:[#allocation2 + $0x70] sm:$0x3]
  %v4179 = vld [vmem:[#allocation2 + $0x78] sm:$0xff]
  %v4180 = vld [vmem:[#allocation2 + $0x80] sm:$0xff]
  %v4181 = vld [vmem:[#allocation2 + $0x88] sm:$0x3]
  %v4182 = vld [vmem:[#allocation2 + $0x90] sm:$0xff]
  %v4183 = vld [vmem:[#allocation2 + $0x98] sm:$0xff]
  %v4184 = vld [vmem:[#allocation2 + $0xa0] sm:$0x3]
  %v4185 = vld [vmem:[#allocation2 + $0xa8] sm:$0xff]
  %v4186 = vld [vmem:[#allocation2 + $0xb0] sm:$0xff]
  %v4187 = vld [vmem:[#allocation2 + $0xb8] sm:$0x3]
  %v4188 = vld [vmem:[#allocation2 + $0xc0] sm:$0xff]
  %v4189 = vld [vmem:[#allocation2 + $0xc8] sm:$0xff]
  %v4190 = vld [vmem:[#allocation2 + $0xd0] sm:$0x3]
  %v4191 = vld [vmem:[#allocation2 + $0xd8] sm:$0xff]
  %v4192 = vld [vmem:[#allocation2 + $0xe0] sm:$0xff]
  %v4193 = vld [vmem:[#allocation2 + $0xe8] sm:$0x3]
  %v4194 = vld [vmem:[#allocation2 + $0xf0] sm:$0xff]
  %v4195 = vld [vmem:[#allocation2 + $0xf8] sm:$0xff]
  %v4196 = vld [vmem:[#allocation2 + $0x100] sm:$0x3]
  %v4197 = vld [vmem:[#allocation2 + $0x108] sm:$0xff]
  %v4198 = vld [vmem:[#allocation2 + $0x110] sm:$0xff]
  %v4199 = vld [vmem:[#allocation2 + $0x118] sm:$0x3]
  %v4200 = vld [vmem:[#allocation2 + $0x120] sm:$0xff]
  %v4201 = vld [vmem:[#allocation2 + $0x128] sm:$0xff]
  %v4202 = vld [vmem:[#allocation2 + $0x130] sm:$0x3]
  %v4203 = vld [vmem:[#allocation2 + $0x138] sm:$0xff]
  %v4204 = vld [vmem:[#allocation2 + $0x140] sm:$0xff]
  %v4205 = vld [vmem:[#allocation2 + $0x148] sm:$0x3]
  %v4206 = vld [vmem:[#allocation2 + $0x150] sm:$0xff]
  %v4207 = vld [vmem:[#allocation2 + $0x158] sm:$0xff]
  %v4208 = vld [vmem:[#allocation2 + $0x160] sm:$0x3]
  %v4209 = vld [vmem:[#allocation2 + $0x168] sm:$0xff]
  %v4210 = vld [vmem:[#allocation2 + $0x170] sm:$0xff]
  %v4211 = vld [vmem:[#allocation2 + $0x178] sm:$0x3]
  %v4212 = vld [vmem:[#allocation2 + $0x180] sm:$0xff]
  %v4213 = vld [vmem:[#allocation2 + $0x188] sm:$0xff]
  %v4214 = vld [vmem:[#allocation2 + $0x190] sm:$0x3]
  %v4215 = vld [vmem:[#allocation2 + $0x198] sm:$0xff]
  %v4216 = vld [vmem:[#allocation2 + $0x1a0] sm:$0xff]
  %v4217 = vld [vmem:[#allocation2 + $0x1a8] sm:$0x3]
  %v4218 = vld [vmem:[#allocation2 + $0x1b0] sm:$0xff]
  %v4219 = vld [vmem:[#allocation2 + $0x1b8] sm:$0xff]
  %v4220 = vld [vmem:[#allocation2 + $0x1c0] sm:$0x3]
  %v4221 = vld [vmem:[#allocation2 + $0x1c8] sm:$0xff]
  %v4222 = vld [vmem:[#allocation2 + $0x1d0] sm:$0xff]
  %v4223 = vld [vmem:[#allocation2 + $0x1d8] sm:$0x3]
  %v4224 = vld [vmem:[#allocation2 + $0x1e0] sm:$0xff]
  %v4225 = vld [vmem:[#allocation2 + $0x1e8] sm:$0xff]
  %v4226 = vld [vmem:[#allocation2 + $0x1f0] sm:$0x3]
  %v4227 = vld [vmem:[#allocation2 + $0x1f8] sm:$0xff]
  %v4228 = vld [vmem:[#allocation2 + $0x200] sm:$0xff]
  %v4229 = vld [vmem:[#allocation2 + $0x208] sm:$0x3]
  %v4230 = vld [vmem:[#allocation2 + $0x210] sm:$0xff]
  %v4231 = vld [vmem:[#allocation2 + $0x218] sm:$0xff]
  %v4232 = vld [vmem:[#allocation2 + $0x220] sm:$0x3]
  %v4233 = vld [vmem:[#allocation2 + $0x228] sm:$0xff]
  %v4234 = vld [vmem:[#allocation2 + $0x230] sm:$0xff]
  %v4235 = vld [vmem:[#allocation2 + $0x238] sm:$0x3]
  %v4236 = vld [vmem:[#allocation2 + $0x240] sm:$0xff]
  %v4237 = vld [vmem:[#allocation2 + $0x248] sm:$0xff]
  %v4238 = vld [vmem:[#allocation2 + $0x250] sm:$0x3]
  %v4239 = vld [vmem:[#allocation2 + $0x258] sm:$0xff]
  %v4240 = vld [vmem:[#allocation2 + $0x260] sm:$0xff]
  %v4241 = vld [vmem:[#allocation2 + $0x268] sm:$0x3]
  %v4242 = vld [vmem:[#allocation2 + $0x270] sm:$0xff]
  %v4243 = vld [vmem:[#allocation2 + $0x278] sm:$0xff]
  %v4244 = vld [vmem:[#allocation2 + $0x280] sm:$0x3]
  %v4245 = vld [vmem:[#allocation2 + $0x288] sm:$0xff]
  %v4246 = vld [vmem:[#allocation2 + $0x290] sm:$0xff]
  %v4247 = vld [vmem:[#allocation2 + $0x298] sm:$0x3]
  %v4248 = vld [vmem:[#allocation2 + $0x2a0] sm:$0xff]
  %v4249 = vld [vmem:[#allocation2 + $0x2a8] sm:$0xff]
  %v4250 = vld [vmem:[#allocation2 + $0x2b0] sm:$0x3]
  %v4251 = vld [vmem:[#allocation2 + $0x2b8] sm:$0xff]
  %v4252 = vld [vmem:[#allocation2 + $0x2c0] sm:$0xff]
  %v4253 = vld [vmem:[#allocation2 + $0x2c8] sm:$0x3]
  %v4254 = vld [vmem:[#allocation2 + $0x2d0] sm:$0xff]
  %v4255 = vld [vmem:[#allocation2 + $0x2d8] sm:$0xff]
  %v4256 = vld [vmem:[#allocation2 + $0x2e0] sm:$0x3]
  %v4257 = vld [vmem:[#allocation2 + $0x2e8] sm:$0xff]
  %v4258 = vld [vmem:[#allocation2 + $0x2f0] sm:$0xff]
  %v4259 = vld [vmem:[#allocation2 + $0x2f8] sm:$0x3]
  %v4260 = vld [vmem:[#allocation2 + $0x300] sm:$0xff]
  %v4261 = vld [vmem:[#allocation2 + $0x308] sm:$0xff]
  %v4262 = vld [vmem:[#allocation2 + $0x310] sm:$0x3]
  %v4263 = vld [vmem:[#allocation2 + $0x318] sm:$0xff]
  %v4264 = vld [vmem:[#allocation2 + $0x320] sm:$0xff]
  %v4265 = vld [vmem:[#allocation2 + $0x328] sm:$0x3]
  %v4266 = vld [vmem:[#allocation2 + $0x330] sm:$0xff]
  %v4267 = vld [vmem:[#allocation2 + $0x338] sm:$0xff]
  %v4268 = vld [vmem:[#allocation2 + $0x340] sm:$0x3]
  %v4269 = vld [vmem:[#allocation2 + $0x348] sm:$0xff]
  %v4270 = vld [vmem:[#allocation2 + $0x350] sm:$0xff]
  %v4271 = vld [vmem:[#allocation2 + $0x358] sm:$0x3]
  %4368 = vrot.lane.b32.xlu0 %v4167, 4
  %v4369 = vpop.permute.xlu0 %4368
  %4370 = vrot.lane.b32.xlu0 %v4168, 4
  %v4371 = vpop.permute.xlu0 %4370
  %4372 = vrot.lane.b32.xlu0 %v4169, 4
  %v4373 = vpop.permute.xlu0 %4372
  %4374 = vrot.lane.b32.xlu0 %v4170, 4
  %v4375 = vpop.permute.xlu0 %4374
  %4376 = vrot.lane.b32.xlu0 %v4171, 4
  %v4377 = vpop.permute.xlu0 %4376
  %4378 = vrot.lane.b32.xlu0 %v4172, 4
  %v4379 = vpop.permute.xlu0 %4378
  %4380 = vrot.lane.b32.xlu0 %v4173, 4
  %v4381 = vpop.permute.xlu0 %4380
  %4382 = vrot.lane.b32.xlu0 %v4174, 4
  %v4383 = vpop.permute.xlu0 %4382
  %4384 = vrot.lane.b32.xlu0 %v4175, 4
  %v4385 = vpop.permute.xlu0 %4384
  %4386 = vrot.lane.b32.xlu0 %v4176, 4
  %v4387 = vpop.permute.xlu0 %4386
  %4388 = vrot.lane.b32.xlu0 %v4177, 4
  %v4389 = vpop.permute.xlu0 %4388
  %4390 = vrot.lane.b32.xlu0 %v4178, 4
  %v4391 = vpop.permute.xlu0 %4390
  %4392 = vrot.lane.b32.xlu0 %v4179, 4
  %v4393 = vpop.permute.xlu0 %4392
  %4394 = vrot.lane.b32.xlu0 %v4180, 4
  %v4395 = vpop.permute.xlu0 %4394
  %4396 = vrot.lane.b32.xlu0 %v4181, 4
  %v4397 = vpop.permute.xlu0 %4396
  %4398 = vrot.lane.b32.xlu0 %v4182, 4
  %v4399 = vpop.permute.xlu0 %4398
  %4400 = vrot.lane.b32.xlu0 %v4183, 4
  %v4401 = vpop.permute.xlu0 %4400
  %4402 = vrot.lane.b32.xlu0 %v4184, 4
  %v4403 = vpop.permute.xlu0 %4402
  %4404 = vrot.lane.b32.xlu0 %v4185, 4
  %v4405 = vpop.permute.xlu0 %4404
  %4406 = vrot.lane.b32.xlu0 %v4186, 4
  %v4407 = vpop.permute.xlu0 %4406
  %4408 = vrot.lane.b32.xlu0 %v4187, 4
  %v4409 = vpop.permute.xlu0 %4408
  %4410 = vrot.lane.b32.xlu0 %v4188, 4
  %v4411 = vpop.permute.xlu0 %4410
  %4412 = vrot.lane.b32.xlu0 %v4189, 4
  %v4413 = vpop.permute.xlu0 %4412
  %4414 = vrot.lane.b32.xlu0 %v4190, 4
  %v4415 = vpop.permute.xlu0 %4414
  %4416 = vrot.lane.b32.xlu0 %v4191, 4
  %v4417 = vpop.permute.xlu0 %4416
  %4418 = vrot.lane.b32.xlu0 %v4192, 4
  %v4419 = vpop.permute.xlu0 %4418
  %4420 = vrot.lane.b32.xlu0 %v4193, 4
  %v4421 = vpop.permute.xlu0 %4420
  %4422 = vrot.lane.b32.xlu0 %v4194, 4
  %v4423 = vpop.permute.xlu0 %4422
  %4424 = vrot.lane.b32.xlu0 %v4195, 4
  %v4425 = vpop.permute.xlu0 %4424
  %4426 = vrot.lane.b32.xlu0 %v4196, 4
  %v4427 = vpop.permute.xlu0 %4426
  %4428 = vrot.lane.b32.xlu0 %v4197, 4
  %v4429 = vpop.permute.xlu0 %4428
  %4430 = vrot.lane.b32.xlu0 %v4198, 4
  %v4431 = vpop.permute.xlu0 %4430
  %4432 = vrot.lane.b32.xlu0 %v4199, 4
  %v4433 = vpop.permute.xlu0 %4432
  %4434 = vrot.lane.b32.xlu0 %v4200, 4
  %v4435 = vpop.permute.xlu0 %4434
  %4436 = vrot.lane.b32.xlu0 %v4201, 4
  %v4437 = vpop.permute.xlu0 %4436
  %4438 = vrot.lane.b32.xlu0 %v4202, 4
  %v4439 = vpop.permute.xlu0 %4438
  %4440 = vrot.lane.b32.xlu0 %v4203, 4
  %v4441 = vpop.permute.xlu0 %4440
  %4442 = vrot.lane.b32.xlu0 %v4204, 4
  %v4443 = vpop.permute.xlu0 %4442
  %4444 = vrot.lane.b32.xlu0 %v4205, 4
  %v4445 = vpop.permute.xlu0 %4444
  %4446 = vrot.lane.b32.xlu0 %v4206, 4
  %v4447 = vpop.permute.xlu0 %4446
  %4448 = vrot.lane.b32.xlu0 %v4207, 4
  %v4449 = vpop.permute.xlu0 %4448
  %4450 = vrot.lane.b32.xlu0 %v4208, 4
  %v4451 = vpop.permute.xlu0 %4450
  %4452 = vrot.lane.b32.xlu0 %v4209, 4
  %v4453 = vpop.permute.xlu0 %4452
  %4454 = vrot.lane.b32.xlu0 %v4210, 4
  %v4455 = vpop.permute.xlu0 %4454
  %4456 = vrot.lane.b32.xlu0 %v4211, 4
  %v4457 = vpop.permute.xlu0 %4456
  %4458 = vrot.lane.b32.xlu0 %v4212, 4
  %v4459 = vpop.permute.xlu0 %4458
  %4460 = vrot.lane.b32.xlu0 %v4213, 4
  %v4461 = vpop.permute.xlu0 %4460
  %4462 = vrot.lane.b32.xlu0 %v4214, 4
  %v4463 = vpop.permute.xlu0 %4462
  %4464 = vrot.lane.b32.xlu0 %v4221, 4
  %v4465 = vpop.permute.xlu0 %4464
  %4466 = vrot.lane.b32.xlu0 %v4222, 4
  %v4467 = vpop.permute.xlu0 %4466
  %4468 = vrot.lane.b32.xlu0 %v4223, 4
  %v4469 = vpop.permute.xlu0 %4468
  %4470 = vrot.lane.b32.xlu0 %v4224, 4
  %v4471 = vpop.permute.xlu0 %4470
  %4472 = vrot.lane.b32.xlu0 %v4225, 4
  %v4473 = vpop.permute.xlu0 %4472
  %4474 = vrot.lane.b32.xlu0 %v4226, 4
  %v4475 = vpop.permute.xlu0 %4474
  %4476 = vrot.lane.b32.xlu0 %v4227, 4
  %v4477 = vpop.permute.xlu0 %4476
  %4478 = vrot.lane.b32.xlu0 %v4228, 4
  %v4479 = vpop.permute.xlu0 %4478
  %4480 = vrot.lane.b32.xlu0 %v4229, 4
  %v4481 = vpop.permute.xlu0 %4480
  %4482 = vrot.lane.b32.xlu0 %v4230, 4
  %v4483 = vpop.permute.xlu0 %4482
  %4484 = vrot.lane.b32.xlu0 %v4231, 4
  %v4485 = vpop.permute.xlu0 %4484
  %4486 = vrot.lane.b32.xlu0 %v4232, 4
  %v4487 = vpop.permute.xlu0 %4486
  %4488 = vrot.lane.b32.xlu0 %v4233, 4
  %v4489 = vpop.permute.xlu0 %4488
  %4490 = vrot.lane.b32.xlu0 %v4234, 4
  %v4491 = vpop.permute.xlu0 %4490
  %4492 = vrot.lane.b32.xlu0 %v4235, 4
  %v4493 = vpop.permute.xlu0 %4492
  %4494 = vrot.lane.b32.xlu0 %v4236, 4
  %v4495 = vpop.permute.xlu0 %4494
  %4496 = vrot.lane.b32.xlu0 %v4237, 4
  %v4497 = vpop.permute.xlu0 %4496
  %4498 = vrot.lane.b32.xlu0 %v4238, 4
  %v4499 = vpop.permute.xlu0 %4498
  %4500 = vrot.lane.b32.xlu0 %v4239, 4
  %v4501 = vpop.permute.xlu0 %4500
  %4502 = vrot.lane.b32.xlu0 %v4240, 4
  %v4503 = vpop.permute.xlu0 %4502
  %4504 = vrot.lane.b32.xlu0 %v4241, 4
  %v4505 = vpop.permute.xlu0 %4504
  %4506 = vrot.lane.b32.xlu0 %v4242, 4
  %v4507 = vpop.permute.xlu0 %4506
  %4508 = vrot.lane.b32.xlu0 %v4243, 4
  %v4509 = vpop.permute.xlu0 %4508
  %4510 = vrot.lane.b32.xlu0 %v4244, 4
  %v4511 = vpop.permute.xlu0 %4510
  %4512 = vrot.lane.b32.xlu0 %v4245, 4
  %v4513 = vpop.permute.xlu0 %4512
  %4514 = vrot.lane.b32.xlu0 %v4246, 4
  %v4515 = vpop.permute.xlu0 %4514
  %4516 = vrot.lane.b32.xlu0 %v4247, 4
  %v4517 = vpop.permute.xlu0 %4516
  %4518 = vrot.lane.b32.xlu0 %v4248, 4
  %v4519 = vpop.permute.xlu0 %4518
  %4520 = vrot.lane.b32.xlu0 %v4249, 4
  %v4521 = vpop.permute.xlu0 %4520
  %4522 = vrot.lane.b32.xlu0 %v4250, 4
  %v4523 = vpop.permute.xlu0 %4522
  %4524 = vrot.lane.b32.xlu0 %v4251, 4
  %v4525 = vpop.permute.xlu0 %4524
  %4526 = vrot.lane.b32.xlu0 %v4252, 4
  %v4527 = vpop.permute.xlu0 %4526
  %4528 = vrot.lane.b32.xlu0 %v4253, 4
  %v4529 = vpop.permute.xlu0 %4528
  %4530 = vrot.lane.b32.xlu0 %v4254, 4
  %v4531 = vpop.permute.xlu0 %4530
  %4532 = vrot.lane.b32.xlu0 %v4255, 4
  %v4533 = vpop.permute.xlu0 %4532
  %4534 = vrot.lane.b32.xlu0 %v4256, 4
  %v4535 = vpop.permute.xlu0 %4534
  %4536 = vrot.lane.b32.xlu0 %v4257, 4
  %v4537 = vpop.permute.xlu0 %4536
  %4538 = vrot.lane.b32.xlu0 %v4258, 4
  %v4539 = vpop.permute.xlu0 %4538
  %4540 = vrot.lane.b32.xlu0 %v4259, 4
  %v4541 = vpop.permute.xlu0 %4540
  %4542 = vrot.lane.b32.xlu0 %v4260, 4
  %v4543 = vpop.permute.xlu0 %4542
  %4544 = vrot.lane.b32.xlu0 %v4261, 4
  %v4545 = vpop.permute.xlu0 %4544
  %4546 = vrot.lane.b32.xlu0 %v4262, 4
  %v4547 = vpop.permute.xlu0 %4546
  %4548 = vrot.lane.b32.xlu0 %v4263, 4
  %v4549 = vpop.permute.xlu0 %4548
  %4550 = vrot.lane.b32.xlu0 %v4264, 4
  %v4551 = vpop.permute.xlu0 %4550
  %4552 = vrot.lane.b32.xlu0 %v4265, 4
  %v4553 = vpop.permute.xlu0 %4552
  %4554 = vrot.lane.b32.xlu0 %v4266, 4
  %v4555 = vpop.permute.xlu0 %4554
  %4556 = vrot.lane.b32.xlu0 %v4267, 4
  %v4557 = vpop.permute.xlu0 %4556
  %4558 = vrot.lane.b32.xlu0 %v4268, 4
  %v4559 = vpop.permute.xlu0 %4558
  %4662 = vrot.lane.b32.xlu0 %v4170, 8
  %v4663 = vpop.permute.xlu0 %4662
  %4664 = vrot.lane.b32.xlu0 %v4171, 8
  %v4665 = vpop.permute.xlu0 %4664
  %4666 = vrot.lane.b32.xlu0 %v4172, 8
  %v4667 = vpop.permute.xlu0 %4666
  %4668 = vrot.lane.b32.xlu0 %v4173, 8
  %v4669 = vpop.permute.xlu0 %4668
  %4670 = vrot.lane.b32.xlu0 %v4174, 8
  %v4671 = vpop.permute.xlu0 %4670
  %4672 = vrot.lane.b32.xlu0 %v4175, 8
  %v4673 = vpop.permute.xlu0 %4672
  %4674 = vrot.lane.b32.xlu0 %v4176, 8
  %v4675 = vpop.permute.xlu0 %4674
  %4676 = vrot.lane.b32.xlu0 %v4177, 8
  %v4677 = vpop.permute.xlu0 %4676
  %4678 = vrot.lane.b32.xlu0 %v4178, 8
  %v4679 = vpop.permute.xlu0 %4678
  %4680 = vrot.lane.b32.xlu0 %v4179, 8
  %v4681 = vpop.permute.xlu0 %4680
  %4682 = vrot.lane.b32.xlu0 %v4180, 8
  %v4683 = vpop.permute.xlu0 %4682
  %4684 = vrot.lane.b32.xlu0 %v4181, 8
  %v4685 = vpop.permute.xlu0 %4684
  %4686 = vrot.lane.b32.xlu0 %v4182, 8
  %v4687 = vpop.permute.xlu0 %4686
  %4688 = vrot.lane.b32.xlu0 %v4183, 8
  %v4689 = vpop.permute.xlu0 %4688
  %4690 = vrot.lane.b32.xlu0 %v4184, 8
  %v4691 = vpop.permute.xlu0 %4690
  %4692 = vrot.lane.b32.xlu0 %v4185, 8
  %v4693 = vpop.permute.xlu0 %4692
  %4694 = vrot.lane.b32.xlu0 %v4186, 8
  %v4695 = vpop.permute.xlu0 %4694
  %4696 = vrot.lane.b32.xlu0 %v4187, 8
  %v4697 = vpop.permute.xlu0 %4696
  %4698 = vrot.lane.b32.xlu0 %v4188, 8
  %v4699 = vpop.permute.xlu0 %4698
  %4700 = vrot.lane.b32.xlu0 %v4189, 8
  %v4701 = vpop.permute.xlu0 %4700
  %4702 = vrot.lane.b32.xlu0 %v4190, 8
  %v4703 = vpop.permute.xlu0 %4702
  %4704 = vrot.lane.b32.xlu0 %v4191, 8
  %v4705 = vpop.permute.xlu0 %4704
  %4706 = vrot.lane.b32.xlu0 %v4192, 8
  %v4707 = vpop.permute.xlu0 %4706
  %4708 = vrot.lane.b32.xlu0 %v4193, 8
  %v4709 = vpop.permute.xlu0 %4708
  %4710 = vrot.lane.b32.xlu0 %v4194, 8
  %v4711 = vpop.permute.xlu0 %4710
  %4712 = vrot.lane.b32.xlu0 %v4195, 8
  %v4713 = vpop.permute.xlu0 %4712
  %4714 = vrot.lane.b32.xlu0 %v4196, 8
  %v4715 = vpop.permute.xlu0 %4714
  %4716 = vrot.lane.b32.xlu0 %v4197, 8
  %v4717 = vpop.permute.xlu0 %4716
  %4718 = vrot.lane.b32.xlu0 %v4198, 8
  %v4719 = vpop.permute.xlu0 %4718
  %4720 = vrot.lane.b32.xlu0 %v4199, 8
  %v4721 = vpop.permute.xlu0 %4720
  %4722 = vrot.lane.b32.xlu0 %v4200, 8
  %v4723 = vpop.permute.xlu0 %4722
  %4724 = vrot.lane.b32.xlu0 %v4201, 8
  %v4725 = vpop.permute.xlu0 %4724
  %4726 = vrot.lane.b32.xlu0 %v4202, 8
  %v4727 = vpop.permute.xlu0 %4726
  %4728 = vrot.lane.b32.xlu0 %v4203, 8
  %v4729 = vpop.permute.xlu0 %4728
  %4730 = vrot.lane.b32.xlu0 %v4204, 8
  %v4731 = vpop.permute.xlu0 %4730
  %4732 = vrot.lane.b32.xlu0 %v4205, 8
  %v4733 = vpop.permute.xlu0 %4732
  %4734 = vrot.lane.b32.xlu0 %v4206, 8
  %v4735 = vpop.permute.xlu0 %4734
  %4736 = vrot.lane.b32.xlu0 %v4207, 8
  %v4737 = vpop.permute.xlu0 %4736
  %4738 = vrot.lane.b32.xlu0 %v4208, 8
  %v4739 = vpop.permute.xlu0 %4738
  %4740 = vrot.lane.b32.xlu0 %v4209, 8
  %v4741 = vpop.permute.xlu0 %4740
  %4742 = vrot.lane.b32.xlu0 %v4210, 8
  %v4743 = vpop.permute.xlu0 %4742
  %4744 = vrot.lane.b32.xlu0 %v4211, 8
  %v4745 = vpop.permute.xlu0 %4744
  %4746 = vrot.lane.b32.xlu0 %v4212, 8
  %v4747 = vpop.permute.xlu0 %4746
  %4748 = vrot.lane.b32.xlu0 %v4213, 8
  %v4749 = vpop.permute.xlu0 %4748
  %4750 = vrot.lane.b32.xlu0 %v4214, 8
  %v4751 = vpop.permute.xlu0 %4750
  %4752 = vrot.lane.b32.xlu0 %v4215, 8
  %v4753 = vpop.permute.xlu0 %4752
  %4754 = vrot.lane.b32.xlu0 %v4216, 8
  %v4755 = vpop.permute.xlu0 %4754
  %4756 = vrot.lane.b32.xlu0 %v4217, 8
  %v4757 = vpop.permute.xlu0 %4756
  %4758 = vrot.lane.b32.xlu0 %v4224, 8
  %v4759 = vpop.permute.xlu0 %4758
  %4760 = vrot.lane.b32.xlu0 %v4225, 8
  %v4761 = vpop.permute.xlu0 %4760
  %4762 = vrot.lane.b32.xlu0 %v4226, 8
  %v4763 = vpop.permute.xlu0 %4762
  %4764 = vrot.lane.b32.xlu0 %v4227, 8
  %v4765 = vpop.permute.xlu0 %4764
  %4766 = vrot.lane.b32.xlu0 %v4228, 8
  %v4767 = vpop.permute.xlu0 %4766
  %4768 = vrot.lane.b32.xlu0 %v4229, 8
  %v4769 = vpop.permute.xlu0 %4768
  %4770 = vrot.lane.b32.xlu0 %v4230, 8
  %v4771 = vpop.permute.xlu0 %4770
  %4772 = vrot.lane.b32.xlu0 %v4231, 8
  %v4773 = vpop.permute.xlu0 %4772
  %4774 = vrot.lane.b32.xlu0 %v4232, 8
  %v4775 = vpop.permute.xlu0 %4774
  %4776 = vrot.lane.b32.xlu0 %v4233, 8
  %v4777 = vpop.permute.xlu0 %4776
  %4778 = vrot.lane.b32.xlu0 %v4234, 8
  %v4779 = vpop.permute.xlu0 %4778
  %4780 = vrot.lane.b32.xlu0 %v4235, 8
  %v4781 = vpop.permute.xlu0 %4780
  %4782 = vrot.lane.b32.xlu0 %v4236, 8
  %v4783 = vpop.permute.xlu0 %4782
  %4784 = vrot.lane.b32.xlu0 %v4237, 8
  %v4785 = vpop.permute.xlu0 %4784
  %4786 = vrot.lane.b32.xlu0 %v4238, 8
  %v4787 = vpop.permute.xlu0 %4786
  %4788 = vrot.lane.b32.xlu0 %v4239, 8
  %v4789 = vpop.permute.xlu0 %4788
  %4790 = vrot.lane.b32.xlu0 %v4240, 8
  %v4791 = vpop.permute.xlu0 %4790
  %4792 = vrot.lane.b32.xlu0 %v4241, 8
  %v4793 = vpop.permute.xlu0 %4792
  %4794 = vrot.lane.b32.xlu0 %v4242, 8
  %v4795 = vpop.permute.xlu0 %4794
  %4796 = vrot.lane.b32.xlu0 %v4243, 8
  %v4797 = vpop.permute.xlu0 %4796
  %4798 = vrot.lane.b32.xlu0 %v4244, 8
  %v4799 = vpop.permute.xlu0 %4798
  %4800 = vrot.lane.b32.xlu0 %v4245, 8
  %v4801 = vpop.permute.xlu0 %4800
  %4802 = vrot.lane.b32.xlu0 %v4246, 8
  %v4803 = vpop.permute.xlu0 %4802
  %4804 = vrot.lane.b32.xlu0 %v4247, 8
  %v4805 = vpop.permute.xlu0 %4804
  %4806 = vrot.lane.b32.xlu0 %v4248, 8
  %v4807 = vpop.permute.xlu0 %4806
  %4808 = vrot.lane.b32.xlu0 %v4249, 8
  %v4809 = vpop.permute.xlu0 %4808
  %4810 = vrot.lane.b32.xlu0 %v4250, 8
  %v4811 = vpop.permute.xlu0 %4810
  %4812 = vrot.lane.b32.xlu0 %v4251, 8
  %v4813 = vpop.permute.xlu0 %4812
  %4814 = vrot.lane.b32.xlu0 %v4252, 8
  %v4815 = vpop.permute.xlu0 %4814
  %4816 = vrot.lane.b32.xlu0 %v4253, 8
  %v4817 = vpop.permute.xlu0 %4816
  %4818 = vrot.lane.b32.xlu0 %v4254, 8
  %v4819 = vpop.permute.xlu0 %4818
  %4820 = vrot.lane.b32.xlu0 %v4255, 8
  %v4821 = vpop.permute.xlu0 %4820
  %4822 = vrot.lane.b32.xlu0 %v4256, 8
  %v4823 = vpop.permute.xlu0 %4822
  %4824 = vrot.lane.b32.xlu0 %v4257, 8
  %v4825 = vpop.permute.xlu0 %4824
  %4826 = vrot.lane.b32.xlu0 %v4258, 8
  %v4827 = vpop.permute.xlu0 %4826
  %4828 = vrot.lane.b32.xlu0 %v4259, 8
  %v4829 = vpop.permute.xlu0 %4828
  %4830 = vrot.lane.b32.xlu0 %v4260, 8
  %v4831 = vpop.permute.xlu0 %4830
  %4832 = vrot.lane.b32.xlu0 %v4261, 8
  %v4833 = vpop.permute.xlu0 %4832
  %4834 = vrot.lane.b32.xlu0 %v4262, 8
  %v4835 = vpop.permute.xlu0 %4834
  %4836 = vrot.lane.b32.xlu0 %v4263, 8
  %v4837 = vpop.permute.xlu0 %4836
  %4838 = vrot.lane.b32.xlu0 %v4264, 8
  %v4839 = vpop.permute.xlu0 %4838
  %4840 = vrot.lane.b32.xlu0 %v4265, 8
  %v4841 = vpop.permute.xlu0 %4840
  %4842 = vrot.lane.b32.xlu0 %v4266, 8
  %v4843 = vpop.permute.xlu0 %4842
  %4844 = vrot.lane.b32.xlu0 %v4267, 8
  %v4845 = vpop.permute.xlu0 %4844
  %4846 = vrot.lane.b32.xlu0 %v4268, 8
  %v4847 = vpop.permute.xlu0 %4846
  %4848 = vrot.lane.b32.xlu0 %v4269, 8
  %v4849 = vpop.permute.xlu0 %4848
  %4850 = vrot.lane.b32.xlu0 %v4270, 8
  %v4851 = vpop.permute.xlu0 %4850
  %4852 = vrot.lane.b32.xlu0 %v4271, 8
  %v4853 = vpop.permute.xlu0 %4852
  %v4950 = vsel %vm217, %v4164, %v4369
  %v4951 = vsel %vm217, %v4165, %v4371
  %v4952 = vsel %vm217, %v4166, %v4373
  %v4953 = vsel %vm217, %v4167, %v4375
  %v4954 = vsel %vm217, %v4168, %v4377
  %v4955 = vsel %vm217, %v4169, %v4379
  %v4956 = vsel %vm217, %v4170, %v4381
  %v4957 = vsel %vm217, %v4171, %v4383
  %v4958 = vsel %vm217, %v4172, %v4385
  %v4959 = vsel %vm217, %v4173, %v4387
  %v4960 = vsel %vm217, %v4174, %v4389
  %v4961 = vsel %vm217, %v4175, %v4391
  %v4962 = vsel %vm217, %v4176, %v4393
  %v4963 = vsel %vm217, %v4177, %v4395
  %v4964 = vsel %vm217, %v4178, %v4397
  %v4965 = vsel %vm217, %v4179, %v4399
  %v4966 = vsel %vm217, %v4180, %v4401
  %v4967 = vsel %vm217, %v4181, %v4403
  %v4968 = vsel %vm217, %v4182, %v4405
  %v4969 = vsel %vm217, %v4183, %v4407
  %v4970 = vsel %vm217, %v4184, %v4409
  %v4971 = vsel %vm217, %v4185, %v4411
  %v4972 = vsel %vm217, %v4186, %v4413
  %v4973 = vsel %vm217, %v4187, %v4415
  %v4974 = vsel %vm217, %v4188, %v4417
  %v4975 = vsel %vm217, %v4189, %v4419
  %v4976 = vsel %vm217, %v4190, %v4421
  %v4977 = vsel %vm217, %v4191, %v4423
  %v4978 = vsel %vm217, %v4192, %v4425
  %v4979 = vsel %vm217, %v4193, %v4427
  %v4980 = vsel %vm217, %v4194, %v4429
  %v4981 = vsel %vm217, %v4195, %v4431
  %v4982 = vsel %vm217, %v4196, %v4433
  %v4983 = vsel %vm217, %v4197, %v4435
  %v4984 = vsel %vm217, %v4198, %v4437
  %v4985 = vsel %vm217, %v4199, %v4439
  %v4986 = vsel %vm217, %v4200, %v4441
  %v4987 = vsel %vm217, %v4201, %v4443
  %v4988 = vsel %vm217, %v4202, %v4445
  %v4989 = vsel %vm217, %v4203, %v4447
  %v4990 = vsel %vm217, %v4204, %v4449
  %v4991 = vsel %vm217, %v4205, %v4451
  %v4992 = vsel %vm217, %v4206, %v4453
  %v4993 = vsel %vm217, %v4207, %v4455
  %v4994 = vsel %vm217, %v4208, %v4457
  %v4995 = vsel %vm217, %v4209, %v4459
  %v4996 = vsel %vm217, %v4210, %v4461
  %v4997 = vsel %vm217, %v4211, %v4463
  %v4998 = vsel %vm217, %v4218, %v4465
  %v4999 = vsel %vm217, %v4219, %v4467
  %v5000 = vsel %vm217, %v4220, %v4469
  %v5001 = vsel %vm217, %v4221, %v4471
  %v5002 = vsel %vm217, %v4222, %v4473
  %v5003 = vsel %vm217, %v4223, %v4475
  %v5004 = vsel %vm217, %v4224, %v4477
  %v5005 = vsel %vm217, %v4225, %v4479
  %v5006 = vsel %vm217, %v4226, %v4481
  %v5007 = vsel %vm217, %v4227, %v4483
  %v5008 = vsel %vm217, %v4228, %v4485
  %v5009 = vsel %vm217, %v4229, %v4487
  %v5010 = vsel %vm217, %v4230, %v4489
  %v5011 = vsel %vm217, %v4231, %v4491
  %v5012 = vsel %vm217, %v4232, %v4493
  %v5013 = vsel %vm217, %v4233, %v4495
  %v5014 = vsel %vm217, %v4234, %v4497
  %v5015 = vsel %vm217, %v4235, %v4499
  %v5016 = vsel %vm217, %v4236, %v4501
  %v5017 = vsel %vm217, %v4237, %v4503
  %v5018 = vsel %vm217, %v4238, %v4505
  %v5019 = vsel %vm217, %v4239, %v4507
  %v5020 = vsel %vm217, %v4240, %v4509
  %v5021 = vsel %vm217, %v4241, %v4511
  %v5022 = vsel %vm217, %v4242, %v4513
  %v5023 = vsel %vm217, %v4243, %v4515
  %v5024 = vsel %vm217, %v4244, %v4517
  %v5025 = vsel %vm217, %v4245, %v4519
  %v5026 = vsel %vm217, %v4246, %v4521
  %v5027 = vsel %vm217, %v4247, %v4523
  %v5028 = vsel %vm217, %v4248, %v4525
  %v5029 = vsel %vm217, %v4249, %v4527
  %v5030 = vsel %vm217, %v4250, %v4529
  %v5031 = vsel %vm217, %v4251, %v4531
  %v5032 = vsel %vm217, %v4252, %v4533
  %v5033 = vsel %vm217, %v4253, %v4535
  %v5034 = vsel %vm217, %v4254, %v4537
  %v5035 = vsel %vm217, %v4255, %v4539
  %v5036 = vsel %vm217, %v4256, %v4541
  %v5037 = vsel %vm217, %v4257, %v4543
  %v5038 = vsel %vm217, %v4258, %v4545
  %v5039 = vsel %vm217, %v4259, %v4547
  %v5040 = vsel %vm217, %v4260, %v4549
  %v5041 = vsel %vm217, %v4261, %v4551
  %v5042 = vsel %vm217, %v4262, %v4553
  %v5043 = vsel %vm217, %v4263, %v4555
  %v5044 = vsel %vm217, %v4264, %v4557
  %v5045 = vsel %vm217, %v4265, %v4559
  %v5046 = vsel %vm1886, %v4950, %v4663
  %v5047 = vsel %vm1886, %v4951, %v4665
  %v5048 = vsel %vm1886, %v4952, %v4667
  %v5049 = vsel %vm1886, %v4953, %v4669
  %v5050 = vsel %vm1886, %v4954, %v4671
  %v5051 = vsel %vm1886, %v4955, %v4673
  %v5052 = vsel %vm1886, %v4956, %v4675
  %v5053 = vsel %vm1886, %v4957, %v4677
  %v5054 = vsel %vm1886, %v4958, %v4679
  %v5055 = vsel %vm1886, %v4959, %v4681
  %v5056 = vsel %vm1886, %v4960, %v4683
  %v5057 = vsel %vm1886, %v4961, %v4685
  %v5058 = vsel %vm1886, %v4962, %v4687
  %v5059 = vsel %vm1886, %v4963, %v4689
  %v5060 = vsel %vm1886, %v4964, %v4691
  %v5061 = vsel %vm1886, %v4965, %v4693
  %v5062 = vsel %vm1886, %v4966, %v4695
  %v5063 = vsel %vm1886, %v4967, %v4697
  %v5064 = vsel %vm1886, %v4968, %v4699
  %v5065 = vsel %vm1886, %v4969, %v4701
  %v5066 = vsel %vm1886, %v4970, %v4703
  %v5067 = vsel %vm1886, %v4971, %v4705
  %v5068 = vsel %vm1886, %v4972, %v4707
  %v5069 = vsel %vm1886, %v4973, %v4709
  %v5070 = vsel %vm1886, %v4974, %v4711
  %v5071 = vsel %vm1886, %v4975, %v4713
  %v5072 = vsel %vm1886, %v4976, %v4715
  %v5073 = vsel %vm1886, %v4977, %v4717
  %v5074 = vsel %vm1886, %v4978, %v4719
  %v5075 = vsel %vm1886, %v4979, %v4721
  %v5076 = vsel %vm1886, %v4980, %v4723
  %v5077 = vsel %vm1886, %v4981, %v4725
  %v5078 = vsel %vm1886, %v4982, %v4727
  %v5079 = vsel %vm1886, %v4983, %v4729
  %v5080 = vsel %vm1886, %v4984, %v4731
  %v5081 = vsel %vm1886, %v4985, %v4733
  %v5082 = vsel %vm1886, %v4986, %v4735
  %v5083 = vsel %vm1886, %v4987, %v4737
  %v5084 = vsel %vm1886, %v4988, %v4739
  %v5085 = vsel %vm1886, %v4989, %v4741
  %v5086 = vsel %vm1886, %v4990, %v4743
  %v5087 = vsel %vm1886, %v4991, %v4745
  %v5088 = vsel %vm1886, %v4992, %v4747
  %v5089 = vsel %vm1886, %v4993, %v4749
  %v5090 = vsel %vm1886, %v4994, %v4751
  %v5091 = vsel %vm1886, %v4995, %v4753
  %v5092 = vsel %vm1886, %v4996, %v4755
  %v5093 = vsel %vm1886, %v4997, %v4757
  %v5094 = vsel %vm1886, %v4998, %v4759
  %v5095 = vsel %vm1886, %v4999, %v4761
  %v5096 = vsel %vm1886, %v5000, %v4763
  %v5097 = vsel %vm1886, %v5001, %v4765
  %v5098 = vsel %vm1886, %v5002, %v4767
  %v5099 = vsel %vm1886, %v5003, %v4769
  %v5100 = vsel %vm1886, %v5004, %v4771
  %v5101 = vsel %vm1886, %v5005, %v4773
  %v5102 = vsel %vm1886, %v5006, %v4775
  %v5103 = vsel %vm1886, %v5007, %v4777
  %v5104 = vsel %vm1886, %v5008, %v4779
  %v5105 = vsel %vm1886, %v5009, %v4781
  %v5106 = vsel %vm1886, %v5010, %v4783
  %v5107 = vsel %vm1886, %v5011, %v4785
  %v5108 = vsel %vm1886, %v5012, %v4787
  %v5109 = vsel %vm1886, %v5013, %v4789
  %v5110 = vsel %vm1886, %v5014, %v4791
  %v5111 = vsel %vm1886, %v5015, %v4793
  %v5112 = vsel %vm1886, %v5016, %v4795
  %v5113 = vsel %vm1886, %v5017, %v4797
  %v5114 = vsel %vm1886, %v5018, %v4799
  %v5115 = vsel %vm1886, %v5019, %v4801
  %v5116 = vsel %vm1886, %v5020, %v4803
  %v5117 = vsel %vm1886, %v5021, %v4805
  %v5118 = vsel %vm1886, %v5022, %v4807
  %v5119 = vsel %vm1886, %v5023, %v4809
  %v5120 = vsel %vm1886, %v5024, %v4811
  %v5121 = vsel %vm1886, %v5025, %v4813
  %v5122 = vsel %vm1886, %v5026, %v4815
  %v5123 = vsel %vm1886, %v5027, %v4817
  %v5124 = vsel %vm1886, %v5028, %v4819
  %v5125 = vsel %vm1886, %v5029, %v4821
  %v5126 = vsel %vm1886, %v5030, %v4823
  %v5127 = vsel %vm1886, %v5031, %v4825
  %v5128 = vsel %vm1886, %v5032, %v4827
  %v5129 = vsel %vm1886, %v5033, %v4829
  %v5130 = vsel %vm1886, %v5034, %v4831
  %v5131 = vsel %vm1886, %v5035, %v4833
  %v5132 = vsel %vm1886, %v5036, %v4835
  %v5133 = vsel %vm1886, %v5037, %v4837
  %v5134 = vsel %vm1886, %v5038, %v4839
  %v5135 = vsel %vm1886, %v5039, %v4841
  %v5136 = vsel %vm1886, %v5040, %v4843
  %v5137 = vsel %vm1886, %v5041, %v4845
  %v5138 = vsel %vm1886, %v5042, %v4847
  %v5139 = vsel %vm1886, %v5043, %v4849
  %v5140 = vsel %vm1886, %v5044, %v4851
  %v5141 = vsel %vm1886, %v5045, %v4853
  %v5238 = vrot.slane %v5046, 1
  %v5239 = vrot.slane %v5047, 1
  %v5240 = vsel %vm2079, %v5238, %v5239
  %v5241 = vrot.slane %v5048, 1
  %v5242 = vsel %vm2079, %v5239, %v5241
  %v5243 = vrot.slane %v5049, 1
  %v5244 = vrot.slane %v5050, 1
  %v5245 = vsel %vm2079, %v5243, %v5244
  %v5246 = vrot.slane %v5051, 1
  %v5247 = vsel %vm2079, %v5244, %v5246
  %v5248 = vrot.slane %v5052, 1
  %v5249 = vrot.slane %v5053, 1
  %v5250 = vsel %vm2079, %v5248, %v5249
  %v5251 = vrot.slane %v5054, 1
  %v5252 = vsel %vm2079, %v5249, %v5251
  %v5253 = vrot.slane %v5055, 1
  %v5254 = vrot.slane %v5056, 1
  %v5255 = vsel %vm2079, %v5253, %v5254
  %v5256 = vrot.slane %v5057, 1
  %v5257 = vsel %vm2079, %v5254, %v5256
  %v5258 = vrot.slane %v5058, 1
  %v5259 = vrot.slane %v5059, 1
  %v5260 = vsel %vm2079, %v5258, %v5259
  %v5261 = vrot.slane %v5060, 1
  %v5262 = vsel %vm2079, %v5259, %v5261
  %v5263 = vrot.slane %v5061, 1
  %v5264 = vrot.slane %v5062, 1
  %v5265 = vsel %vm2079, %v5263, %v5264
  %v5266 = vrot.slane %v5063, 1
  %v5267 = vsel %vm2079, %v5264, %v5266
  %v5268 = vrot.slane %v5064, 1
  %v5269 = vrot.slane %v5065, 1
  %v5270 = vsel %vm2079, %v5268, %v5269
  %v5271 = vrot.slane %v5066, 1
  %v5272 = vsel %vm2079, %v5269, %v5271
  %v5273 = vrot.slane %v5067, 1
  %v5274 = vrot.slane %v5068, 1
  %v5275 = vsel %vm2079, %v5273, %v5274
  %v5276 = vrot.slane %v5069, 1
  %v5277 = vsel %vm2079, %v5274, %v5276
  %v5278 = vrot.slane %v5070, 1
  %v5279 = vrot.slane %v5071, 1
  %v5280 = vsel %vm2079, %v5278, %v5279
  %v5281 = vrot.slane %v5072, 1
  %v5282 = vsel %vm2079, %v5279, %v5281
  %v5283 = vrot.slane %v5073, 1
  %v5284 = vrot.slane %v5074, 1
  %v5285 = vsel %vm2079, %v5283, %v5284
  %v5286 = vrot.slane %v5075, 1
  %v5287 = vsel %vm2079, %v5284, %v5286
  %v5288 = vrot.slane %v5076, 1
  %v5289 = vrot.slane %v5077, 1
  %v5290 = vsel %vm2079, %v5288, %v5289
  %v5291 = vrot.slane %v5078, 1
  %v5292 = vsel %vm2079, %v5289, %v5291
  %v5293 = vrot.slane %v5079, 1
  %v5294 = vrot.slane %v5080, 1
  %v5295 = vsel %vm2079, %v5293, %v5294
  %v5296 = vrot.slane %v5081, 1
  %v5297 = vsel %vm2079, %v5294, %v5296
  %v5298 = vrot.slane %v5082, 1
  %v5299 = vrot.slane %v5083, 1
  %v5300 = vsel %vm2079, %v5298, %v5299
  %v5301 = vrot.slane %v5084, 1
  %v5302 = vsel %vm2079, %v5299, %v5301
  %v5303 = vrot.slane %v5085, 1
  %v5304 = vrot.slane %v5086, 1
  %v5305 = vsel %vm2079, %v5303, %v5304
  %v5306 = vrot.slane %v5087, 1
  %v5307 = vsel %vm2079, %v5304, %v5306
  %v5308 = vrot.slane %v5088, 1
  %v5309 = vrot.slane %v5089, 1
  %v5310 = vsel %vm2079, %v5308, %v5309
  %v5311 = vrot.slane %v5090, 1
  %v5312 = vsel %vm2079, %v5309, %v5311
  %v5313 = vrot.slane %v5091, 1
  %v5314 = vrot.slane %v5092, 1
  %v5315 = vsel %vm2079, %v5313, %v5314
  %v5316 = vrot.slane %v5093, 1
  %v5317 = vsel %vm2079, %v5314, %v5316
  %v5318 = vrot.slane %v5094, 1
  %v5319 = vrot.slane %v5095, 1
  %v5320 = vsel %vm2079, %v5318, %v5319
  %v5321 = vrot.slane %v5096, 1
  %v5322 = vsel %vm2079, %v5319, %v5321
  %v5323 = vrot.slane %v5097, 1
  %v5324 = vrot.slane %v5098, 1
  %v5325 = vsel %vm2079, %v5323, %v5324
  %v5326 = vrot.slane %v5099, 1
  %v5327 = vsel %vm2079, %v5324, %v5326
  %v5328 = vrot.slane %v5100, 1
  %v5329 = vrot.slane %v5101, 1
  %v5330 = vsel %vm2079, %v5328, %v5329
  %v5331 = vrot.slane %v5102, 1
  %v5332 = vsel %vm2079, %v5329, %v5331
  %v5333 = vrot.slane %v5103, 1
  %v5334 = vrot.slane %v5104, 1
  %v5335 = vsel %vm2079, %v5333, %v5334
  %v5336 = vrot.slane %v5105, 1
  %v5337 = vsel %vm2079, %v5334, %v5336
  %v5338 = vrot.slane %v5106, 1
  %v5339 = vrot.slane %v5107, 1
  %v5340 = vsel %vm2079, %v5338, %v5339
  %v5341 = vrot.slane %v5108, 1
  %v5342 = vsel %vm2079, %v5339, %v5341
  %v5343 = vrot.slane %v5109, 1
  %v5344 = vrot.slane %v5110, 1
  %v5345 = vsel %vm2079, %v5343, %v5344
  %v5346 = vrot.slane %v5111, 1
  %v5347 = vsel %vm2079, %v5344, %v5346
  %v5348 = vrot.slane %v5112, 1
  %v5349 = vrot.slane %v5113, 1
  %v5350 = vsel %vm2079, %v5348, %v5349
  %v5351 = vrot.slane %v5114, 1
  %v5352 = vsel %vm2079, %v5349, %v5351
  %v5353 = vrot.slane %v5115, 1
  %v5354 = vrot.slane %v5116, 1
  %v5355 = vsel %vm2079, %v5353, %v5354
  %v5356 = vrot.slane %v5117, 1
  %v5357 = vsel %vm2079, %v5354, %v5356
  %v5358 = vrot.slane %v5118, 1
  %v5359 = vrot.slane %v5119, 1
  %v5360 = vsel %vm2079, %v5358, %v5359
  %v5361 = vrot.slane %v5120, 1
  %v5362 = vsel %vm2079, %v5359, %v5361
  %v5363 = vrot.slane %v5121, 1
  %v5364 = vrot.slane %v5122, 1
  %v5365 = vsel %vm2079, %v5363, %v5364
  %v5366 = vrot.slane %v5123, 1
  %v5367 = vsel %vm2079, %v5364, %v5366
  %v5368 = vrot.slane %v5124, 1
  %v5369 = vrot.slane %v5125, 1
  %v5370 = vsel %vm2079, %v5368, %v5369
  %v5371 = vrot.slane %v5126, 1
  %v5372 = vsel %vm2079, %v5369, %v5371
  %v5373 = vrot.slane %v5127, 1
  %v5374 = vrot.slane %v5128, 1
  %v5375 = vsel %vm2079, %v5373, %v5374
  %v5376 = vrot.slane %v5129, 1
  %v5377 = vsel %vm2079, %v5374, %v5376
  %v5378 = vrot.slane %v5130, 1
  %v5379 = vrot.slane %v5131, 1
  %v5380 = vsel %vm2079, %v5378, %v5379
  %v5381 = vrot.slane %v5132, 1
  %v5382 = vsel %vm2079, %v5379, %v5381
  %v5383 = vrot.slane %v5133, 1
  %v5384 = vrot.slane %v5134, 1
  %v5385 = vsel %vm2079, %v5383, %v5384
  %v5386 = vrot.slane %v5135, 1
  %v5387 = vsel %vm2079, %v5384, %v5386
  %v5388 = vrot.slane %v5136, 1
  %v5389 = vrot.slane %v5137, 1
  %v5390 = vsel %vm2079, %v5388, %v5389
  %v5391 = vrot.slane %v5138, 1
  %v5392 = vsel %vm2079, %v5389, %v5391
  %v5393 = vrot.slane %v5139, 1
  %v5394 = vrot.slane %v5140, 1
  %v5395 = vsel %vm2079, %v5393, %v5394
  %v5396 = vrot.slane %v5141, 1
  %v5397 = vsel %vm2079, %v5394, %v5396
  %5398 = vrot.lane.b32.xlu0 %v5240, 12
  %v5399 = vpop.permute.xlu0 %5398
  %5400 = vrot.lane.b32.xlu0 %v5242, 12
  %v5401 = vpop.permute.xlu0 %5400
  %5402 = vrot.lane.b32.xlu0 %v5245, 12
  %v5403 = vpop.permute.xlu0 %5402
  %5404 = vrot.lane.b32.xlu0 %v5247, 12
  %v5405 = vpop.permute.xlu0 %5404
  %5406 = vrot.lane.b32.xlu0 %v5250, 12
  %v5407 = vpop.permute.xlu0 %5406
  %5408 = vrot.lane.b32.xlu0 %v5252, 12
  %v5409 = vpop.permute.xlu0 %5408
  %5410 = vrot.lane.b32.xlu0 %v5255, 12
  %v5411 = vpop.permute.xlu0 %5410
  %5412 = vrot.lane.b32.xlu0 %v5257, 12
  %v5413 = vpop.permute.xlu0 %5412
  %5414 = vrot.lane.b32.xlu0 %v5260, 12
  %v5415 = vpop.permute.xlu0 %5414
  %5416 = vrot.lane.b32.xlu0 %v5262, 12
  %v5417 = vpop.permute.xlu0 %5416
  %5418 = vrot.lane.b32.xlu0 %v5265, 12
  %v5419 = vpop.permute.xlu0 %5418
  %5420 = vrot.lane.b32.xlu0 %v5267, 12
  %v5421 = vpop.permute.xlu0 %5420
  %5422 = vrot.lane.b32.xlu0 %v5270, 12
  %v5423 = vpop.permute.xlu0 %5422
  %5424 = vrot.lane.b32.xlu0 %v5272, 12
  %v5425 = vpop.permute.xlu0 %5424
  %5426 = vrot.lane.b32.xlu0 %v5275, 12
  %v5427 = vpop.permute.xlu0 %5426
  %5428 = vrot.lane.b32.xlu0 %v5277, 12
  %v5429 = vpop.permute.xlu0 %5428
  %5430 = vrot.lane.b32.xlu0 %v5280, 12
  %v5431 = vpop.permute.xlu0 %5430
  %5432 = vrot.lane.b32.xlu0 %v5282, 12
  %v5433 = vpop.permute.xlu0 %5432
  %5434 = vrot.lane.b32.xlu0 %v5285, 12
  %v5435 = vpop.permute.xlu0 %5434
  %5436 = vrot.lane.b32.xlu0 %v5287, 12
  %v5437 = vpop.permute.xlu0 %5436
  %5438 = vrot.lane.b32.xlu0 %v5290, 12
  %v5439 = vpop.permute.xlu0 %5438
  %5440 = vrot.lane.b32.xlu0 %v5292, 12
  %v5441 = vpop.permute.xlu0 %5440
  %5442 = vrot.lane.b32.xlu0 %v5295, 12
  %v5443 = vpop.permute.xlu0 %5442
  %5444 = vrot.lane.b32.xlu0 %v5297, 12
  %v5445 = vpop.permute.xlu0 %5444
  %5446 = vrot.lane.b32.xlu0 %v5300, 12
  %v5447 = vpop.permute.xlu0 %5446
  %5448 = vrot.lane.b32.xlu0 %v5302, 12
  %v5449 = vpop.permute.xlu0 %5448
  %5450 = vrot.lane.b32.xlu0 %v5305, 12
  %v5451 = vpop.permute.xlu0 %5450
  %5452 = vrot.lane.b32.xlu0 %v5307, 12
  %v5453 = vpop.permute.xlu0 %5452
  %5454 = vrot.lane.b32.xlu0 %v5310, 12
  %v5455 = vpop.permute.xlu0 %5454
  %5456 = vrot.lane.b32.xlu0 %v5312, 12
  %v5457 = vpop.permute.xlu0 %5456
  %5458 = vrot.lane.b32.xlu0 %v5315, 12
  %v5459 = vpop.permute.xlu0 %5458
  %5460 = vrot.lane.b32.xlu0 %v5317, 12
  %v5461 = vpop.permute.xlu0 %5460
  %5462 = vrot.lane.b32.xlu0 %v5320, 12
  %v5463 = vpop.permute.xlu0 %5462
  %5464 = vrot.lane.b32.xlu0 %v5322, 12
  %v5465 = vpop.permute.xlu0 %5464
  %5466 = vrot.lane.b32.xlu0 %v5325, 12
  %v5467 = vpop.permute.xlu0 %5466
  %5468 = vrot.lane.b32.xlu0 %v5327, 12
  %v5469 = vpop.permute.xlu0 %5468
  %5470 = vrot.lane.b32.xlu0 %v5330, 12
  %v5471 = vpop.permute.xlu0 %5470
  %5472 = vrot.lane.b32.xlu0 %v5332, 12
  %v5473 = vpop.permute.xlu0 %5472
  %5474 = vrot.lane.b32.xlu0 %v5335, 12
  %v5475 = vpop.permute.xlu0 %5474
  %5476 = vrot.lane.b32.xlu0 %v5337, 12
  %v5477 = vpop.permute.xlu0 %5476
  %5478 = vrot.lane.b32.xlu0 %v5340, 12
  %v5479 = vpop.permute.xlu0 %5478
  %5480 = vrot.lane.b32.xlu0 %v5342, 12
  %v5481 = vpop.permute.xlu0 %5480
  %5482 = vrot.lane.b32.xlu0 %v5345, 12
  %v5483 = vpop.permute.xlu0 %5482
  %5484 = vrot.lane.b32.xlu0 %v5347, 12
  %v5485 = vpop.permute.xlu0 %5484
  %5486 = vrot.lane.b32.xlu0 %v5350, 12
  %v5487 = vpop.permute.xlu0 %5486
  %5488 = vrot.lane.b32.xlu0 %v5352, 12
  %v5489 = vpop.permute.xlu0 %5488
  %5490 = vrot.lane.b32.xlu0 %v5355, 12
  %v5491 = vpop.permute.xlu0 %5490
  %5492 = vrot.lane.b32.xlu0 %v5357, 12
  %v5493 = vpop.permute.xlu0 %5492
  %5494 = vrot.lane.b32.xlu0 %v5360, 12
  %v5495 = vpop.permute.xlu0 %5494
  %5496 = vrot.lane.b32.xlu0 %v5362, 12
  %v5497 = vpop.permute.xlu0 %5496
  %5498 = vrot.lane.b32.xlu0 %v5365, 12
  %v5499 = vpop.permute.xlu0 %5498
  %5500 = vrot.lane.b32.xlu0 %v5367, 12
  %v5501 = vpop.permute.xlu0 %5500
  %5502 = vrot.lane.b32.xlu0 %v5370, 12
  %v5503 = vpop.permute.xlu0 %5502
  %5504 = vrot.lane.b32.xlu0 %v5372, 12
  %v5505 = vpop.permute.xlu0 %5504
  %5506 = vrot.lane.b32.xlu0 %v5375, 12
  %v5507 = vpop.permute.xlu0 %5506
  %5508 = vrot.lane.b32.xlu0 %v5377, 12
  %v5509 = vpop.permute.xlu0 %5508
  %5510 = vrot.lane.b32.xlu0 %v5380, 12
  %v5511 = vpop.permute.xlu0 %5510
  %5512 = vrot.lane.b32.xlu0 %v5382, 12
  %v5513 = vpop.permute.xlu0 %5512
  %5514 = vrot.lane.b32.xlu0 %v5385, 12
  %v5515 = vpop.permute.xlu0 %5514
  %5516 = vrot.lane.b32.xlu0 %v5387, 12
  %v5517 = vpop.permute.xlu0 %5516
  %5518 = vrot.lane.b32.xlu0 %v5390, 12
  %v5519 = vpop.permute.xlu0 %5518
  %5520 = vrot.lane.b32.xlu0 %v5392, 12
  %v5521 = vpop.permute.xlu0 %5520
  %5522 = vrot.lane.b32.xlu0 %v5395, 12
  %v5523 = vpop.permute.xlu0 %5522
  %5524 = vrot.lane.b32.xlu0 %v5397, 12
  %v5525 = vpop.permute.xlu0 %5524
  %v5590 = vrot.slane %v5046, 2
  %v5591 = vrot.slane %v5047, 2
  %v5592 = vsel %vm2432, %v5590, %v5591
  %v5593 = vrot.slane %v5048, 2
  %v5594 = vsel %vm2432, %v5591, %v5593
  %v5595 = vrot.slane %v5049, 2
  %v5596 = vrot.slane %v5050, 2
  %v5597 = vsel %vm2432, %v5595, %v5596
  %v5598 = vrot.slane %v5051, 2
  %v5599 = vsel %vm2432, %v5596, %v5598
  %v5600 = vrot.slane %v5052, 2
  %v5601 = vrot.slane %v5053, 2
  %v5602 = vsel %vm2432, %v5600, %v5601
  %v5603 = vrot.slane %v5054, 2
  %v5604 = vsel %vm2432, %v5601, %v5603
  %v5605 = vrot.slane %v5055, 2
  %v5606 = vrot.slane %v5056, 2
  %v5607 = vsel %vm2432, %v5605, %v5606
  %v5608 = vrot.slane %v5057, 2
  %v5609 = vsel %vm2432, %v5606, %v5608
  %v5610 = vrot.slane %v5058, 2
  %v5611 = vrot.slane %v5059, 2
  %v5612 = vsel %vm2432, %v5610, %v5611
  %v5613 = vrot.slane %v5060, 2
  %v5614 = vsel %vm2432, %v5611, %v5613
  %v5615 = vrot.slane %v5061, 2
  %v5616 = vrot.slane %v5062, 2
  %v5617 = vsel %vm2432, %v5615, %v5616
  %v5618 = vrot.slane %v5063, 2
  %v5619 = vsel %vm2432, %v5616, %v5618
  %v5620 = vrot.slane %v5064, 2
  %v5621 = vrot.slane %v5065, 2
  %v5622 = vsel %vm2432, %v5620, %v5621
  %v5623 = vrot.slane %v5066, 2
  %v5624 = vsel %vm2432, %v5621, %v5623
  %v5625 = vrot.slane %v5067, 2
  %v5626 = vrot.slane %v5068, 2
  %v5627 = vsel %vm2432, %v5625, %v5626
  %v5628 = vrot.slane %v5069, 2
  %v5629 = vsel %vm2432, %v5626, %v5628
  %v5630 = vrot.slane %v5070, 2
  %v5631 = vrot.slane %v5071, 2
  %v5632 = vsel %vm2432, %v5630, %v5631
  %v5633 = vrot.slane %v5072, 2
  %v5634 = vsel %vm2432, %v5631, %v5633
  %v5635 = vrot.slane %v5073, 2
  %v5636 = vrot.slane %v5074, 2
  %v5637 = vsel %vm2432, %v5635, %v5636
  %v5638 = vrot.slane %v5075, 2
  %v5639 = vsel %vm2432, %v5636, %v5638
  %v5640 = vrot.slane %v5076, 2
  %v5641 = vrot.slane %v5077, 2
  %v5642 = vsel %vm2432, %v5640, %v5641
  %v5643 = vrot.slane %v5078, 2
  %v5644 = vsel %vm2432, %v5641, %v5643
  %v5645 = vrot.slane %v5079, 2
  %v5646 = vrot.slane %v5080, 2
  %v5647 = vsel %vm2432, %v5645, %v5646
  %v5648 = vrot.slane %v5081, 2
  %v5649 = vsel %vm2432, %v5646, %v5648
  %v5650 = vrot.slane %v5082, 2
  %v5651 = vrot.slane %v5083, 2
  %v5652 = vsel %vm2432, %v5650, %v5651
  %v5653 = vrot.slane %v5084, 2
  %v5654 = vsel %vm2432, %v5651, %v5653
  %v5655 = vrot.slane %v5085, 2
  %v5656 = vrot.slane %v5086, 2
  %v5657 = vsel %vm2432, %v5655, %v5656
  %v5658 = vrot.slane %v5087, 2
  %v5659 = vsel %vm2432, %v5656, %v5658
  %v5660 = vrot.slane %v5088, 2
  %v5661 = vrot.slane %v5089, 2
  %v5662 = vsel %vm2432, %v5660, %v5661
  %v5663 = vrot.slane %v5090, 2
  %v5664 = vsel %vm2432, %v5661, %v5663
  %v5665 = vrot.slane %v5091, 2
  %v5666 = vrot.slane %v5092, 2
  %v5667 = vsel %vm2432, %v5665, %v5666
  %v5668 = vrot.slane %v5093, 2
  %v5669 = vsel %vm2432, %v5666, %v5668
  %v5670 = vrot.slane %v5094, 2
  %v5671 = vrot.slane %v5095, 2
  %v5672 = vsel %vm2432, %v5670, %v5671
  %v5673 = vrot.slane %v5096, 2
  %v5674 = vsel %vm2432, %v5671, %v5673
  %v5675 = vrot.slane %v5097, 2
  %v5676 = vrot.slane %v5098, 2
  %v5677 = vsel %vm2432, %v5675, %v5676
  %v5678 = vrot.slane %v5099, 2
  %v5679 = vsel %vm2432, %v5676, %v5678
  %v5680 = vrot.slane %v5100, 2
  %v5681 = vrot.slane %v5101, 2
  %v5682 = vsel %vm2432, %v5680, %v5681
  %v5683 = vrot.slane %v5102, 2
  %v5684 = vsel %vm2432, %v5681, %v5683
  %v5685 = vrot.slane %v5103, 2
  %v5686 = vrot.slane %v5104, 2
  %v5687 = vsel %vm2432, %v5685, %v5686
  %v5688 = vrot.slane %v5105, 2
  %v5689 = vsel %vm2432, %v5686, %v5688
  %v5690 = vrot.slane %v5106, 2
  %v5691 = vrot.slane %v5107, 2
  %v5692 = vsel %vm2432, %v5690, %v5691
  %v5693 = vrot.slane %v5108, 2
  %v5694 = vsel %vm2432, %v5691, %v5693
  %v5695 = vrot.slane %v5109, 2
  %v5696 = vrot.slane %v5110, 2
  %v5697 = vsel %vm2432, %v5695, %v5696
  %v5698 = vrot.slane %v5111, 2
  %v5699 = vsel %vm2432, %v5696, %v5698
  %v5700 = vrot.slane %v5112, 2
  %v5701 = vrot.slane %v5113, 2
  %v5702 = vsel %vm2432, %v5700, %v5701
  %v5703 = vrot.slane %v5114, 2
  %v5704 = vsel %vm2432, %v5701, %v5703
  %v5705 = vrot.slane %v5115, 2
  %v5706 = vrot.slane %v5116, 2
  %v5707 = vsel %vm2432, %v5705, %v5706
  %v5708 = vrot.slane %v5117, 2
  %v5709 = vsel %vm2432, %v5706, %v5708
  %v5710 = vrot.slane %v5118, 2
  %v5711 = vrot.slane %v5119, 2
  %v5712 = vsel %vm2432, %v5710, %v5711
  %v5713 = vrot.slane %v5120, 2
  %v5714 = vsel %vm2432, %v5711, %v5713
  %v5715 = vrot.slane %v5121, 2
  %v5716 = vrot.slane %v5122, 2
  %v5717 = vsel %vm2432, %v5715, %v5716
  %v5718 = vrot.slane %v5123, 2
  %v5719 = vsel %vm2432, %v5716, %v5718
  %v5720 = vrot.slane %v5124, 2
  %v5721 = vrot.slane %v5125, 2
  %v5722 = vsel %vm2432, %v5720, %v5721
  %v5723 = vrot.slane %v5126, 2
  %v5724 = vsel %vm2432, %v5721, %v5723
  %v5725 = vrot.slane %v5127, 2
  %v5726 = vrot.slane %v5128, 2
  %v5727 = vsel %vm2432, %v5725, %v5726
  %v5728 = vrot.slane %v5129, 2
  %v5729 = vsel %vm2432, %v5726, %v5728
  %v5730 = vrot.slane %v5130, 2
  %v5731 = vrot.slane %v5131, 2
  %v5732 = vsel %vm2432, %v5730, %v5731
  %v5733 = vrot.slane %v5132, 2
  %v5734 = vsel %vm2432, %v5731, %v5733
  %v5735 = vrot.slane %v5133, 2
  %v5736 = vrot.slane %v5134, 2
  %v5737 = vsel %vm2432, %v5735, %v5736
  %v5738 = vrot.slane %v5135, 2
  %v5739 = vsel %vm2432, %v5736, %v5738
  %v5740 = vrot.slane %v5136, 2
  %v5741 = vrot.slane %v5137, 2
  %v5742 = vsel %vm2432, %v5740, %v5741
  %v5743 = vrot.slane %v5138, 2
  %v5744 = vsel %vm2432, %v5741, %v5743
  %v5745 = vrot.slane %v5139, 2
  %v5746 = vrot.slane %v5140, 2
  %v5747 = vsel %vm2432, %v5745, %v5746
  %v5748 = vrot.slane %v5141, 2
  %v5749 = vsel %vm2432, %v5746, %v5748
  %5750 = vrot.lane.b32.xlu0 %v5592, 24
  %v5751 = vpop.permute.xlu0 %5750
  %5752 = vrot.lane.b32.xlu0 %v5594, 24
  %v5753 = vpop.permute.xlu0 %5752
  %5754 = vrot.lane.b32.xlu0 %v5597, 24
  %v5755 = vpop.permute.xlu0 %5754
  %5756 = vrot.lane.b32.xlu0 %v5599, 24
  %v5757 = vpop.permute.xlu0 %5756
  %5758 = vrot.lane.b32.xlu0 %v5602, 24
  %v5759 = vpop.permute.xlu0 %5758
  %5760 = vrot.lane.b32.xlu0 %v5604, 24
  %v5761 = vpop.permute.xlu0 %5760
  %5762 = vrot.lane.b32.xlu0 %v5607, 24
  %v5763 = vpop.permute.xlu0 %5762
  %5764 = vrot.lane.b32.xlu0 %v5609, 24
  %v5765 = vpop.permute.xlu0 %5764
  %5766 = vrot.lane.b32.xlu0 %v5612, 24
  %v5767 = vpop.permute.xlu0 %5766
  %5768 = vrot.lane.b32.xlu0 %v5614, 24
  %v5769 = vpop.permute.xlu0 %5768
  %5770 = vrot.lane.b32.xlu0 %v5617, 24
  %v5771 = vpop.permute.xlu0 %5770
  %5772 = vrot.lane.b32.xlu0 %v5619, 24
  %v5773 = vpop.permute.xlu0 %5772
  %5774 = vrot.lane.b32.xlu0 %v5622, 24
  %v5775 = vpop.permute.xlu0 %5774
  %5776 = vrot.lane.b32.xlu0 %v5624, 24
  %v5777 = vpop.permute.xlu0 %5776
  %5778 = vrot.lane.b32.xlu0 %v5627, 24
  %v5779 = vpop.permute.xlu0 %5778
  %5780 = vrot.lane.b32.xlu0 %v5629, 24
  %v5781 = vpop.permute.xlu0 %5780
  %5782 = vrot.lane.b32.xlu0 %v5632, 24
  %v5783 = vpop.permute.xlu0 %5782
  %5784 = vrot.lane.b32.xlu0 %v5634, 24
  %v5785 = vpop.permute.xlu0 %5784
  %5786 = vrot.lane.b32.xlu0 %v5637, 24
  %v5787 = vpop.permute.xlu0 %5786
  %5788 = vrot.lane.b32.xlu0 %v5639, 24
  %v5789 = vpop.permute.xlu0 %5788
  %5790 = vrot.lane.b32.xlu0 %v5642, 24
  %v5791 = vpop.permute.xlu0 %5790
  %5792 = vrot.lane.b32.xlu0 %v5644, 24
  %v5793 = vpop.permute.xlu0 %5792
  %5794 = vrot.lane.b32.xlu0 %v5647, 24
  %v5795 = vpop.permute.xlu0 %5794
  %5796 = vrot.lane.b32.xlu0 %v5649, 24
  %v5797 = vpop.permute.xlu0 %5796
  %5798 = vrot.lane.b32.xlu0 %v5652, 24
  %v5799 = vpop.permute.xlu0 %5798
  %5800 = vrot.lane.b32.xlu0 %v5654, 24
  %v5801 = vpop.permute.xlu0 %5800
  %5802 = vrot.lane.b32.xlu0 %v5657, 24
  %v5803 = vpop.permute.xlu0 %5802
  %5804 = vrot.lane.b32.xlu0 %v5659, 24
  %v5805 = vpop.permute.xlu0 %5804
  %5806 = vrot.lane.b32.xlu0 %v5662, 24
  %v5807 = vpop.permute.xlu0 %5806
  %5808 = vrot.lane.b32.xlu0 %v5664, 24
  %v5809 = vpop.permute.xlu0 %5808
  %5810 = vrot.lane.b32.xlu0 %v5667, 24
  %v5811 = vpop.permute.xlu0 %5810
  %5812 = vrot.lane.b32.xlu0 %v5669, 24
  %v5813 = vpop.permute.xlu0 %5812
  %5814 = vrot.lane.b32.xlu0 %v5672, 24
  %v5815 = vpop.permute.xlu0 %5814
  %5816 = vrot.lane.b32.xlu0 %v5674, 24
  %v5817 = vpop.permute.xlu0 %5816
  %5818 = vrot.lane.b32.xlu0 %v5677, 24
  %v5819 = vpop.permute.xlu0 %5818
  %5820 = vrot.lane.b32.xlu0 %v5679, 24
  %v5821 = vpop.permute.xlu0 %5820
  %5822 = vrot.lane.b32.xlu0 %v5682, 24
  %v5823 = vpop.permute.xlu0 %5822
  %5824 = vrot.lane.b32.xlu0 %v5684, 24
  %v5825 = vpop.permute.xlu0 %5824
  %5826 = vrot.lane.b32.xlu0 %v5687, 24
  %v5827 = vpop.permute.xlu0 %5826
  %5828 = vrot.lane.b32.xlu0 %v5689, 24
  %v5829 = vpop.permute.xlu0 %5828
  %5830 = vrot.lane.b32.xlu0 %v5692, 24
  %v5831 = vpop.permute.xlu0 %5830
  %5832 = vrot.lane.b32.xlu0 %v5694, 24
  %v5833 = vpop.permute.xlu0 %5832
  %5834 = vrot.lane.b32.xlu0 %v5697, 24
  %v5835 = vpop.permute.xlu0 %5834
  %5836 = vrot.lane.b32.xlu0 %v5699, 24
  %v5837 = vpop.permute.xlu0 %5836
  %5838 = vrot.lane.b32.xlu0 %v5702, 24
  %v5839 = vpop.permute.xlu0 %5838
  %5840 = vrot.lane.b32.xlu0 %v5704, 24
  %v5841 = vpop.permute.xlu0 %5840
  %5842 = vrot.lane.b32.xlu0 %v5707, 24
  %v5843 = vpop.permute.xlu0 %5842
  %5844 = vrot.lane.b32.xlu0 %v5709, 24
  %v5845 = vpop.permute.xlu0 %5844
  %5846 = vrot.lane.b32.xlu0 %v5712, 24
  %v5847 = vpop.permute.xlu0 %5846
  %5848 = vrot.lane.b32.xlu0 %v5714, 24
  %v5849 = vpop.permute.xlu0 %5848
  %5850 = vrot.lane.b32.xlu0 %v5717, 24
  %v5851 = vpop.permute.xlu0 %5850
  %5852 = vrot.lane.b32.xlu0 %v5719, 24
  %v5853 = vpop.permute.xlu0 %5852
  %5854 = vrot.lane.b32.xlu0 %v5722, 24
  %v5855 = vpop.permute.xlu0 %5854
  %5856 = vrot.lane.b32.xlu0 %v5724, 24
  %v5857 = vpop.permute.xlu0 %5856
  %5858 = vrot.lane.b32.xlu0 %v5727, 24
  %v5859 = vpop.permute.xlu0 %5858
  %5860 = vrot.lane.b32.xlu0 %v5729, 24
  %v5861 = vpop.permute.xlu0 %5860
  %5862 = vrot.lane.b32.xlu0 %v5732, 24
  %v5863 = vpop.permute.xlu0 %5862
  %5864 = vrot.lane.b32.xlu0 %v5734, 24
  %v5865 = vpop.permute.xlu0 %5864
  %5866 = vrot.lane.b32.xlu0 %v5737, 24
  %v5867 = vpop.permute.xlu0 %5866
  %5868 = vrot.lane.b32.xlu0 %v5739, 24
  %v5869 = vpop.permute.xlu0 %5868
  %5870 = vrot.lane.b32.xlu0 %v5742, 24
  %v5871 = vpop.permute.xlu0 %5870
  %5872 = vrot.lane.b32.xlu0 %v5744, 24
  %v5873 = vpop.permute.xlu0 %5872
  %5874 = vrot.lane.b32.xlu0 %v5747, 24
  %v5875 = vpop.permute.xlu0 %5874
  %5876 = vrot.lane.b32.xlu0 %v5749, 24
  %v5877 = vpop.permute.xlu0 %5876
  %v5942 = vsel %vm2785, %v5046, %v5399
  %v5943 = vsel %vm2785, %v5047, %v5401
  %v5944 = vsel %vm2785, %v5049, %v5403
  %v5945 = vsel %vm2785, %v5050, %v5405
  %v5946 = vsel %vm2785, %v5052, %v5407
  %v5947 = vsel %vm2785, %v5053, %v5409
  %v5948 = vsel %vm2785, %v5055, %v5411
  %v5949 = vsel %vm2785, %v5056, %v5413
  %v5950 = vsel %vm2785, %v5058, %v5415
  %v5951 = vsel %vm2785, %v5059, %v5417
  %v5952 = vsel %vm2785, %v5061, %v5419
  %v5953 = vsel %vm2785, %v5062, %v5421
  %v5954 = vsel %vm2785, %v5064, %v5423
  %v5955 = vsel %vm2785, %v5065, %v5425
  %v5956 = vsel %vm2785, %v5067, %v5427
  %v5957 = vsel %vm2785, %v5068, %v5429
  %v5958 = vsel %vm2785, %v5070, %v5431
  %v5959 = vsel %vm2785, %v5071, %v5433
  %v5960 = vsel %vm2785, %v5073, %v5435
  %v5961 = vsel %vm2785, %v5074, %v5437
  %v5962 = vsel %vm2785, %v5076, %v5439
  %v5963 = vsel %vm2785, %v5077, %v5441
  %v5964 = vsel %vm2785, %v5079, %v5443
  %v5965 = vsel %vm2785, %v5080, %v5445
  %v5966 = vsel %vm2785, %v5082, %v5447
  %v5967 = vsel %vm2785, %v5083, %v5449
  %v5968 = vsel %vm2785, %v5085, %v5451
  %v5969 = vsel %vm2785, %v5086, %v5453
  %v5970 = vsel %vm2785, %v5088, %v5455
  %v5971 = vsel %vm2785, %v5089, %v5457
  %v5972 = vsel %vm2785, %v5091, %v5459
  %v5973 = vsel %vm2785, %v5092, %v5461
  %v5974 = vsel %vm2785, %v5094, %v5463
  %v5975 = vsel %vm2785, %v5095, %v5465
  %v5976 = vsel %vm2785, %v5097, %v5467
  %v5977 = vsel %vm2785, %v5098, %v5469
  %v5978 = vsel %vm2785, %v5100, %v5471
  %v5979 = vsel %vm2785, %v5101, %v5473
  %v5980 = vsel %vm2785, %v5103, %v5475
  %v5981 = vsel %vm2785, %v5104, %v5477
  %v5982 = vsel %vm2785, %v5106, %v5479
  %v5983 = vsel %vm2785, %v5107, %v5481
  %v5984 = vsel %vm2785, %v5109, %v5483
  %v5985 = vsel %vm2785, %v5110, %v5485
  %v5986 = vsel %vm2785, %v5112, %v5487
  %v5987 = vsel %vm2785, %v5113, %v5489
  %v5988 = vsel %vm2785, %v5115, %v5491
  %v5989 = vsel %vm2785, %v5116, %v5493
  %v5990 = vsel %vm2785, %v5118, %v5495
  %v5991 = vsel %vm2785, %v5119, %v5497
  %v5992 = vsel %vm2785, %v5121, %v5499
  %v5993 = vsel %vm2785, %v5122, %v5501
  %v5994 = vsel %vm2785, %v5124, %v5503
  %v5995 = vsel %vm2785, %v5125, %v5505
  %v5996 = vsel %vm2785, %v5127, %v5507
  %v5997 = vsel %vm2785, %v5128, %v5509
  %v5998 = vsel %vm2785, %v5130, %v5511
  %v5999 = vsel %vm2785, %v5131, %v5513
  %v6000 = vsel %vm2785, %v5133, %v5515
  %v6001 = vsel %vm2785, %v5134, %v5517
  %v6002 = vsel %vm2785, %v5136, %v5519
  %v6003 = vsel %vm2785, %v5137, %v5521
  %v6004 = vsel %vm2785, %v5139, %v5523
  %v6005 = vsel %vm2785, %v5140, %v5525
  %v6006 = vsel %vm2850, %v5942, %v5751
  %v6007 = vsel %vm2850, %v5943, %v5753
  %v6008 = vsel %vm2850, %v5944, %v5755
  %v6009 = vsel %vm2850, %v5945, %v5757
  %v6010 = vsel %vm2850, %v5946, %v5759
  %v6011 = vsel %vm2850, %v5947, %v5761
  %v6012 = vsel %vm2850, %v5948, %v5763
  %v6013 = vsel %vm2850, %v5949, %v5765
  %v6014 = vsel %vm2850, %v5950, %v5767
  %v6015 = vsel %vm2850, %v5951, %v5769
  %v6016 = vsel %vm2850, %v5952, %v5771
  %v6017 = vsel %vm2850, %v5953, %v5773
  %v6018 = vsel %vm2850, %v5954, %v5775
  %v6019 = vsel %vm2850, %v5955, %v5777
  %v6020 = vsel %vm2850, %v5956, %v5779
  %v6021 = vsel %vm2850, %v5957, %v5781
  %v6022 = vsel %vm2850, %v5958, %v5783
  %v6023 = vsel %vm2850, %v5959, %v5785
  %v6024 = vsel %vm2850, %v5960, %v5787
  %v6025 = vsel %vm2850, %v5961, %v5789
  %v6026 = vsel %vm2850, %v5962, %v5791
  %v6027 = vsel %vm2850, %v5963, %v5793
  %v6028 = vsel %vm2850, %v5964, %v5795
  %v6029 = vsel %vm2850, %v5965, %v5797
  %v6030 = vsel %vm2850, %v5966, %v5799
  %v6031 = vsel %vm2850, %v5967, %v5801
  %v6032 = vsel %vm2850, %v5968, %v5803
  %v6033 = vsel %vm2850, %v5969, %v5805
  %v6034 = vsel %vm2850, %v5970, %v5807
  %v6035 = vsel %vm2850, %v5971, %v5809
  %v6036 = vsel %vm2850, %v5972, %v5811
  %v6037 = vsel %vm2850, %v5973, %v5813
  %v6038 = vsel %vm2850, %v5974, %v5815
  %v6039 = vsel %vm2850, %v5975, %v5817
  %v6040 = vsel %vm2850, %v5976, %v5819
  %v6041 = vsel %vm2850, %v5977, %v5821
  %v6042 = vsel %vm2850, %v5978, %v5823
  %v6043 = vsel %vm2850, %v5979, %v5825
  %v6044 = vsel %vm2850, %v5980, %v5827
  %v6045 = vsel %vm2850, %v5981, %v5829
  %v6046 = vsel %vm2850, %v5982, %v5831
  %v6047 = vsel %vm2850, %v5983, %v5833
  %v6048 = vsel %vm2850, %v5984, %v5835
  %v6049 = vsel %vm2850, %v5985, %v5837
  %v6050 = vsel %vm2850, %v5986, %v5839
  %v6051 = vsel %vm2850, %v5987, %v5841
  %v6052 = vsel %vm2850, %v5988, %v5843
  %v6053 = vsel %vm2850, %v5989, %v5845
  %v6054 = vsel %vm2850, %v5990, %v5847
  %v6055 = vsel %vm2850, %v5991, %v5849
  %v6056 = vsel %vm2850, %v5992, %v5851
  %v6057 = vsel %vm2850, %v5993, %v5853
  %v6058 = vsel %vm2850, %v5994, %v5855
  %v6059 = vsel %vm2850, %v5995, %v5857
  %v6060 = vsel %vm2850, %v5996, %v5859
  %v6061 = vsel %vm2850, %v5997, %v5861
  %v6062 = vsel %vm2850, %v5998, %v5863
  %v6063 = vsel %vm2850, %v5999, %v5865
  %v6064 = vsel %vm2850, %v6000, %v5867
  %v6065 = vsel %vm2850, %v6001, %v5869
  %v6066 = vsel %vm2850, %v6002, %v5871
  %v6067 = vsel %vm2850, %v6003, %v5873
  %v6068 = vsel %vm2850, %v6004, %v5875
  %v6069 = vsel %vm2850, %v6005, %v5877
  %v6071 = vsel %vm2921, %v6006, 0
  %v6074 = vsel %vm2921, %v6007, 0
  %v6077 = vsel %vm2921, %v6008, 0
  %v6080 = vsel %vm2921, %v6009, 0
  %v6083 = vsel %vm2921, %v6010, 0
  %v6086 = vsel %vm2921, %v6011, 0
  %v6089 = vsel %vm2921, %v6012, 0
  %v6092 = vsel %vm2921, %v6013, 0
  %v6095 = vsel %vm2921, %v6014, 0
  %v6098 = vsel %vm2921, %v6015, 0
  %v6101 = vsel %vm2921, %v6016, 0
  %v6104 = vsel %vm2921, %v6017, 0
  %v6107 = vsel %vm2921, %v6018, 0
  %v6110 = vsel %vm2921, %v6019, 0
  %v6113 = vsel %vm2921, %v6020, 0
  %v6116 = vsel %vm2921, %v6021, 0
  %v6119 = vsel %vm2921, %v6022, 0
  %v6122 = vsel %vm2921, %v6023, 0
  %v6125 = vsel %vm2921, %v6024, 0
  %v6128 = vsel %vm2921, %v6025, 0
  %v6131 = vsel %vm2921, %v6026, 0
  %v6134 = vsel %vm2921, %v6027, 0
  %v6137 = vsel %vm2921, %v6028, 0
  %v6140 = vsel %vm2921, %v6029, 0
  %v6143 = vsel %vm2921, %v6030, 0
  %v6146 = vsel %vm2921, %v6031, 0
  %v6149 = vsel %vm2921, %v6032, 0
  %v6152 = vsel %vm2921, %v6033, 0
  %v6155 = vsel %vm2921, %v6034, 0
  %v6158 = vsel %vm2921, %v6035, 0
  %v6161 = vsel %vm2921, %v6036, 0
  %v6164 = vsel %vm2921, %v6037, 0
  %v6167 = vsel %vm2921, %v6038, 0
  %v6170 = vsel %vm2921, %v6039, 0
  %v6173 = vsel %vm2921, %v6040, 0
  %v6176 = vsel %vm2921, %v6041, 0
  %v6179 = vsel %vm2921, %v6042, 0
  %v6182 = vsel %vm2921, %v6043, 0
  %v6185 = vsel %vm2921, %v6044, 0
  %v6188 = vsel %vm2921, %v6045, 0
  %v6191 = vsel %vm2921, %v6046, 0
  %v6194 = vsel %vm2921, %v6047, 0
  %v6197 = vsel %vm2921, %v6048, 0
  %v6200 = vsel %vm2921, %v6049, 0
  %v6203 = vsel %vm2921, %v6050, 0
  %v6206 = vsel %vm2921, %v6051, 0
  %v6209 = vsel %vm2921, %v6052, 0
  %v6212 = vsel %vm2921, %v6053, 0
  %v6215 = vsel %vm2921, %v6054, 0
  %v6218 = vsel %vm2921, %v6055, 0
  %v6221 = vsel %vm2921, %v6056, 0
  %v6224 = vsel %vm2921, %v6057, 0
  %v6227 = vsel %vm2921, %v6058, 0
  %v6230 = vsel %vm2921, %v6059, 0
  %v6233 = vsel %vm2921, %v6060, 0
  %v6236 = vsel %vm2921, %v6061, 0
  %v6239 = vsel %vm2921, %v6062, 0
  %v6242 = vsel %vm2921, %v6063, 0
  %v6245 = vsel %vm2921, %v6064, 0
  %v6248 = vsel %vm2921, %v6065, 0
  %v6251 = vsel %vm2921, %v6066, 0
  %v6254 = vsel %vm2921, %v6067, 0
  %v6257 = vsel %vm2921, %v6068, 0
  %v6260 = vsel %vm2921, %v6069, 0
  %6262 = vmatprep.subr.mxu0 0.0
  %6263 = vmatpush1.msra.mxu0 %v329
  %6264 = vmatprep.subr.mxu0 0.0
  %6265 = vmatpush1.msra.mxu0 %v330
  %6266 = vmatprep.subr.mxu0 0.0
  %6267 = vmatpush1.msra.mxu0 %v331
  %6268 = vmatprep.subr.mxu0 0.0
  %6269 = vmatpush1.msra.mxu0 %v332
  %6270 = vmatprep.subr.mxu0 0.0
  %6271 = vmatpush1.msra.mxu0 %v3116
  %6272 = vmatprep.subr.mxu0 0.0
  %6273 = vmatpush1.msra.mxu0 0.0
  %6274 = vmatprep.subr.mxu0 0.0
  %6275 = vmatpush1.msra.mxu0 0.0
  %6276 = vmatprep.subr.mxu0 0.0
  %6277 = vmatpush1.msra.mxu0 0.0
  %6278 = vmatprep.subr.mxu0 0.0
  %6279 = vmatpush1.msra.mxu0 0.0
  %6280 = vmatprep.subr.mxu0 0.0
  %6281 = vmatpush1.msra.mxu0 0.0
  %6282 = vmatprep.subr.mxu0 0.0
  %6283 = vmatpush1.msra.mxu0 0.0
  %6284 = vmatprep.subr.mxu0 0.0
  %6285 = vmatpush1.msra.mxu0 0.0
  %6286 = vmatprep.subr.mxu0 0.0
  %6287 = vmatpush1.msra.mxu0 0.0
  %6288 = vmatprep.subr.mxu0 0.0
  %6289 = vmatpush1.msra.mxu0 0.0
  %6290 = vmatprep.subr.mxu0 0.0
  %6291 = vmatpush1.msra.mxu0 0.0
  %6292 = vmatprep.subr.mxu0 0.0
  %6293 = vmatpush1.msra.mxu0 0.0
  %6294 = vmatprep.subr.mxu0 0.0
  %6295 = vmatpush1.msra.mxu0 0.0
  %6296 = vmatprep.subr.mxu0 0.0
  %6297 = vmatpush1.msra.mxu0 0.0
  %6298 = vmatprep.subr.mxu0 0.0
  %6299 = vmatpush1.msra.mxu0 0.0
  %6300 = vmatprep.subr.mxu0 0.0
  %6301 = vmatpush1.msra.mxu0 0.0
  %6302 = vmatprep.subr.mxu0 0.0
  %6303 = vmatpush1.msra.mxu0 0.0
  %6304 = vmatprep.subr.mxu0 0.0
  %6305 = vmatpush1.msra.mxu0 0.0
  %6306 = vmatprep.subr.mxu0 0.0
  %6307 = vmatpush1.msra.mxu0 0.0
  %6308 = vmatprep.subr.mxu0 0.0
  %6309 = vmatpush1.msra.mxu0 0.0
  %6310 = vmatprep.subr.mxu0 0.0
  %6311 = vmatpush1.msra.mxu0 0.0
  %6312 = vmatprep.subr.mxu0 0.0
  %6313 = vmatpush1.msra.mxu0 0.0
  %6314 = vmatprep.subr.mxu0 0.0
  %6315 = vmatpush1.msra.mxu0 0.0
  %6316 = vmatprep.subr.mxu0 0.0
  %6317 = vmatpush1.msra.mxu0 0.0
  %6318 = vmatprep.subr.mxu0 0.0
  %6319 = vmatpush1.msra.mxu0 0.0
  %6320 = vmatprep.subr.mxu0 0.0
  %6321 = vmatpush1.msra.mxu0 0.0
  %6322 = vmatprep.subr.mxu0 0.0
  %6323 = vmatpush1.msra.mxu0 0.0
  %6324 = vmatprep.subr.mxu0 0.0
  %6325 = vmatpush1.msra.mxu0 0.0
  %6326 = vmatprep.mubr.f32.mxu0 0.0
  %6327 = vmatmul.mubr.f32.gmra.mrb[0].mxu0 %v6071
  %v6328 = vpop.f32.mrb[0].mxu0
  %v6329 = vadd.f32 %v2919, %v6328
  %v6330 = vpop.f32.mrb[0].mxu0
  %6331 = vmatprep.mubr.f32.mxu0 0.0
  %6332 = vmatmul.mubr.f32.gmra.mrb[0].mxu0 %v6074
  %v6333 = vpop.f32.mrb[0].mxu0
  %v6334 = vadd.f32 %v2919, %v6333
  %v6335 = vpop.f32.mrb[0].mxu0
  %6336 = vmatprep.mubr.f32.mxu0 0.0
  %6337 = vmatmul.mubr.f32.gmra.mrb[0].mxu0 %v6077
  %v6338 = vpop.f32.mrb[0].mxu0
  %v6339 = vadd.f32 %v2919, %v6338
  %v6340 = vpop.f32.mrb[0].mxu0
  %6341 = vmatprep.mubr.f32.mxu0 0.0
  %6342 = vmatmul.mubr.f32.gmra.mrb[0].mxu0 %v6080
  %v6343 = vpop.f32.mrb[0].mxu0
  %v6344 = vadd.f32 %v2919, %v6343
  %v6345 = vpop.f32.mrb[0].mxu0
  %6346 = vmatprep.mubr.f32.mxu0 0.0
  %6347 = vmatmul.mubr.f32.gmra.mrb[0].mxu0 %v6083
  %v6348 = vpop.f32.mrb[0].mxu0
  %v6349 = vadd.f32 %v2919, %v6348
  %v6350 = vpop.f32.mrb[0].mxu0
  %6351 = vmatprep.mubr.f32.mxu0 0.0
  %6352 = vmatmul.mubr.f32.gmra.mrb[0].mxu0 %v6086
  %v6353 = vpop.f32.mrb[0].mxu0
  %v6354 = vadd.f32 %v2919, %v6353
  %v6355 = vpop.f32.mrb[0].mxu0
  %6356 = vmatprep.mubr.f32.mxu0 0.0
  %6357 = vmatmul.mubr.f32.gmra.mrb[0].mxu0 %v6089
  %v6358 = vpop.f32.mrb[0].mxu0
  %v6359 = vadd.f32 %v2919, %v6358
  %v6360 = vpop.f32.mrb[0].mxu0
  %6361 = vmatprep.mubr.f32.mxu0 0.0
  %6362 = vmatmul.mubr.f32.gmra.mrb[0].mxu0 %v6092
  %v6363 = vpop.f32.mrb[0].mxu0
  %v6364 = vadd.f32 %v2919, %v6363
  %v6365 = vpop.f32.mrb[0].mxu0
  %6366 = vmatprep.mubr.f32.mxu0 0.0
  %6367 = vmatmul.mubr.f32.gmra.mrb[0].mxu0 %v6095
  %v6368 = vpop.f32.mrb[0].mxu0
  %v6369 = vadd.f32 %v2919, %v6368
  %v6370 = vpop.f32.mrb[0].mxu0
  %6371 = vmatprep.mubr.f32.mxu0 0.0
  %6372 = vmatmul.mubr.f32.gmra.mrb[0].mxu0 %v6098
  %v6373 = vpop.f32.mrb[0].mxu0
  %v6374 = vadd.f32 %v2919, %v6373
  %v6375 = vpop.f32.mrb[0].mxu0
  %6376 = vmatprep.mubr.f32.mxu0 0.0
  %6377 = vmatmul.mubr.f32.gmra.mrb[0].mxu0 %v6101
  %v6378 = vpop.f32.mrb[0].mxu0
  %v6379 = vadd.f32 %v2919, %v6378
  %v6380 = vpop.f32.mrb[0].mxu0
  %6381 = vmatprep.mubr.f32.mxu0 0.0
  %6382 = vmatmul.mubr.f32.gmra.mrb[0].mxu0 %v6104
  %v6383 = vpop.f32.mrb[0].mxu0
  %v6384 = vadd.f32 %v2919, %v6383
  %v6385 = vpop.f32.mrb[0].mxu0
  %6386 = vmatprep.mubr.f32.mxu0 0.0
  %6387 = vmatmul.mubr.f32.gmra.mrb[0].mxu0 %v6107
  %v6388 = vpop.f32.mrb[0].mxu0
  %v6389 = vadd.f32 %v2919, %v6388
  %v6390 = vpop.f32.mrb[0].mxu0
  %6391 = vmatprep.mubr.f32.mxu0 0.0
  %6392 = vmatmul.mubr.f32.gmra.mrb[0].mxu0 %v6110
  %v6393 = vpop.f32.mrb[0].mxu0
  %v6394 = vadd.f32 %v2919, %v6393
  %v6395 = vpop.f32.mrb[0].mxu0
  %6396 = vmatprep.mubr.f32.mxu0 0.0
  %6397 = vmatmul.mubr.f32.gmra.mrb[0].mxu0 %v6113
  %v6398 = vpop.f32.mrb[0].mxu0
  %v6399 = vadd.f32 %v2919, %v6398
  %v6400 = vpop.f32.mrb[0].mxu0
  %6401 = vmatprep.mubr.f32.mxu0 0.0
  %6402 = vmatmul.mubr.f32.gmra.mrb[0].mxu0 %v6116
  %v6403 = vpop.f32.mrb[0].mxu0
  %v6404 = vadd.f32 %v2919, %v6403
  %v6405 = vpop.f32.mrb[0].mxu0
  %6406 = vmatprep.mubr.f32.mxu0 0.0
  %6407 = vmatmul.mubr.f32.gmra.mrb[0].mxu0 %v6119
  %v6408 = vpop.f32.mrb[0].mxu0
  %v6409 = vadd.f32 %v2919, %v6408
  %v6410 = vpop.f32.mrb[0].mxu0
  %6411 = vmatprep.mubr.f32.mxu0 0.0
  %6412 = vmatmul.mubr.f32.gmra.mrb[0].mxu0 %v6122
  %v6413 = vpop.f32.mrb[0].mxu0
  %v6414 = vadd.f32 %v2919, %v6413
  %v6415 = vpop.f32.mrb[0].mxu0
  %6416 = vmatprep.mubr.f32.mxu0 0.0
  %6417 = vmatmul.mubr.f32.gmra.mrb[0].mxu0 %v6125
  %v6418 = vpop.f32.mrb[0].mxu0
  %v6419 = vadd.f32 %v2919, %v6418
  %v6420 = vpop.f32.mrb[0].mxu0
  %6421 = vmatprep.mubr.f32.mxu0 0.0
  %6422 = vmatmul.mubr.f32.gmra.mrb[0].mxu0 %v6128
  %v6423 = vpop.f32.mrb[0].mxu0
  %v6424 = vadd.f32 %v2919, %v6423
  %v6425 = vpop.f32.mrb[0].mxu0
  %6426 = vmatprep.mubr.f32.mxu0 0.0
  %6427 = vmatmul.mubr.f32.gmra.mrb[0].mxu0 %v6131
  %v6428 = vpop.f32.mrb[0].mxu0
  %v6429 = vadd.f32 %v2919, %v6428
  %v6430 = vpop.f32.mrb[0].mxu0
  %6431 = vmatprep.mubr.f32.mxu0 0.0
  %6432 = vmatmul.mubr.f32.gmra.mrb[0].mxu0 %v6134
  %v6433 = vpop.f32.mrb[0].mxu0
  %v6434 = vadd.f32 %v2919, %v6433
  %v6435 = vpop.f32.mrb[0].mxu0
  %6436 = vmatprep.mubr.f32.mxu0 0.0
  %6437 = vmatmul.mubr.f32.gmra.mrb[0].mxu0 %v6137
  %v6438 = vpop.f32.mrb[0].mxu0
  %v6439 = vadd.f32 %v2919, %v6438
  %v6440 = vpop.f32.mrb[0].mxu0
  %6441 = vmatprep.mubr.f32.mxu0 0.0
  %6442 = vmatmul.mubr.f32.gmra.mrb[0].mxu0 %v6140
  %v6443 = vpop.f32.mrb[0].mxu0
  %v6444 = vadd.f32 %v2919, %v6443
  %v6445 = vpop.f32.mrb[0].mxu0
  %6446 = vmatprep.mubr.f32.mxu0 0.0
  %6447 = vmatmul.mubr.f32.gmra.mrb[0].mxu0 %v6143
  %v6448 = vpop.f32.mrb[0].mxu0
  %v6449 = vadd.f32 %v2919, %v6448
  %v6450 = vpop.f32.mrb[0].mxu0
  %6451 = vmatprep.mubr.f32.mxu0 0.0
  %6452 = vmatmul.mubr.f32.gmra.mrb[0].mxu0 %v6146
  %v6453 = vpop.f32.mrb[0].mxu0
  %v6454 = vadd.f32 %v2919, %v6453
  %v6455 = vpop.f32.mrb[0].mxu0
  %6456 = vmatprep.mubr.f32.mxu0 0.0
  %6457 = vmatmul.mubr.f32.gmra.mrb[0].mxu0 %v6149
  %v6458 = vpop.f32.mrb[0].mxu0
  %v6459 = vadd.f32 %v2919, %v6458
  %v6460 = vpop.f32.mrb[0].mxu0
  %6461 = vmatprep.mubr.f32.mxu0 0.0
  %6462 = vmatmul.mubr.f32.gmra.mrb[0].mxu0 %v6152
  %v6463 = vpop.f32.mrb[0].mxu0
  %v6464 = vadd.f32 %v2919, %v6463
  %v6465 = vpop.f32.mrb[0].mxu0
  %6466 = vmatprep.mubr.f32.mxu0 0.0
  %6467 = vmatmul.mubr.f32.gmra.mrb[0].mxu0 %v6155
  %v6468 = vpop.f32.mrb[0].mxu0
  %v6469 = vadd.f32 %v2919, %v6468
  %v6470 = vpop.f32.mrb[0].mxu0
  %6471 = vmatprep.mubr.f32.mxu0 0.0
  %6472 = vmatmul.mubr.f32.gmra.mrb[0].mxu0 %v6158
  %v6473 = vpop.f32.mrb[0].mxu0
  %v6474 = vadd.f32 %v2919, %v6473
  %v6475 = vpop.f32.mrb[0].mxu0
  %6476 = vmatprep.mubr.f32.mxu0 0.0
  %6477 = vmatmul.mubr.f32.gmra.mrb[0].mxu0 %v6161
  %v6478 = vpop.f32.mrb[0].mxu0
  %v6479 = vadd.f32 %v2919, %v6478
  %v6480 = vpop.f32.mrb[0].mxu0
  %6481 = vmatprep.mubr.f32.mxu0 0.0
  %6482 = vmatmul.mubr.f32.gmra.mrb[0].mxu0 %v6164
  %v6483 = vpop.f32.mrb[0].mxu0
  %v6484 = vadd.f32 %v2919, %v6483
  %v6485 = vpop.f32.mrb[0].mxu0
  %6486 = vmatprep.mubr.f32.mxu0 0.0
  %6487 = vmatmul.mubr.f32.gmra.mrb[0].mxu0 %v6167
  %v6488 = vpop.f32.mrb[0].mxu0
  %v6489 = vadd.f32 %v2919, %v6488
  %v6490 = vpop.f32.mrb[0].mxu0
  %6491 = vmatprep.mubr.f32.mxu0 0.0
  %6492 = vmatmul.mubr.f32.gmra.mrb[0].mxu0 %v6170
  %v6493 = vpop.f32.mrb[0].mxu0
  %v6494 = vadd.f32 %v2919, %v6493
  %v6495 = vpop.f32.mrb[0].mxu0
  %6496 = vmatprep.mubr.f32.mxu0 0.0
  %6497 = vmatmul.mubr.f32.gmra.mrb[0].mxu0 %v6173
  %v6498 = vpop.f32.mrb[0].mxu0
  %v6499 = vadd.f32 %v2919, %v6498
  %v6500 = vpop.f32.mrb[0].mxu0
  %6501 = vmatprep.mubr.f32.mxu0 0.0
  %6502 = vmatmul.mubr.f32.gmra.mrb[0].mxu0 %v6176
  %v6503 = vpop.f32.mrb[0].mxu0
  %v6504 = vadd.f32 %v2919, %v6503
  %v6505 = vpop.f32.mrb[0].mxu0
  %6506 = vmatprep.mubr.f32.mxu0 0.0
  %6507 = vmatmul.mubr.f32.gmra.mrb[0].mxu0 %v6179
  %v6508 = vpop.f32.mrb[0].mxu0
  %v6509 = vadd.f32 %v2919, %v6508
  %v6510 = vpop.f32.mrb[0].mxu0
  %6511 = vmatprep.mubr.f32.mxu0 0.0
  %6512 = vmatmul.mubr.f32.gmra.mrb[0].mxu0 %v6182
  %v6513 = vpop.f32.mrb[0].mxu0
  %v6514 = vadd.f32 %v2919, %v6513
  %v6515 = vpop.f32.mrb[0].mxu0
  %6516 = vmatprep.mubr.f32.mxu0 0.0
  %6517 = vmatmul.mubr.f32.gmra.mrb[0].mxu0 %v6185
  %v6518 = vpop.f32.mrb[0].mxu0
  %v6519 = vadd.f32 %v2919, %v6518
  %v6520 = vpop.f32.mrb[0].mxu0
  %6521 = vmatprep.mubr.f32.mxu0 0.0
  %6522 = vmatmul.mubr.f32.gmra.mrb[0].mxu0 %v6188
  %v6523 = vpop.f32.mrb[0].mxu0
  %v6524 = vadd.f32 %v2919, %v6523
  %v6525 = vpop.f32.mrb[0].mxu0
  %6526 = vmatprep.mubr.f32.mxu0 0.0
  %6527 = vmatmul.mubr.f32.gmra.mrb[0].mxu0 %v6191
  %v6528 = vpop.f32.mrb[0].mxu0
  %v6529 = vadd.f32 %v2919, %v6528
  %v6530 = vpop.f32.mrb[0].mxu0
  %6531 = vmatprep.mubr.f32.mxu0 0.0
  %6532 = vmatmul.mubr.f32.gmra.mrb[0].mxu0 %v6194
  %v6533 = vpop.f32.mrb[0].mxu0
  %v6534 = vadd.f32 %v2919, %v6533
  %v6535 = vpop.f32.mrb[0].mxu0
  %6536 = vmatprep.mubr.f32.mxu0 0.0
  %6537 = vmatmul.mubr.f32.gmra.mrb[0].mxu0 %v6197
  %v6538 = vpop.f32.mrb[0].mxu0
  %v6539 = vadd.f32 %v2919, %v6538
  %v6540 = vpop.f32.mrb[0].mxu0
  %6541 = vmatprep.mubr.f32.mxu0 0.0
  %6542 = vmatmul.mubr.f32.gmra.mrb[0].mxu0 %v6200
  %v6543 = vpop.f32.mrb[0].mxu0
  %v6544 = vadd.f32 %v2919, %v6543
  %v6545 = vpop.f32.mrb[0].mxu0
  %6546 = vmatprep.mubr.f32.mxu0 0.0
  %6547 = vmatmul.mubr.f32.gmra.mrb[0].mxu0 %v6203
  %v6548 = vpop.f32.mrb[0].mxu0
  %v6549 = vadd.f32 %v2919, %v6548
  %v6550 = vpop.f32.mrb[0].mxu0
  %6551 = vmatprep.mubr.f32.mxu0 0.0
  %6552 = vmatmul.mubr.f32.gmra.mrb[0].mxu0 %v6206
  %v6553 = vpop.f32.mrb[0].mxu0
  %v6554 = vadd.f32 %v2919, %v6553
  %v6555 = vpop.f32.mrb[0].mxu0
  %6556 = vmatprep.mubr.f32.mxu0 0.0
  %6557 = vmatmul.mubr.f32.gmra.mrb[0].mxu0 %v6209
  %v6558 = vpop.f32.mrb[0].mxu0
  %v6559 = vadd.f32 %v2919, %v6558
  %v6560 = vpop.f32.mrb[0].mxu0
  %6561 = vmatprep.mubr.f32.mxu0 0.0
  %6562 = vmatmul.mubr.f32.gmra.mrb[0].mxu0 %v6212
  %v6563 = vpop.f32.mrb[0].mxu0
  %v6564 = vadd.f32 %v2919, %v6563
  %v6565 = vpop.f32.mrb[0].mxu0
  %6566 = vmatprep.mubr.f32.mxu0 0.0
  %6567 = vmatmul.mubr.f32.gmra.mrb[0].mxu0 %v6215
  %v6568 = vpop.f32.mrb[0].mxu0
  %v6569 = vadd.f32 %v2919, %v6568
  %v6570 = vpop.f32.mrb[0].mxu0
  %6571 = vmatprep.mubr.f32.mxu0 0.0
  %6572 = vmatmul.mubr.f32.gmra.mrb[0].mxu0 %v6218
  %v6573 = vpop.f32.mrb[0].mxu0
  %v6574 = vadd.f32 %v2919, %v6573
  %v6575 = vpop.f32.mrb[0].mxu0
  %6576 = vmatprep.mubr.f32.mxu0 0.0
  %6577 = vmatmul.mubr.f32.gmra.mrb[0].mxu0 %v6221
  %v6578 = vpop.f32.mrb[0].mxu0
  %v6579 = vadd.f32 %v2919, %v6578
  %v6580 = vpop.f32.mrb[0].mxu0
  %6581 = vmatprep.mubr.f32.mxu0 0.0
  %6582 = vmatmul.mubr.f32.gmra.mrb[0].mxu0 %v6224
  %v6583 = vpop.f32.mrb[0].mxu0
  %v6584 = vadd.f32 %v2919, %v6583
  %v6585 = vpop.f32.mrb[0].mxu0
  %6586 = vmatprep.mubr.f32.mxu0 0.0
  %6587 = vmatmul.mubr.f32.gmra.mrb[0].mxu0 %v6227
  %v6588 = vpop.f32.mrb[0].mxu0
  %v6589 = vadd.f32 %v2919, %v6588
  %v6590 = vpop.f32.mrb[0].mxu0
  %6591 = vmatprep.mubr.f32.mxu0 0.0
  %6592 = vmatmul.mubr.f32.gmra.mrb[0].mxu0 %v6230
  %v6593 = vpop.f32.mrb[0].mxu0
  %v6594 = vadd.f32 %v2919, %v6593
  %v6595 = vpop.f32.mrb[0].mxu0
  %6596 = vmatprep.mubr.f32.mxu0 0.0
  %6597 = vmatmul.mubr.f32.gmra.mrb[0].mxu0 %v6233
  %v6598 = vpop.f32.mrb[0].mxu0
  %v6599 = vadd.f32 %v2919, %v6598
  %v6600 = vpop.f32.mrb[0].mxu0
  %6601 = vmatprep.mubr.f32.mxu0 0.0
  %6602 = vmatmul.mubr.f32.gmra.mrb[0].mxu0 %v6236
  %v6603 = vpop.f32.mrb[0].mxu0
  %v6604 = vadd.f32 %v2919, %v6603
  %v6605 = vpop.f32.mrb[0].mxu0
  %6606 = vmatprep.mubr.f32.mxu0 0.0
  %6607 = vmatmul.mubr.f32.gmra.mrb[0].mxu0 %v6239
  %v6608 = vpop.f32.mrb[0].mxu0
  %v6609 = vadd.f32 %v2919, %v6608
  %v6610 = vpop.f32.mrb[0].mxu0
  %6611 = vmatprep.mubr.f32.mxu0 0.0
  %6612 = vmatmul.mubr.f32.gmra.mrb[0].mxu0 %v6242
  %v6613 = vpop.f32.mrb[0].mxu0
  %v6614 = vadd.f32 %v2919, %v6613
  %v6615 = vpop.f32.mrb[0].mxu0
  %6616 = vmatprep.mubr.f32.mxu0 0.0
  %6617 = vmatmul.mubr.f32.gmra.mrb[0].mxu0 %v6245
  %v6618 = vpop.f32.mrb[0].mxu0
  %v6619 = vadd.f32 %v2919, %v6618
  %v6620 = vpop.f32.mrb[0].mxu0
  %6621 = vmatprep.mubr.f32.mxu0 0.0
  %6622 = vmatmul.mubr.f32.gmra.mrb[0].mxu0 %v6248
  %v6623 = vpop.f32.mrb[0].mxu0
  %v6624 = vadd.f32 %v2919, %v6623
  %v6625 = vpop.f32.mrb[0].mxu0
  %6626 = vmatprep.mubr.f32.mxu0 0.0
  %6627 = vmatmul.mubr.f32.gmra.mrb[0].mxu0 %v6251
  %v6628 = vpop.f32.mrb[0].mxu0
  %v6629 = vadd.f32 %v2919, %v6628
  %v6630 = vpop.f32.mrb[0].mxu0
  %6631 = vmatprep.mubr.f32.mxu0 0.0
  %6632 = vmatmul.mubr.f32.gmra.mrb[0].mxu0 %v6254
  %v6633 = vpop.f32.mrb[0].mxu0
  %v6634 = vadd.f32 %v2919, %v6633
  %v6635 = vpop.f32.mrb[0].mxu0
  %6636 = vmatprep.mubr.f32.mxu0 0.0
  %6637 = vmatmul.mubr.f32.gmra.mrb[0].mxu0 %v6257
  %v6638 = vpop.f32.mrb[0].mxu0
  %v6639 = vadd.f32 %v2919, %v6638
  %v6640 = vpop.f32.mrb[0].mxu0
  %6641 = vmatprep.mubr.f32.mxu0 0.0
  %6642 = vmatmul.mubr.f32.gmra.mrb[0].mxu0 %v6260
  %v6643 = vpop.f32.mrb[0].mxu0
  %v6644 = vadd.f32 %v2919, %v6643
  %v6645 = vpop.f32.mrb[0].mxu0
  %6646 = vdwg.mxu0
  %6647 = vxpose.xlu0.b32.start [1/16] %v6329, 128
  %6648 = vxpose.xlu0.b32.cont [2/16] %v6334, 128
  %6649 = vxpose.xlu0.b32.cont [3/16] %v6339, 128
  %6650 = vxpose.xlu0.b32.cont [4/16] %v6344, 128
  %6651 = vxpose.xlu0.b32.cont [5/16] %v6349, 128
  %6652 = vxpose.xlu0.b32.cont [6/16] %v6354, 128
  %6653 = vxpose.xlu0.b32.cont [7/16] %v6359, 128
  %6654 = vxpose.xlu0.b32.cont [8/16] %v6364, 128
  %6655 = vxpose.xlu0.b32.cont [9/16] %v6369, 128
  %6656 = vxpose.xlu0.b32.cont [10/16] %v6374, 128
  %6657 = vxpose.xlu0.b32.cont [11/16] %v6379, 128
  %6658 = vxpose.xlu0.b32.cont [12/16] %v6384, 128
  %6659 = vxpose.xlu0.b32.cont [13/16] %v6389, 128
  %6660 = vxpose.xlu0.b32.cont [14/16] %v6394, 128
  %6661 = vxpose.xlu0.b32.cont [15/16] %v6399, 128
  %6662 = vxpose.xlu0.b32.end [16/16] %v6404, 128
  %v6663 = vpop.trf.xlu0
  %v6664 = vpop.trf.xlu0
  %v6665 = vpop.trf.xlu0
  %v6666 = vpop.trf.xlu0
  %v6667 = vpop.trf.xlu0
  %v6668 = vpop.trf.xlu0
  %v6669 = vpop.trf.xlu0
  %v6670 = vpop.trf.xlu0
  %v6671 = vpop.trf.xlu0
  %v6672 = vpop.trf.xlu0
  %v6673 = vpop.trf.xlu0
  %v6674 = vpop.trf.xlu0
  %v6675 = vpop.trf.xlu0
  %v6676 = vpop.trf.xlu0
  %v6677 = vpop.trf.xlu0
  %v6678 = vpop.trf.xlu0
  %6679 = vxpose.xlu0.b32.start [1/16] %v6409, 128
  %6680 = vxpose.xlu0.b32.cont [2/16] %v6414, 128
  %6681 = vxpose.xlu0.b32.cont [3/16] %v6419, 128
  %6682 = vxpose.xlu0.b32.cont [4/16] %v6424, 128
  %6683 = vxpose.xlu0.b32.cont [5/16] %v6429, 128
  %6684 = vxpose.xlu0.b32.cont [6/16] %v6434, 128
  %6685 = vxpose.xlu0.b32.cont [7/16] %v6439, 128
  %6686 = vxpose.xlu0.b32.cont [8/16] %v6444, 128
  %6687 = vxpose.xlu0.b32.cont [9/16] %v6449, 128
  %6688 = vxpose.xlu0.b32.cont [10/16] %v6454, 128
  %6689 = vxpose.xlu0.b32.cont [11/16] %v6459, 128
  %6690 = vxpose.xlu0.b32.cont [12/16] %v6464, 128
  %6691 = vxpose.xlu0.b32.cont [13/16] %v6469, 128
  %6692 = vxpose.xlu0.b32.cont [14/16] %v6474, 128
  %6693 = vxpose.xlu0.b32.cont [15/16] %v6479, 128
  %6694 = vxpose.xlu0.b32.end [16/16] %v6484, 128
  %v6695 = vpop.trf.xlu0
  %v6696 = vpop.trf.xlu0
  %v6697 = vpop.trf.xlu0
  %v6698 = vpop.trf.xlu0
  %v6699 = vpop.trf.xlu0
  %v6700 = vpop.trf.xlu0
  %v6701 = vpop.trf.xlu0
  %v6702 = vpop.trf.xlu0
  %v6703 = vpop.trf.xlu0
  %v6704 = vpop.trf.xlu0
  %v6705 = vpop.trf.xlu0
  %v6706 = vpop.trf.xlu0
  %v6707 = vpop.trf.xlu0
  %v6708 = vpop.trf.xlu0
  %v6709 = vpop.trf.xlu0
  %v6710 = vpop.trf.xlu0
  %v6713 = vrot.slane %v6663, 4
  %v6714 = vrot.slane %v6695, 4
  %6717 = vst [vmem:[%s5] sm:$0xf0] %v6713
  %6718 = vst [vmem:[%s5 + $0x8] sm:$0xf0] %v6714
  %6719 = vxpose.xlu0.b32.start [1/16] %v6489, 128
  %6720 = vxpose.xlu0.b32.cont [2/16] %v6494, 128
  %6721 = vxpose.xlu0.b32.cont [3/16] %v6499, 128
  %6722 = vxpose.xlu0.b32.cont [4/16] %v6504, 128
  %6723 = vxpose.xlu0.b32.cont [5/16] %v6509, 128
  %6724 = vxpose.xlu0.b32.cont [6/16] %v6514, 128
  %6725 = vxpose.xlu0.b32.cont [7/16] %v6519, 128
  %6726 = vxpose.xlu0.b32.cont [8/16] %v6524, 128
  %6727 = vxpose.xlu0.b32.cont [9/16] %v6529, 128
  %6728 = vxpose.xlu0.b32.cont [10/16] %v6534, 128
  %6729 = vxpose.xlu0.b32.cont [11/16] %v6539, 128
  %6730 = vxpose.xlu0.b32.cont [12/16] %v6544, 128
  %6731 = vxpose.xlu0.b32.cont [13/16] %v6549, 128
  %6732 = vxpose.xlu0.b32.cont [14/16] %v6554, 128
  %6733 = vxpose.xlu0.b32.cont [15/16] %v6559, 128
  %6734 = vxpose.xlu0.b32.end [16/16] %v6564, 128
  %v6735 = vpop.trf.xlu0
  %v6736 = vpop.trf.xlu0
  %v6737 = vpop.trf.xlu0
  %v6738 = vpop.trf.xlu0
  %v6739 = vpop.trf.xlu0
  %v6740 = vpop.trf.xlu0
  %v6741 = vpop.trf.xlu0
  %v6742 = vpop.trf.xlu0
  %v6743 = vpop.trf.xlu0
  %v6744 = vpop.trf.xlu0
  %v6745 = vpop.trf.xlu0
  %v6746 = vpop.trf.xlu0
  %v6747 = vpop.trf.xlu0
  %v6748 = vpop.trf.xlu0
  %v6749 = vpop.trf.xlu0
  %v6750 = vpop.trf.xlu0
  %6751 = vxpose.xlu0.b32.start [1/16] %v6569, 128
  %6752 = vxpose.xlu0.b32.cont [2/16] %v6574, 128
  %6753 = vxpose.xlu0.b32.cont [3/16] %v6579, 128
  %6754 = vxpose.xlu0.b32.cont [4/16] %v6584, 128
  %6755 = vxpose.xlu0.b32.cont [5/16] %v6589, 128
  %6756 = vxpose.xlu0.b32.cont [6/16] %v6594, 128
  %6757 = vxpose.xlu0.b32.cont [7/16] %v6599, 128
  %6758 = vxpose.xlu0.b32.cont [8/16] %v6604, 128
  %6759 = vxpose.xlu0.b32.cont [9/16] %v6609, 128
  %6760 = vxpose.xlu0.b32.cont [10/16] %v6614, 128
  %6761 = vxpose.xlu0.b32.cont [11/16] %v6619, 128
  %6762 = vxpose.xlu0.b32.cont [12/16] %v6624, 128
  %6763 = vxpose.xlu0.b32.cont [13/16] %v6629, 128
  %6764 = vxpose.xlu0.b32.cont [14/16] %v6634, 128
  %6765 = vxpose.xlu0.b32.cont [15/16] %v6639, 128
  %6766 = vxpose.xlu0.b32.end [16/16] %v6644, 128
  %v6767 = vpop.trf.xlu0
  %v6768 = vpop.trf.xlu0
  %v6769 = vpop.trf.xlu0
  %v6770 = vpop.trf.xlu0
  %v6771 = vpop.trf.xlu0
  %v6772 = vpop.trf.xlu0
  %v6773 = vpop.trf.xlu0
  %v6774 = vpop.trf.xlu0
  %v6775 = vpop.trf.xlu0
  %v6776 = vpop.trf.xlu0
  %v6777 = vpop.trf.xlu0
  %v6778 = vpop.trf.xlu0
  %v6779 = vpop.trf.xlu0
  %v6780 = vpop.trf.xlu0
  %v6781 = vpop.trf.xlu0
  %v6782 = vpop.trf.xlu0
  %v6785 = vrot.slane %v6735, 4
  %v6786 = vrot.slane %v6767, 4
  %6789 = vst [vmem:[%s214] sm:$0xf0] %v6785
  %6790 = vst [vmem:[%s214 + $0x8] sm:$0xf0] %v6786
  // Predicated region
  $region22: #{complex_img_forward.1} parent=0 // pred_check
    _
  $region23: #{complex_img_forward.1} parent=0 // pred_check_branch
    %6792 = sbr.rel (0) target = $region25
  $region24: #{complex_img_forward.1} parent=0 // pred_region
    _
  $region25: #{complex_img_forward.1} parent=0 // pred_fallthru
    _
  // Predicated region
  $region26: #{complex_img_forward.1} parent=0 // pred_check
    _
  $region27: #{complex_img_forward.1} parent=0 // pred_check_branch
    %6794 = sbr.rel (0) target = $region29
  $region28: #{complex_img_forward.1} parent=0 // pred_region
    _
  $region29: #{complex_img_forward.1} parent=0 // pred_fallthru
    _

</llo_original>
